<compile_context>
chip_gen: v6e
topology: v6e:2x2x1
jax: 0.10.0
libtpu: 0.0.40
codegen_flags: <defaults>
</compile_context>

<pallas_src>
import functools

import jax
import jax.numpy as jnp
from jax.experimental import pallas as pl
from jax.experimental.pallas import tpu as pltpu

BN_EPS = 1e-5
VMEM = pltpu.MemorySpace.VMEM


# ------------------------------ Pallas kernels ------------------------------

def _conv_stats_kernel(p_ref, w_ref, out_ref, stats_ref):
    """Single big-K matmul tile + per-channel sum / sum-of-squares accumulation."""
    acc = jnp.dot(p_ref[...], w_ref[...], preferred_element_type=jnp.float32)
    out_ref[...] = acc

    s = jnp.sum(acc, axis=0, keepdims=True)          # (1, Cout)
    ss = jnp.sum(acc * acc, axis=0, keepdims=True)   # (1, Cout)

    @pl.when(pl.program_id(0) == 0)
    def _():
        stats_ref[...] = jnp.zeros_like(stats_ref)

    stats_ref[...] += jnp.concatenate([s, ss], axis=0)   # (2, Cout) accumulator


def _bn_apply_kernel(*refs, inv_m, use_relu, has_res):
    """Training-mode BN from precomputed sums (+ residual) (+ ReLU), all f32."""
    y_ref, stats_ref, g_ref, be_ref = refs[:4]
    res_ref = refs[4] if has_res else None
    out_ref = refs[-1]

    st = stats_ref[...]                        # (2, Cout) f32
    mean = st[0:1, :] * inv_m
    var = st[1:2, :] * inv_m - mean * mean     # single-pass: E[x^2] - E[x]^2
    rstd = jax.lax.rsqrt(var + BN_EPS)
    scale = g_ref[...] * rstd                  # (1, Cout) row, broadcast
    shift = be_ref[...] - mean * scale

    out = y_ref[...] * scale + shift
    if has_res:
        out = out + res_ref[...]
    if use_relu:
        out = jnp.maximum(out, 0.0)
    out_ref[...] = out


def _conv_bias_kernel(p_ref, w_ref, b_ref, out_ref, *, use_relu):
    """Plain conv (single matmul) + bias, no BN (1x1 downsample path)."""
    out = jnp.dot(p_ref[...], w_ref[...], preferred_element_type=jnp.float32)
    out = out + b_ref[...]
    if use_relu:
        out = jnp.maximum(out, 0.0)
    out_ref[...] = out


def _maxpool_kernel(x_ref, out_ref):
    """MaxPool2d(2,2): read (R, 2, Wo, 2*C) once, reduce the 2x2 window here."""
    v = x_ref[...]
    m = jnp.max(v, axis=1)                      # H-direction max -> (R, Wo, 2*C)
    c = out_ref.shape[-1]
    out_ref[...] = jnp.maximum(m[..., :c], m[..., c:])   # W-direction max


def _head_kernel(x_ref, w_ref, b_ref, out_ref):
    """AdaptiveAvgPool2d(1) + Flatten + Linear(128, 10)."""
    pooled = jnp.mean(x_ref[...], axis=1)                        # (N, C)
    out_ref[...] = jnp.dot(pooled, w_ref[...],
                           preferred_element_type=jnp.float32) + b_ref[...]


# -------------------------------- JAX glue ----------------------------------

def _row_tile(m, max_tile=256):
    for t in (max_tile, 128, 64, 32, 16, 8):
        if m % t == 0:
            return t
    return m


def _im2col(x, ksize, stride):
    """x: (N,H,W,C) bf16 -> (N*Ho*Wo, ksize*ksize*C) with taps packed into K."""
    N, H, W, C = x.shape
    pad = (ksize - 1) // 2
    xp = jnp.pad(x, ((0, 0), (pad, pad), (pad, pad), (0, 0)))
    Ho = (H + 2 * pad - ksize) // stride + 1
    Wo = (W + 2 * pad - ksize) // stride + 1
    taps = []
    for ki in range(ksize):
        for kj in range(ksize):
            taps.append(xp[:, ki:ki + stride * (Ho - 1) + 1:stride,
                           kj:kj + stride * (Wo - 1) + 1:stride, :])
    patches = jnp.concatenate(taps, axis=-1).reshape(N * Ho * Wo,
                                                     ksize * ksize * C)
    return patches, (N, Ho, Wo)


def conv_block(x, w, b, gamma=None, beta=None, residual=None, *,
               stride=1, use_bn=True, use_relu=True):
    ksize, _, Cin, Cout = w.shape
    patches, (N, Ho, Wo) = _im2col(x.astype(jnp.bfloat16), ksize, stride)
    M, K = patches.shape
    TM = _row_tile(M)
    grid = (M // TM,)
    w2 = w.reshape(K, Cout).astype(jnp.bfloat16)   # bf16 MXU operands

    if not use_bn:
        kernel = functools.partial(_conv_bias_kernel, use_relu=use_relu)
        out = pl.pallas_call(
            kernel,
            out_shape=jax.ShapeDtypeStruct((M, Cout), jnp.float32),
            grid=grid,
            in_specs=[pl.BlockSpec((TM, K), lambda i: (i, 0)),
                      pl.BlockSpec((K, Cout), lambda i: (0, 0)),
                      pl.BlockSpec((1, Cout), lambda i: (0, 0))],
            out_specs=pl.BlockSpec((TM, Cout), lambda i: (i, 0)),
            compiler_params=pltpu.CompilerParams(
                dimension_semantics=("parallel",)),
        )(patches, w2, b.reshape(1, Cout))
        return out.reshape(N, Ho, Wo, Cout)

    # Pass 1: conv matmul + exact batch-stat accumulation across M tiles.
    # (conv bias is skipped: it is cancelled by the BN mean subtraction.)
    conv_out, stats = pl.pallas_call(
        _conv_stats_kernel,
        out_shape=(jax.ShapeDtypeStruct((M, Cout), jnp.float32),
                   jax.ShapeDtypeStruct((2, Cout), jnp.float32)),
        grid=grid,
        in_specs=[pl.BlockSpec((TM, K), lambda i: (i, 0)),
                  pl.BlockSpec((K, Cout), lambda i: (0, 0))],
        out_specs=(pl.BlockSpec((TM, Cout), lambda i: (i, 0)),
                   pl.BlockSpec((2, Cout), lambda i: (0, 0))),
        compiler_params=pltpu.CompilerParams(
            dimension_semantics=("arbitrary",)),
    )(patches, w2)

    # Pass 2: normalize + affine (+ residual) (+ ReLU), tiled over M.
    has_res = residual is not None
    inputs = [conv_out, stats, gamma.reshape(1, Cout), beta.reshape(1, Cout)]
    in_specs = [pl.BlockSpec((TM, Cout), lambda i: (i, 0)),
                pl.BlockSpec((2, Cout), lambda i: (0, 0)),
                pl.BlockSpec((1, Cout), lambda i: (0, 0)),
                pl.BlockSpec((1, Cout), lambda i: (0, 0))]
    if has_res:
        inputs.append(residual.reshape(M, Cout))
        in_specs.append(pl.BlockSpec((TM, Cout), lambda i: (i, 0)))

    kernel = functools.partial(_bn_apply_kernel, inv_m=1.0 / M,
                               use_relu=use_relu, has_res=has_res)
    out = pl.pallas_call(
        kernel,
        out_shape=jax.ShapeDtypeStruct((M, Cout), jnp.float32),
        grid=grid,
        in_specs=in_specs,
        out_specs=pl.BlockSpec((TM, Cout), lambda i: (i, 0)),
        compiler_params=pltpu.CompilerParams(
            dimension_semantics=("parallel",)),
    )(*inputs)
    return out.reshape(N, Ho, Wo, Cout)


def maxpool2x2(x):
    N, H, W, C = x.shape
    Ho, Wo = H // 2, W // 2
    xr = x.reshape(N * Ho, 2, Wo, 2 * C)     # free reshape (contiguous NHWC)
    out = pl.pallas_call(
        _maxpool_kernel,
        out_shape=jax.ShapeDtypeStruct((N * Ho, Wo, C), jnp.float32),
        in_specs=[pl.BlockSpec(memory_space=VMEM)],
        out_specs=pl.BlockSpec(memory_space=VMEM),
    )(xr)
    return out.reshape(N, Ho, Wo, C)


def head(x, w, b):
    N, H, W, C = x.shape
    return pl.pallas_call(
        _head_kernel,
        out_shape=jax.ShapeDtypeStruct((N, w.shape[1]), jnp.float32),
        in_specs=[pl.BlockSpec(memory_space=VMEM)] * 3,
        out_specs=pl.BlockSpec(memory_space=VMEM),
    )(x.reshape(N, H * W, C), w, b.reshape(1, -1))


# ------------------------------ Model / params ------------------------------

def _conv_w(key, kh, kw, cin, cout):
    fan_in = kh * kw * cin
    return (jax.random.normal(key, (kh, kw, cin, cout), jnp.float32)
            / jnp.sqrt(jnp.float32(fan_in)))


def _residual_params(key, cin, cout, downsample):
    k = jax.random.split(key, 3)
    p = {
        "w1": _conv_w(k[0], 3, 3, cin, cout), "b1": jnp.zeros((cout,), jnp.float32),
        "g1": jnp.ones((cout,), jnp.float32), "be1": jnp.zeros((cout,), jnp.float32),
        "w2": _conv_w(k[1], 3, 3, cout, cout), "b2": jnp.zeros((cout,), jnp.float32),
        "g2": jnp.ones((cout,), jnp.float32), "be2": jnp.zeros((cout,), jnp.float32),
    }
    if downsample:
        p["wd"] = _conv_w(k[2], 1, 1, cin, cout)
        p["bd"] = jnp.zeros((cout,), jnp.float32)
    return p


def init_params(key):
    keys = jax.random.split(key, 6)
    return {
        "s0": {"w": _conv_w(keys[0], 3, 3, 1, 32),
               "b": jnp.zeros((32,), jnp.float32),
               "g": jnp.ones((32,), jnp.float32),
               "be": jnp.zeros((32,), jnp.float32)},
        "s1": _residual_params(keys[1], 32, 64, True),
        "s2": _residual_params(keys[2], 64, 128, True),
        "s3": _residual_params(keys[3], 128, 128, False),
        "fc_w": (jax.random.normal(keys[4], (128, 10), jnp.float32)
                 / jnp.sqrt(jnp.float32(128.0))),
        "fc_b": jnp.zeros((10,), jnp.float32),
    }


def residual_block(x, p, stride, has_down):
    # y = relu(bn1(conv1(x)))
    y = conv_block(x, p["w1"], p["b1"], p["g1"], p["be1"], stride=stride)
    # x = downsample(x) if present (1x1 conv, bias, no BN, no ReLU)
    if has_down:
        xr = conv_block(x, p["wd"], p["bd"], stride=stride,
                        use_bn=False, use_relu=False)
    else:
        xr = x
    # y = relu(bn2(conv2(y)) + x)   (residual add + ReLU fused in pass 2)
    return conv_block(y, p["w2"], p["b2"], p["g2"], p["be2"],
                      residual=xr, stride=1)


def resnet_forward(x_nchw, params):
    x = jnp.transpose(x_nchw, (0, 2, 3, 1))      # NCHW -> NHWC
    s0 = params["s0"]
    x = conv_block(x, s0["w"], s0["b"], s0["g"], s0["be"])   # conv+BN+ReLU
    x = maxpool2x2(x)                                        # MaxPool2d(2,2)
    x = residual_block(x, params["s1"], stride=1, has_down=True)
    x = residual_block(x, params["s2"], stride=2, has_down=True)
    x = residual_block(x, params["s3"], stride=1, has_down=False)
    return head(x, params["fc_w"], params["fc_b"])           # avgpool + Linear


# ---------------------------------- main -------------------------------------

if __name__ == "__main__":
    key = jax.random.PRNGKey(0)
    k_x, k_p = jax.random.split(key)
    x = jax.random.normal(k_x, (2, 1, 16, 16), jnp.float32)   # NCHW input
    params = init_params(k_p)

    fwd = jax.jit(resnet_forward)
    out = jax.block_until_ready(fwd(x, params))
    assert out.shape == (2, 10), out.shape
    assert out.dtype == jnp.float32
    print("KERNEL_OK")
</pallas_src>

<mosaic_0001>
module attributes {stable_mosaic.version = 11 : i64} {
  func.func @_conv_stats_kernel(%arg0: i32, %arg1: memref<256x9xbf16, #tpu.memory_space<vmem>>, %arg2: memref<9x32xbf16, #tpu.memory_space<vmem>>, %arg3: memref<256x32xf32, #tpu.memory_space<vmem>>, %arg4: memref<2x32xf32, #tpu.memory_space<vmem>>) attributes {dimension_semantics = [#tpu.dimension_semantics<arbitrary>], iteration_bounds = array<i64: 2>, scalar_prefetch = 0 : i64, scratch_operands = 0 : i64, tpu.core_type = #tpu.core_type<tc>, window_params = [{transform_indices = @transform_0, window_bounds = array<i64: 256, 9>}, {pipeline_mode = #tpu.pipeline_mode<synchronous>, transform_indices = @transform_1, window_bounds = array<i64: 9, 32>}, {transform_indices = @transform_2, window_bounds = array<i64: 256, 32>}, {pipeline_mode = #tpu.pipeline_mode<synchronous>, transform_indices = @transform_3, window_bounds = array<i64: 2, 32>}]} {
    %c0 = arith.constant 0 : index
    %c0_0 = arith.constant 0 : index
    %0 = vector.load %arg1[%c0, %c0_0] : memref<256x9xbf16, #tpu.memory_space<vmem>>, vector<256x9xbf16>
    %c0_1 = arith.constant 0 : index
    %c0_2 = arith.constant 0 : index
    %1 = vector.load %arg2[%c0_1, %c0_2] : memref<9x32xbf16, #tpu.memory_space<vmem>>, vector<9x32xbf16>
    %cst = arith.constant dense<0.000000e+00> : vector<256x32xf32>
    %2 = tpu.matmul %0, %1, %cst {dimension_numbers = #tpu.dot_dimension_numbers<[1], [0], [0], [1], [0, 0, 1, 1], [], []>} : vector<256x9xbf16>, vector<9x32xbf16>, vector<256x32xf32> -> vector<256x32xf32>
    %c0_3 = arith.constant 0 : index
    %c0_4 = arith.constant 0 : index
    %3 = vector.load %arg3[%c0_3, %c0_4] : memref<256x32xf32, #tpu.memory_space<vmem>>, vector<256x32xf32>
    tpu.vector_store %arg3[%c0_3, %c0_4], %2 {strides = array<i32>} : memref<256x32xf32, #tpu.memory_space<vmem>>, vector<256x32xf32>,
    %cst_5 = arith.constant dense<0.000000e+00> : vector<32xf32>
    %4 = vector.multi_reduction <add>, %2, %cst_5 [0] : vector<256x32xf32> to vector<32xf32>
    %5 = vector.shape_cast %4 : vector<32xf32> to vector<1x32xf32>
    %6 = arith.mulf %2, %2 : vector<256x32xf32>
    %cst_6 = arith.constant dense<0.000000e+00> : vector<32xf32>
    %7 = vector.multi_reduction <add>, %6, %cst_6 [0] : vector<256x32xf32> to vector<32xf32>
    %8 = vector.shape_cast %7 : vector<32xf32> to vector<1x32xf32>
    %c0_i32 = arith.constant 0 : i32
    %9 = arith.cmpi eq, %arg0, %c0_i32 : i32
    %10 = arith.extui %9 : i1 to i32
    %c0_i32_7 = arith.constant 0 : i32
    %11 = arith.cmpi ne, %10, %c0_i32_7 : i32
    scf.if %11 {
      %cst_12 = arith.constant 0.000000e+00 : f32
      %16 = vector.broadcast %cst_12 : f32 to vector<2x32xf32>
      %c0_13 = arith.constant 0 : index
      %c0_14 = arith.constant 0 : index
      %17 = vector.load %arg4[%c0_13, %c0_14] : memref<2x32xf32, #tpu.memory_space<vmem>>, vector<2x32xf32>
      tpu.vector_store %arg4[%c0_13, %c0_14], %16 {strides = array<i32>} : memref<2x32xf32, #tpu.memory_space<vmem>>, vector<2x32xf32>,
    } else {
    }
    %c0_8 = arith.constant 0 : index
    %c0_9 = arith.constant 0 : index
    %12 = vector.load %arg4[%c0_8, %c0_9] : memref<2x32xf32, #tpu.memory_space<vmem>>, vector<2x32xf32>
    %13 = tpu.concatenate %5, %8 in 0 : vector<1x32xf32>, vector<1x32xf32> -> vector<2x32xf32>
    %14 = arith.addf %12, %13 : vector<2x32xf32>
    %c0_10 = arith.constant 0 : index
    %c0_11 = arith.constant 0 : index
    %15 = vector.load %arg4[%c0_10, %c0_11] : memref<2x32xf32, #tpu.memory_space<vmem>>, vector<2x32xf32>
    tpu.vector_store %arg4[%c0_10, %c0_11], %14 {strides = array<i32>} : memref<2x32xf32, #tpu.memory_space<vmem>>, vector<2x32xf32>,
    return
  }
  func.func @transform_0(%arg0: i32) -> (i32, i32) {
    %c0_i32 = arith.constant 0 : i32
    %c0_i32_0 = arith.constant 0 : i32
    return %arg0, %c0_i32 : i32, i32
  }
  func.func @transform_1(%arg0: i32) -> (i32, i32) {
    %c0_i32 = arith.constant 0 : i32
    %c0_i32_0 = arith.constant 0 : i32
    %c0_i32_1 = arith.constant 0 : i32
    return %c0_i32, %c0_i32_0 : i32, i32
  }
  func.func @transform_2(%arg0: i32) -> (i32, i32) {
    %c0_i32 = arith.constant 0 : i32
    %c0_i32_0 = arith.constant 0 : i32
    return %arg0, %c0_i32 : i32, i32
  }
  func.func @transform_3(%arg0: i32) -> (i32, i32) {
    %c0_i32 = arith.constant 0 : i32
    %c0_i32_0 = arith.constant 0 : i32
    %c0_i32_1 = arith.constant 0 : i32
    return %c0_i32, %c0_i32_0 : i32, i32
  }
}

module attributes {stable_mosaic.version = 11 : i64} {
  func.func @_maxpool_kernel(%arg0: memref<16x2x8x64xf32, #tpu.memory_space<vmem>>, %arg1: memref<16x8x32xf32, #tpu.memory_space<vmem>>) attributes {dimension_semantics = [], scalar_prefetch = 0 : i64, scratch_operands = 0 : i64, tpu.core_type = #tpu.core_type<tc>} {
    %c0 = arith.constant 0 : index
    %c0_0 = arith.constant 0 : index
    %c0_1 = arith.constant 0 : index
    %c0_2 = arith.constant 0 : index
    %0 = vector.load %arg0[%c0, %c0_0, %c0_1, %c0_2] : memref<16x2x8x64xf32, #tpu.memory_space<vmem>>, vector<16x2x8x64xf32>
    %cst = arith.constant dense<0xFF800000> : vector<16x8x64xf32>
    %1 = vector.multi_reduction <maximumf>, %0, %cst [1] : vector<16x2x8x64xf32> to vector<16x8x64xf32>
    %2 = vector.extract_strided_slice %1 {offsets = [0, 0, 0], sizes = [16, 8, 32], strides = [1, 1, 1]} : vector<16x8x64xf32> to vector<16x8x32xf32>
    %3 = vector.extract_strided_slice %1 {offsets = [0, 0, 32], sizes = [16, 8, 32], strides = [1, 1, 1]} : vector<16x8x64xf32> to vector<16x8x32xf32>
    %4 = arith.maximumf %2, %3 : vector<16x8x32xf32>
    %c0_3 = arith.constant 0 : index
    %c0_4 = arith.constant 0 : index
    %c0_5 = arith.constant 0 : index
    %5 = vector.load %arg1[%c0_3, %c0_4, %c0_5] : memref<16x8x32xf32, #tpu.memory_space<vmem>>, vector<16x8x32xf32>
    tpu.vector_store %arg1[%c0_3, %c0_4, %c0_5], %4 {strides = array<i32>} : memref<16x8x32xf32, #tpu.memory_space<vmem>>, vector<16x8x32xf32>,
    return
  }
}

module attributes {stable_mosaic.version = 11 : i64} {
  func.func @_bn_apply_kernel(%arg0: i32, %arg1: memref<256x32xf32, #tpu.memory_space<vmem>>, %arg2: memref<2x32xf32, #tpu.memory_space<vmem>>, %arg3: memref<1x32xf32, #tpu.memory_space<vmem>>, %arg4: memref<1x32xf32, #tpu.memory_space<vmem>>, %arg5: memref<256x32xf32, #tpu.memory_space<vmem>>) attributes {dimension_semantics = [#tpu.dimension_semantics<parallel>], iteration_bounds = array<i64: 2>, scalar_prefetch = 0 : i64, scratch_operands = 0 : i64, tpu.core_type = #tpu.core_type<tc>, window_params = [{transform_indices = @transform_0, window_bounds = array<i64: 256, 32>}, {pipeline_mode = #tpu.pipeline_mode<synchronous>, transform_indices = @transform_1, window_bounds = array<i64: 2, 32>}, {pipeline_mode = #tpu.pipeline_mode<synchronous>, transform_indices = @transform_2, window_bounds = array<i64: 1, 32>}, {pipeline_mode = #tpu.pipeline_mode<synchronous>, transform_indices = @transform_3, window_bounds = array<i64: 1, 32>}, {transform_indices = @transform_4, window_bounds = array<i64: 256, 32>}]} {
    %c0 = arith.constant 0 : index
    %c0_0 = arith.constant 0 : index
    %0 = vector.load %arg2[%c0, %c0_0] : memref<2x32xf32, #tpu.memory_space<vmem>>, vector<2x32xf32>
    %1 = vector.extract_strided_slice %0 {offsets = [0, 0], sizes = [1, 32], strides = [1, 1]} : vector<2x32xf32> to vector<1x32xf32>
    %cst = arith.constant 0.001953125 : f32
    %2 = vector.broadcast %cst : f32 to vector<1x32xf32>
    %3 = arith.mulf %1, %2 : vector<1x32xf32>
    %4 = vector.extract_strided_slice %0 {offsets = [1, 0], sizes = [1, 32], strides = [1, 1]} : vector<2x32xf32> to vector<1x32xf32>
    %cst_1 = arith.constant 0.001953125 : f32
    %5 = vector.broadcast %cst_1 : f32 to vector<1x32xf32>
    %6 = arith.mulf %4, %5 : vector<1x32xf32>
    %7 = arith.mulf %3, %3 : vector<1x32xf32>
    %8 = arith.subf %6, %7 : vector<1x32xf32>
    %cst_2 = arith.constant 9.99999974E-6 : f32
    %9 = vector.broadcast %cst_2 : f32 to vector<1x32xf32>
    %10 = arith.addf %8, %9 : vector<1x32xf32>
    %11 = math.rsqrt %10 : vector<1x32xf32>
    %c0_3 = arith.constant 0 : index
    %c0_4 = arith.constant 0 : index
    %12 = vector.load %arg3[%c0_3, %c0_4] : memref<1x32xf32, #tpu.memory_space<vmem>>, vector<1x32xf32>
    %13 = arith.mulf %12, %11 : vector<1x32xf32>
    %c0_5 = arith.constant 0 : index
    %c0_6 = arith.constant 0 : index
    %14 = vector.load %arg4[%c0_5, %c0_6] : memref<1x32xf32, #tpu.memory_space<vmem>>, vector<1x32xf32>
    %15 = arith.mulf %3, %13 : vector<1x32xf32>
    %16 = arith.subf %14, %15 : vector<1x32xf32>
    %c0_7 = arith.constant 0 : index
    %c0_8 = arith.constant 0 : index
    %17 = vector.load %arg1[%c0_7, %c0_8] : memref<256x32xf32, #tpu.memory_space<vmem>>, vector<256x32xf32>
    %18 = vector.broadcast %13 : vector<1x32xf32> to vector<256x32xf32>
    %19 = arith.mulf %17, %18 : vector<256x32xf32>
    %20 = vector.broadcast %16 : vector<1x32xf32> to vector<256x32xf32>
    %21 = arith.addf %19, %20 : vector<256x32xf32>
    %cst_9 = arith.constant 0.000000e+00 : f32
    %22 = vector.broadcast %cst_9 : f32 to vector<256x32xf32>
    %23 = arith.maximumf %21, %22 : vector<256x32xf32>
    %c0_10 = arith.constant 0 : index
    %c0_11 = arith.constant 0 : index
    %24 = vector.load %arg5[%c0_10, %c0_11] : memref<256x32xf32, #tpu.memory_space<vmem>>, vector<256x32xf32>
    tpu.vector_store %arg5[%c0_10, %c0_11], %23 {strides = array<i32>} : memref<256x32xf32, #tpu.memory_space<vmem>>, vector<256x32xf32>,
    return
  }
  func.func @transform_0(%arg0: i32) -> (i32, i32) {
    %c0_i32 = arith.constant 0 : i32
    %c0_i32_0 = arith.constant 0 : i32
    return %arg0, %c0_i32 : i32, i32
  }
  func.func @transform_1(%arg0: i32) -> (i32, i32) {
    %c0_i32 = arith.constant 0 : i32
    %c0_i32_0 = arith.constant 0 : i32
    %c0_i32_1 = arith.constant 0 : i32
    return %c0_i32, %c0_i32_0 : i32, i32
  }
  func.func @transform_2(%arg0: i32) -> (i32, i32) {
    %c0_i32 = arith.constant 0 : i32
    %c0_i32_0 = arith.constant 0 : i32
    %c0_i32_1 = arith.constant 0 : i32
    return %c0_i32, %c0_i32_0 : i32, i32
  }
  func.func @transform_3(%arg0: i32) -> (i32, i32) {
    %c0_i32 = arith.constant 0 : i32
    %c0_i32_0 = arith.constant 0 : i32
    %c0_i32_1 = arith.constant 0 : i32
    return %c0_i32, %c0_i32_0 : i32, i32
  }
  func.func @transform_4(%arg0: i32) -> (i32, i32) {
    %c0_i32 = arith.constant 0 : i32
    %c0_i32_0 = arith.constant 0 : i32
    return %arg0, %c0_i32 : i32, i32
  }
}

module attributes {stable_mosaic.version = 11 : i64} {
  func.func @_bn_apply_kernel(%arg0: i32, %arg1: memref<128x64xf32, #tpu.memory_space<vmem>>, %arg2: memref<2x64xf32, #tpu.memory_space<vmem>>, %arg3: memref<1x64xf32, #tpu.memory_space<vmem>>, %arg4: memref<1x64xf32, #tpu.memory_space<vmem>>, %arg5: memref<128x64xf32, #tpu.memory_space<vmem>>) attributes {dimension_semantics = [#tpu.dimension_semantics<parallel>], iteration_bounds = array<i64: 1>, scalar_prefetch = 0 : i64, scratch_operands = 0 : i64, tpu.core_type = #tpu.core_type<tc>, window_params = [{transform_indices = @transform_0, window_bounds = array<i64: 128, 64>}, {pipeline_mode = #tpu.pipeline_mode<synchronous>, transform_indices = @transform_1, window_bounds = array<i64: 2, 64>}, {pipeline_mode = #tpu.pipeline_mode<synchronous>, transform_indices = @transform_2, window_bounds = array<i64: 1, 64>}, {pipeline_mode = #tpu.pipeline_mode<synchronous>, transform_indices = @transform_3, window_bounds = array<i64: 1, 64>}, {transform_indices = @transform_4, window_bounds = array<i64: 128, 64>}]} {
    %c0 = arith.constant 0 : index
    %c0_0 = arith.constant 0 : index
    %0 = vector.load %arg2[%c0, %c0_0] : memref<2x64xf32, #tpu.memory_space<vmem>>, vector<2x64xf32>
    %1 = vector.extract_strided_slice %0 {offsets = [0, 0], sizes = [1, 64], strides = [1, 1]} : vector<2x64xf32> to vector<1x64xf32>
    %cst = arith.constant 7.812500e-03 : f32
    %2 = vector.broadcast %cst : f32 to vector<1x64xf32>
    %3 = arith.mulf %1, %2 : vector<1x64xf32>
    %4 = vector.extract_strided_slice %0 {offsets = [1, 0], sizes = [1, 64], strides = [1, 1]} : vector<2x64xf32> to vector<1x64xf32>
    %cst_1 = arith.constant 7.812500e-03 : f32
    %5 = vector.broadcast %cst_1 : f32 to vector<1x64xf32>
    %6 = arith.mulf %4, %5 : vector<1x64xf32>
    %7 = arith.mulf %3, %3 : vector<1x64xf32>
    %8 = arith.subf %6, %7 : vector<1x64xf32>
    %cst_2 = arith.constant 9.99999974E-6 : f32
    %9 = vector.broadcast %cst_2 : f32 to vector<1x64xf32>
    %10 = arith.addf %8, %9 : vector<1x64xf32>
    %11 = math.rsqrt %10 : vector<1x64xf32>
    %c0_3 = arith.constant 0 : index
    %c0_4 = arith.constant 0 : index
    %12 = vector.load %arg3[%c0_3, %c0_4] : memref<1x64xf32, #tpu.memory_space<vmem>>, vector<1x64xf32>
    %13 = arith.mulf %12, %11 : vector<1x64xf32>
    %c0_5 = arith.constant 0 : index
    %c0_6 = arith.constant 0 : index
    %14 = vector.load %arg4[%c0_5, %c0_6] : memref<1x64xf32, #tpu.memory_space<vmem>>, vector<1x64xf32>
    %15 = arith.mulf %3, %13 : vector<1x64xf32>
    %16 = arith.subf %14, %15 : vector<1x64xf32>
    %c0_7 = arith.constant 0 : index
    %c0_8 = arith.constant 0 : index
    %17 = vector.load %arg1[%c0_7, %c0_8] : memref<128x64xf32, #tpu.memory_space<vmem>>, vector<128x64xf32>
    %18 = vector.broadcast %13 : vector<1x64xf32> to vector<128x64xf32>
    %19 = arith.mulf %17, %18 : vector<128x64xf32>
    %20 = vector.broadcast %16 : vector<1x64xf32> to vector<128x64xf32>
    %21 = arith.addf %19, %20 : vector<128x64xf32>
    %cst_9 = arith.constant 0.000000e+00 : f32
    %22 = vector.broadcast %cst_9 : f32 to vector<128x64xf32>
    %23 = arith.maximumf %21, %22 : vector<128x64xf32>
    %c0_10 = arith.constant 0 : index
    %c0_11 = arith.constant 0 : index
    %24 = vector.load %arg5[%c0_10, %c0_11] : memref<128x64xf32, #tpu.memory_space<vmem>>, vector<128x64xf32>
    tpu.vector_store %arg5[%c0_10, %c0_11], %23 {strides = array<i32>} : memref<128x64xf32, #tpu.memory_space<vmem>>, vector<128x64xf32>,
    return
  }
  func.func @transform_0(%arg0: i32) -> (i32, i32) {
    %c0_i32 = arith.constant 0 : i32
    %c0_i32_0 = arith.constant 0 : i32
    return %arg0, %c0_i32 : i32, i32
  }
  func.func @transform_1(%arg0: i32) -> (i32, i32) {
    %c0_i32 = arith.constant 0 : i32
    %c0_i32_0 = arith.constant 0 : i32
    %c0_i32_1 = arith.constant 0 : i32
    return %c0_i32, %c0_i32_0 : i32, i32
  }
  func.func @transform_2(%arg0: i32) -> (i32, i32) {
    %c0_i32 = arith.constant 0 : i32
    %c0_i32_0 = arith.constant 0 : i32
    %c0_i32_1 = arith.constant 0 : i32
    return %c0_i32, %c0_i32_0 : i32, i32
  }
  func.func @transform_3(%arg0: i32) -> (i32, i32) {
    %c0_i32 = arith.constant 0 : i32
    %c0_i32_0 = arith.constant 0 : i32
    %c0_i32_1 = arith.constant 0 : i32
    return %c0_i32, %c0_i32_0 : i32, i32
  }
  func.func @transform_4(%arg0: i32) -> (i32, i32) {
    %c0_i32 = arith.constant 0 : i32
    %c0_i32_0 = arith.constant 0 : i32
    return %arg0, %c0_i32 : i32, i32
  }
}

module attributes {stable_mosaic.version = 11 : i64} {
  func.func @_conv_stats_kernel(%arg0: i32, %arg1: memref<128x288xbf16, #tpu.memory_space<vmem>>, %arg2: memref<288x64xbf16, #tpu.memory_space<vmem>>, %arg3: memref<128x64xf32, #tpu.memory_space<vmem>>, %arg4: memref<2x64xf32, #tpu.memory_space<vmem>>) attributes {dimension_semantics = [#tpu.dimension_semantics<arbitrary>], iteration_bounds = array<i64: 1>, scalar_prefetch = 0 : i64, scratch_operands = 0 : i64, tpu.core_type = #tpu.core_type<tc>, window_params = [{transform_indices = @transform_0, window_bounds = array<i64: 128, 288>}, {pipeline_mode = #tpu.pipeline_mode<synchronous>, transform_indices = @transform_1, window_bounds = array<i64: 288, 64>}, {transform_indices = @transform_2, window_bounds = array<i64: 128, 64>}, {pipeline_mode = #tpu.pipeline_mode<synchronous>, transform_indices = @transform_3, window_bounds = array<i64: 2, 64>}]} {
    %c0 = arith.constant 0 : index
    %c0_0 = arith.constant 0 : index
    %0 = vector.load %arg1[%c0, %c0_0] : memref<128x288xbf16, #tpu.memory_space<vmem>>, vector<128x288xbf16>
    %c0_1 = arith.constant 0 : index
    %c0_2 = arith.constant 0 : index
    %1 = vector.load %arg2[%c0_1, %c0_2] : memref<288x64xbf16, #tpu.memory_space<vmem>>, vector<288x64xbf16>
    %cst = arith.constant dense<0.000000e+00> : vector<128x64xf32>
    %2 = tpu.matmul %0, %1, %cst {dimension_numbers = #tpu.dot_dimension_numbers<[1], [0], [0], [1], [0, 0, 1, 1], [], []>} : vector<128x288xbf16>, vector<288x64xbf16>, vector<128x64xf32> -> vector<128x64xf32>
    %c0_3 = arith.constant 0 : index
    %c0_4 = arith.constant 0 : index
    %3 = vector.load %arg3[%c0_3, %c0_4] : memref<128x64xf32, #tpu.memory_space<vmem>>, vector<128x64xf32>
    tpu.vector_store %arg3[%c0_3, %c0_4], %2 {strides = array<i32>} : memref<128x64xf32, #tpu.memory_space<vmem>>, vector<128x64xf32>,
    %cst_5 = arith.constant dense<0.000000e+00> : vector<64xf32>
    %4 = vector.multi_reduction <add>, %2, %cst_5 [0] : vector<128x64xf32> to vector<64xf32>
    %5 = vector.shape_cast %4 : vector<64xf32> to vector<1x64xf32>
    %6 = arith.mulf %2, %2 : vector<128x64xf32>
    %cst_6 = arith.constant dense<0.000000e+00> : vector<64xf32>
    %7 = vector.multi_reduction <add>, %6, %cst_6 [0] : vector<128x64xf32> to vector<64xf32>
    %8 = vector.shape_cast %7 : vector<64xf32> to vector<1x64xf32>
    %c0_i32 = arith.constant 0 : i32
    %9 = arith.cmpi eq, %arg0, %c0_i32 : i32
    %10 = arith.extui %9 : i1 to i32
    %c0_i32_7 = arith.constant 0 : i32
    %11 = arith.cmpi ne, %10, %c0_i32_7 : i32
    scf.if %11 {
      %cst_12 = arith.constant 0.000000e+00 : f32
      %16 = vector.broadcast %cst_12 : f32 to vector<2x64xf32>
      %c0_13 = arith.constant 0 : index
      %c0_14 = arith.constant 0 : index
      %17 = vector.load %arg4[%c0_13, %c0_14] : memref<2x64xf32, #tpu.memory_space<vmem>>, vector<2x64xf32>
      tpu.vector_store %arg4[%c0_13, %c0_14], %16 {strides = array<i32>} : memref<2x64xf32, #tpu.memory_space<vmem>>, vector<2x64xf32>,
    } else {
    }
    %c0_8 = arith.constant 0 : index
    %c0_9 = arith.constant 0 : index
    %12 = vector.load %arg4[%c0_8, %c0_9] : memref<2x64xf32, #tpu.memory_space<vmem>>, vector<2x64xf32>
    %13 = tpu.concatenate %5, %8 in 0 : vector<1x64xf32>, vector<1x64xf32> -> vector<2x64xf32>
    %14 = arith.addf %12, %13 : vector<2x64xf32>
    %c0_10 = arith.constant 0 : index
    %c0_11 = arith.constant 0 : index
    %15 = vector.load %arg4[%c0_10, %c0_11] : memref<2x64xf32, #tpu.memory_space<vmem>>, vector<2x64xf32>
    tpu.vector_store %arg4[%c0_10, %c0_11], %14 {strides = array<i32>} : memref<2x64xf32, #tpu.memory_space<vmem>>, vector<2x64xf32>,
    return
  }
  func.func @transform_0(%arg0: i32) -> (i32, i32) {
    %c0_i32 = arith.constant 0 : i32
    %c0_i32_0 = arith.constant 0 : i32
    return %arg0, %c0_i32 : i32, i32
  }
  func.func @transform_1(%arg0: i32) -> (i32, i32) {
    %c0_i32 = arith.constant 0 : i32
    %c0_i32_0 = arith.constant 0 : i32
    %c0_i32_1 = arith.constant 0 : i32
    return %c0_i32, %c0_i32_0 : i32, i32
  }
  func.func @transform_2(%arg0: i32) -> (i32, i32) {
    %c0_i32 = arith.constant 0 : i32
    %c0_i32_0 = arith.constant 0 : i32
    return %arg0, %c0_i32 : i32, i32
  }
  func.func @transform_3(%arg0: i32) -> (i32, i32) {
    %c0_i32 = arith.constant 0 : i32
    %c0_i32_0 = arith.constant 0 : i32
    %c0_i32_1 = arith.constant 0 : i32
    return %c0_i32, %c0_i32_0 : i32, i32
  }
}

module attributes {stable_mosaic.version = 11 : i64} {
  func.func @_conv_stats_kernel(%arg0: i32, %arg1: memref<128x576xbf16, #tpu.memory_space<vmem>>, %arg2: memref<576x64xbf16, #tpu.memory_space<vmem>>, %arg3: memref<128x64xf32, #tpu.memory_space<vmem>>, %arg4: memref<2x64xf32, #tpu.memory_space<vmem>>) attributes {dimension_semantics = [#tpu.dimension_semantics<arbitrary>], iteration_bounds = array<i64: 1>, scalar_prefetch = 0 : i64, scratch_operands = 0 : i64, tpu.core_type = #tpu.core_type<tc>, window_params = [{transform_indices = @transform_0, window_bounds = array<i64: 128, 576>}, {pipeline_mode = #tpu.pipeline_mode<synchronous>, transform_indices = @transform_1, window_bounds = array<i64: 576, 64>}, {transform_indices = @transform_2, window_bounds = array<i64: 128, 64>}, {pipeline_mode = #tpu.pipeline_mode<synchronous>, transform_indices = @transform_3, window_bounds = array<i64: 2, 64>}]} {
    %c0 = arith.constant 0 : index
    %c0_0 = arith.constant 0 : index
    %0 = vector.load %arg1[%c0, %c0_0] : memref<128x576xbf16, #tpu.memory_space<vmem>>, vector<128x576xbf16>
    %c0_1 = arith.constant 0 : index
    %c0_2 = arith.constant 0 : index
    %1 = vector.load %arg2[%c0_1, %c0_2] : memref<576x64xbf16, #tpu.memory_space<vmem>>, vector<576x64xbf16>
    %cst = arith.constant dense<0.000000e+00> : vector<128x64xf32>
    %2 = tpu.matmul %0, %1, %cst {dimension_numbers = #tpu.dot_dimension_numbers<[1], [0], [0], [1], [0, 0, 1, 1], [], []>} : vector<128x576xbf16>, vector<576x64xbf16>, vector<128x64xf32> -> vector<128x64xf32>
    %c0_3 = arith.constant 0 : index
    %c0_4 = arith.constant 0 : index
    %3 = vector.load %arg3[%c0_3, %c0_4] : memref<128x64xf32, #tpu.memory_space<vmem>>, vector<128x64xf32>
    tpu.vector_store %arg3[%c0_3, %c0_4], %2 {strides = array<i32>} : memref<128x64xf32, #tpu.memory_space<vmem>>, vector<128x64xf32>,
    %cst_5 = arith.constant dense<0.000000e+00> : vector<64xf32>
    %4 = vector.multi_reduction <add>, %2, %cst_5 [0] : vector<128x64xf32> to vector<64xf32>
    %5 = vector.shape_cast %4 : vector<64xf32> to vector<1x64xf32>
    %6 = arith.mulf %2, %2 : vector<128x64xf32>
    %cst_6 = arith.constant dense<0.000000e+00> : vector<64xf32>
    %7 = vector.multi_reduction <add>, %6, %cst_6 [0] : vector<128x64xf32> to vector<64xf32>
    %8 = vector.shape_cast %7 : vector<64xf32> to vector<1x64xf32>
    %c0_i32 = arith.constant 0 : i32
    %9 = arith.cmpi eq, %arg0, %c0_i32 : i32
    %10 = arith.extui %9 : i1 to i32
    %c0_i32_7 = arith.constant 0 : i32
    %11 = arith.cmpi ne, %10, %c0_i32_7 : i32
    scf.if %11 {
      %cst_12 = arith.constant 0.000000e+00 : f32
      %16 = vector.broadcast %cst_12 : f32 to vector<2x64xf32>
      %c0_13 = arith.constant 0 : index
      %c0_14 = arith.constant 0 : index
      %17 = vector.load %arg4[%c0_13, %c0_14] : memref<2x64xf32, #tpu.memory_space<vmem>>, vector<2x64xf32>
      tpu.vector_store %arg4[%c0_13, %c0_14], %16 {strides = array<i32>} : memref<2x64xf32, #tpu.memory_space<vmem>>, vector<2x64xf32>,
    } else {
    }
    %c0_8 = arith.constant 0 : index
    %c0_9 = arith.constant 0 : index
    %12 = vector.load %arg4[%c0_8, %c0_9] : memref<2x64xf32, #tpu.memory_space<vmem>>, vector<2x64xf32>
    %13 = tpu.concatenate %5, %8 in 0 : vector<1x64xf32>, vector<1x64xf32> -> vector<2x64xf32>
    %14 = arith.addf %12, %13 : vector<2x64xf32>
    %c0_10 = arith.constant 0 : index
    %c0_11 = arith.constant 0 : index
    %15 = vector.load %arg4[%c0_10, %c0_11] : memref<2x64xf32, #tpu.memory_space<vmem>>, vector<2x64xf32>
    tpu.vector_store %arg4[%c0_10, %c0_11], %14 {strides = array<i32>} : memref<2x64xf32, #tpu.memory_space<vmem>>, vector<2x64xf32>,
    return
  }
  func.func @transform_0(%arg0: i32) -> (i32, i32) {
    %c0_i32 = arith.constant 0 : i32
    %c0_i32_0 = arith.constant 0 : i32
    return %arg0, %c0_i32 : i32, i32
  }
  func.func @transform_1(%arg0: i32) -> (i32, i32) {
    %c0_i32 = arith.constant 0 : i32
    %c0_i32_0 = arith.constant 0 : i32
    %c0_i32_1 = arith.constant 0 : i32
    return %c0_i32, %c0_i32_0 : i32, i32
  }
  func.func @transform_2(%arg0: i32) -> (i32, i32) {
    %c0_i32 = arith.constant 0 : i32
    %c0_i32_0 = arith.constant 0 : i32
    return %arg0, %c0_i32 : i32, i32
  }
  func.func @transform_3(%arg0: i32) -> (i32, i32) {
    %c0_i32 = arith.constant 0 : i32
    %c0_i32_0 = arith.constant 0 : i32
    %c0_i32_1 = arith.constant 0 : i32
    return %c0_i32, %c0_i32_0 : i32, i32
  }
}

module attributes {stable_mosaic.version = 11 : i64} {
  func.func @_conv_bias_kernel(%arg0: i32, %arg1: memref<128x32xbf16, #tpu.memory_space<vmem>>, %arg2: memref<32x64xbf16, #tpu.memory_space<vmem>>, %arg3: memref<1x64xf32, #tpu.memory_space<vmem>>, %arg4: memref<128x64xf32, #tpu.memory_space<vmem>>) attributes {dimension_semantics = [#tpu.dimension_semantics<parallel>], iteration_bounds = array<i64: 1>, scalar_prefetch = 0 : i64, scratch_operands = 0 : i64, tpu.core_type = #tpu.core_type<tc>, window_params = [{transform_indices = @transform_0, window_bounds = array<i64: 128, 32>}, {pipeline_mode = #tpu.pipeline_mode<synchronous>, transform_indices = @transform_1, window_bounds = array<i64: 32, 64>}, {pipeline_mode = #tpu.pipeline_mode<synchronous>, transform_indices = @transform_2, window_bounds = array<i64: 1, 64>}, {transform_indices = @transform_3, window_bounds = array<i64: 128, 64>}]} {
    %c0 = arith.constant 0 : index
    %c0_0 = arith.constant 0 : index
    %0 = vector.load %arg1[%c0, %c0_0] : memref<128x32xbf16, #tpu.memory_space<vmem>>, vector<128x32xbf16>
    %c0_1 = arith.constant 0 : index
    %c0_2 = arith.constant 0 : index
    %1 = vector.load %arg2[%c0_1, %c0_2] : memref<32x64xbf16, #tpu.memory_space<vmem>>, vector<32x64xbf16>
    %cst = arith.constant dense<0.000000e+00> : vector<128x64xf32>
    %2 = tpu.matmul %0, %1, %cst {dimension_numbers = #tpu.dot_dimension_numbers<[1], [0], [0], [1], [0, 0, 1, 1], [], []>} : vector<128x32xbf16>, vector<32x64xbf16>, vector<128x64xf32> -> vector<128x64xf32>
    %c0_3 = arith.constant 0 : index
    %c0_4 = arith.constant 0 : index
    %3 = vector.load %arg3[%c0_3, %c0_4] : memref<1x64xf32, #tpu.memory_space<vmem>>, vector<1x64xf32>
    %4 = vector.broadcast %3 : vector<1x64xf32> to vector<128x64xf32>
    %5 = arith.addf %2, %4 : vector<128x64xf32>
    %c0_5 = arith.constant 0 : index
    %c0_6 = arith.constant 0 : index
    %6 = vector.load %arg4[%c0_5, %c0_6] : memref<128x64xf32, #tpu.memory_space<vmem>>, vector<128x64xf32>
    tpu.vector_store %arg4[%c0_5, %c0_6], %5 {strides = array<i32>} : memref<128x64xf32, #tpu.memory_space<vmem>>, vector<128x64xf32>,
    return
  }
  func.func @transform_0(%arg0: i32) -> (i32, i32) {
    %c0_i32 = arith.constant 0 : i32
    %c0_i32_0 = arith.constant 0 : i32
    return %arg0, %c0_i32 : i32, i32
  }
  func.func @transform_1(%arg0: i32) -> (i32, i32) {
    %c0_i32 = arith.constant 0 : i32
    %c0_i32_0 = arith.constant 0 : i32
    %c0_i32_1 = arith.constant 0 : i32
    return %c0_i32, %c0_i32_0 : i32, i32
  }
  func.func @transform_2(%arg0: i32) -> (i32, i32) {
    %c0_i32 = arith.constant 0 : i32
    %c0_i32_0 = arith.constant 0 : i32
    %c0_i32_1 = arith.constant 0 : i32
    return %c0_i32, %c0_i32_0 : i32, i32
  }
  func.func @transform_3(%arg0: i32) -> (i32, i32) {
    %c0_i32 = arith.constant 0 : i32
    %c0_i32_0 = arith.constant 0 : i32
    return %arg0, %c0_i32 : i32, i32
  }
}

module attributes {stable_mosaic.version = 11 : i64} {
  func.func @_bn_apply_kernel(%arg0: i32, %arg1: memref<128x64xf32, #tpu.memory_space<vmem>>, %arg2: memref<2x64xf32, #tpu.memory_space<vmem>>, %arg3: memref<1x64xf32, #tpu.memory_space<vmem>>, %arg4: memref<1x64xf32, #tpu.memory_space<vmem>>, %arg5: memref<128x64xf32, #tpu.memory_space<vmem>>, %arg6: memref<128x64xf32, #tpu.memory_space<vmem>>) attributes {dimension_semantics = [#tpu.dimension_semantics<parallel>], iteration_bounds = array<i64: 1>, scalar_prefetch = 0 : i64, scratch_operands = 0 : i64, tpu.core_type = #tpu.core_type<tc>, window_params = [{transform_indices = @transform_0, window_bounds = array<i64: 128, 64>}, {pipeline_mode = #tpu.pipeline_mode<synchronous>, transform_indices = @transform_1, window_bounds = array<i64: 2, 64>}, {pipeline_mode = #tpu.pipeline_mode<synchronous>, transform_indices = @transform_2, window_bounds = array<i64: 1, 64>}, {pipeline_mode = #tpu.pipeline_mode<synchronous>, transform_indices = @transform_3, window_bounds = array<i64: 1, 64>}, {transform_indices = @transform_4, window_bounds = array<i64: 128, 64>}, {transform_indices = @transform_5, window_bounds = array<i64: 128, 64>}]} {
    %c0 = arith.constant 0 : index
    %c0_0 = arith.constant 0 : index
    %0 = vector.load %arg2[%c0, %c0_0] : memref<2x64xf32, #tpu.memory_space<vmem>>, vector<2x64xf32>
    %1 = vector.extract_strided_slice %0 {offsets = [0, 0], sizes = [1, 64], strides = [1, 1]} : vector<2x64xf32> to vector<1x64xf32>
    %cst = arith.constant 7.812500e-03 : f32
    %2 = vector.broadcast %cst : f32 to vector<1x64xf32>
    %3 = arith.mulf %1, %2 : vector<1x64xf32>
    %4 = vector.extract_strided_slice %0 {offsets = [1, 0], sizes = [1, 64], strides = [1, 1]} : vector<2x64xf32> to vector<1x64xf32>
    %cst_1 = arith.constant 7.812500e-03 : f32
    %5 = vector.broadcast %cst_1 : f32 to vector<1x64xf32>
    %6 = arith.mulf %4, %5 : vector<1x64xf32>
    %7 = arith.mulf %3, %3 : vector<1x64xf32>
    %8 = arith.subf %6, %7 : vector<1x64xf32>
    %cst_2 = arith.constant 9.99999974E-6 : f32
    %9 = vector.broadcast %cst_2 : f32 to vector<1x64xf32>
    %10 = arith.addf %8, %9 : vector<1x64xf32>
    %11 = math.rsqrt %10 : vector<1x64xf32>
    %c0_3 = arith.constant 0 : index
    %c0_4 = arith.constant 0 : index
    %12 = vector.load %arg3[%c0_3, %c0_4] : memref<1x64xf32, #tpu.memory_space<vmem>>, vector<1x64xf32>
    %13 = arith.mulf %12, %11 : vector<1x64xf32>
    %c0_5 = arith.constant 0 : index
    %c0_6 = arith.constant 0 : index
    %14 = vector.load %arg4[%c0_5, %c0_6] : memref<1x64xf32, #tpu.memory_space<vmem>>, vector<1x64xf32>
    %15 = arith.mulf %3, %13 : vector<1x64xf32>
    %16 = arith.subf %14, %15 : vector<1x64xf32>
    %c0_7 = arith.constant 0 : index
    %c0_8 = arith.constant 0 : index
    %17 = vector.load %arg1[%c0_7, %c0_8] : memref<128x64xf32, #tpu.memory_space<vmem>>, vector<128x64xf32>
    %18 = vector.broadcast %13 : vector<1x64xf32> to vector<128x64xf32>
    %19 = arith.mulf %17, %18 : vector<128x64xf32>
    %20 = vector.broadcast %16 : vector<1x64xf32> to vector<128x64xf32>
    %21 = arith.addf %19, %20 : vector<128x64xf32>
    %c0_9 = arith.constant 0 : index
    %c0_10 = arith.constant 0 : index
    %22 = vector.load %arg5[%c0_9, %c0_10] : memref<128x64xf32, #tpu.memory_space<vmem>>, vector<128x64xf32>
    %23 = arith.addf %21, %22 : vector<128x64xf32>
    %cst_11 = arith.constant 0.000000e+00 : f32
    %24 = vector.broadcast %cst_11 : f32 to vector<128x64xf32>
    %25 = arith.maximumf %23, %24 : vector<128x64xf32>
    %c0_12 = arith.constant 0 : index
    %c0_13 = arith.constant 0 : index
    %26 = vector.load %arg6[%c0_12, %c0_13] : memref<128x64xf32, #tpu.memory_space<vmem>>, vector<128x64xf32>
    tpu.vector_store %arg6[%c0_12, %c0_13], %25 {strides = array<i32>} : memref<128x64xf32, #tpu.memory_space<vmem>>, vector<128x64xf32>,
    return
  }
  func.func @transform_0(%arg0: i32) -> (i32, i32) {
    %c0_i32 = arith.constant 0 : i32
    %c0_i32_0 = arith.constant 0 : i32
    return %arg0, %c0_i32 : i32, i32
  }
  func.func @transform_1(%arg0: i32) -> (i32, i32) {
    %c0_i32 = arith.constant 0 : i32
    %c0_i32_0 = arith.constant 0 : i32
    %c0_i32_1 = arith.constant 0 : i32
    return %c0_i32, %c0_i32_0 : i32, i32
  }
  func.func @transform_2(%arg0: i32) -> (i32, i32) {
    %c0_i32 = arith.constant 0 : i32
    %c0_i32_0 = arith.constant 0 : i32
    %c0_i32_1 = arith.constant 0 : i32
    return %c0_i32, %c0_i32_0 : i32, i32
  }
  func.func @transform_3(%arg0: i32) -> (i32, i32) {
    %c0_i32 = arith.constant 0 : i32
    %c0_i32_0 = arith.constant 0 : i32
    %c0_i32_1 = arith.constant 0 : i32
    return %c0_i32, %c0_i32_0 : i32, i32
  }
  func.func @transform_4(%arg0: i32) -> (i32, i32) {
    %c0_i32 = arith.constant 0 : i32
    %c0_i32_0 = arith.constant 0 : i32
    return %arg0, %c0_i32 : i32, i32
  }
  func.func @transform_5(%arg0: i32) -> (i32, i32) {
    %c0_i32 = arith.constant 0 : i32
    %c0_i32_0 = arith.constant 0 : i32
    return %arg0, %c0_i32 : i32, i32
  }
}

module attributes {stable_mosaic.version = 11 : i64} {
  func.func @_bn_apply_kernel(%arg0: i32, %arg1: memref<32x128xf32, #tpu.memory_space<vmem>>, %arg2: memref<2x128xf32, #tpu.memory_space<vmem>>, %arg3: memref<1x128xf32, #tpu.memory_space<vmem>>, %arg4: memref<1x128xf32, #tpu.memory_space<vmem>>, %arg5: memref<32x128xf32, #tpu.memory_space<vmem>>) attributes {dimension_semantics = [#tpu.dimension_semantics<parallel>], iteration_bounds = array<i64: 1>, scalar_prefetch = 0 : i64, scratch_operands = 0 : i64, tpu.core_type = #tpu.core_type<tc>, window_params = [{transform_indices = @transform_0, window_bounds = array<i64: 32, 128>}, {pipeline_mode = #tpu.pipeline_mode<synchronous>, transform_indices = @transform_1, window_bounds = array<i64: 2, 128>}, {pipeline_mode = #tpu.pipeline_mode<synchronous>, transform_indices = @transform_2, window_bounds = array<i64: 1, 128>}, {pipeline_mode = #tpu.pipeline_mode<synchronous>, transform_indices = @transform_3, window_bounds = array<i64: 1, 128>}, {transform_indices = @transform_4, window_bounds = array<i64: 32, 128>}]} {
    %c0 = arith.constant 0 : index
    %c0_0 = arith.constant 0 : index
    %0 = vector.load %arg2[%c0, %c0_0] : memref<2x128xf32, #tpu.memory_space<vmem>>, vector<2x128xf32>
    %1 = vector.extract_strided_slice %0 {offsets = [0, 0], sizes = [1, 128], strides = [1, 1]} : vector<2x128xf32> to vector<1x128xf32>
    %cst = arith.constant 3.125000e-02 : f32
    %2 = vector.broadcast %cst : f32 to vector<1x128xf32>
    %3 = arith.mulf %1, %2 : vector<1x128xf32>
    %4 = vector.extract_strided_slice %0 {offsets = [1, 0], sizes = [1, 128], strides = [1, 1]} : vector<2x128xf32> to vector<1x128xf32>
    %cst_1 = arith.constant 3.125000e-02 : f32
    %5 = vector.broadcast %cst_1 : f32 to vector<1x128xf32>
    %6 = arith.mulf %4, %5 : vector<1x128xf32>
    %7 = arith.mulf %3, %3 : vector<1x128xf32>
    %8 = arith.subf %6, %7 : vector<1x128xf32>
    %cst_2 = arith.constant 9.99999974E-6 : f32
    %9 = vector.broadcast %cst_2 : f32 to vector<1x128xf32>
    %10 = arith.addf %8, %9 : vector<1x128xf32>
    %11 = math.rsqrt %10 : vector<1x128xf32>
    %c0_3 = arith.constant 0 : index
    %c0_4 = arith.constant 0 : index
    %12 = vector.load %arg3[%c0_3, %c0_4] : memref<1x128xf32, #tpu.memory_space<vmem>>, vector<1x128xf32>
    %13 = arith.mulf %12, %11 : vector<1x128xf32>
    %c0_5 = arith.constant 0 : index
    %c0_6 = arith.constant 0 : index
    %14 = vector.load %arg4[%c0_5, %c0_6] : memref<1x128xf32, #tpu.memory_space<vmem>>, vector<1x128xf32>
    %15 = arith.mulf %3, %13 : vector<1x128xf32>
    %16 = arith.subf %14, %15 : vector<1x128xf32>
    %c0_7 = arith.constant 0 : index
    %c0_8 = arith.constant 0 : index
    %17 = vector.load %arg1[%c0_7, %c0_8] : memref<32x128xf32, #tpu.memory_space<vmem>>, vector<32x128xf32>
    %18 = vector.broadcast %13 : vector<1x128xf32> to vector<32x128xf32>
    %19 = arith.mulf %17, %18 : vector<32x128xf32>
    %20 = vector.broadcast %16 : vector<1x128xf32> to vector<32x128xf32>
    %21 = arith.addf %19, %20 : vector<32x128xf32>
    %cst_9 = arith.constant 0.000000e+00 : f32
    %22 = vector.broadcast %cst_9 : f32 to vector<32x128xf32>
    %23 = arith.maximumf %21, %22 : vector<32x128xf32>
    %c0_10 = arith.constant 0 : index
    %c0_11 = arith.constant 0 : index
    %24 = vector.load %arg5[%c0_10, %c0_11] : memref<32x128xf32, #tpu.memory_space<vmem>>, vector<32x128xf32>
    tpu.vector_store %arg5[%c0_10, %c0_11], %23 {strides = array<i32>} : memref<32x128xf32, #tpu.memory_space<vmem>>, vector<32x128xf32>,
    return
  }
  func.func @transform_0(%arg0: i32) -> (i32, i32) {
    %c0_i32 = arith.constant 0 : i32
    %c0_i32_0 = arith.constant 0 : i32
    return %arg0, %c0_i32 : i32, i32
  }
  func.func @transform_1(%arg0: i32) -> (i32, i32) {
    %c0_i32 = arith.constant 0 : i32
    %c0_i32_0 = arith.constant 0 : i32
    %c0_i32_1 = arith.constant 0 : i32
    return %c0_i32, %c0_i32_0 : i32, i32
  }
  func.func @transform_2(%arg0: i32) -> (i32, i32) {
    %c0_i32 = arith.constant 0 : i32
    %c0_i32_0 = arith.constant 0 : i32
    %c0_i32_1 = arith.constant 0 : i32
    return %c0_i32, %c0_i32_0 : i32, i32
  }
  func.func @transform_3(%arg0: i32) -> (i32, i32) {
    %c0_i32 = arith.constant 0 : i32
    %c0_i32_0 = arith.constant 0 : i32
    %c0_i32_1 = arith.constant 0 : i32
    return %c0_i32, %c0_i32_0 : i32, i32
  }
  func.func @transform_4(%arg0: i32) -> (i32, i32) {
    %c0_i32 = arith.constant 0 : i32
    %c0_i32_0 = arith.constant 0 : i32
    return %arg0, %c0_i32 : i32, i32
  }
}

module attributes {stable_mosaic.version = 11 : i64} {
  func.func @_conv_stats_kernel(%arg0: i32, %arg1: memref<32x576xbf16, #tpu.memory_space<vmem>>, %arg2: memref<576x128xbf16, #tpu.memory_space<vmem>>, %arg3: memref<32x128xf32, #tpu.memory_space<vmem>>, %arg4: memref<2x128xf32, #tpu.memory_space<vmem>>) attributes {dimension_semantics = [#tpu.dimension_semantics<arbitrary>], iteration_bounds = array<i64: 1>, scalar_prefetch = 0 : i64, scratch_operands = 0 : i64, tpu.core_type = #tpu.core_type<tc>, window_params = [{transform_indices = @transform_0, window_bounds = array<i64: 32, 576>}, {pipeline_mode = #tpu.pipeline_mode<synchronous>, transform_indices = @transform_1, window_bounds = array<i64: 576, 128>}, {transform_indices = @transform_2, window_bounds = array<i64: 32, 128>}, {pipeline_mode = #tpu.pipeline_mode<synchronous>, transform_indices = @transform_3, window_bounds = array<i64: 2, 128>}]} {
    %c0 = arith.constant 0 : index
    %c0_0 = arith.constant 0 : index
    %0 = vector.load %arg1[%c0, %c0_0] : memref<32x576xbf16, #tpu.memory_space<vmem>>, vector<32x576xbf16>
    %c0_1 = arith.constant 0 : index
    %c0_2 = arith.constant 0 : index
    %1 = vector.load %arg2[%c0_1, %c0_2] : memref<576x128xbf16, #tpu.memory_space<vmem>>, vector<576x128xbf16>
    %cst = arith.constant dense<0.000000e+00> : vector<32x128xf32>
    %2 = tpu.matmul %0, %1, %cst {dimension_numbers = #tpu.dot_dimension_numbers<[1], [0], [0], [1], [0, 0, 1, 1], [], []>} : vector<32x576xbf16>, vector<576x128xbf16>, vector<32x128xf32> -> vector<32x128xf32>
    %c0_3 = arith.constant 0 : index
    %c0_4 = arith.constant 0 : index
    %3 = vector.load %arg3[%c0_3, %c0_4] : memref<32x128xf32, #tpu.memory_space<vmem>>, vector<32x128xf32>
    tpu.vector_store %arg3[%c0_3, %c0_4], %2 {strides = array<i32>} : memref<32x128xf32, #tpu.memory_space<vmem>>, vector<32x128xf32>,
    %cst_5 = arith.constant dense<0.000000e+00> : vector<128xf32>
    %4 = vector.multi_reduction <add>, %2, %cst_5 [0] : vector<32x128xf32> to vector<128xf32>
    %5 = vector.shape_cast %4 : vector<128xf32> to vector<1x128xf32>
    %6 = arith.mulf %2, %2 : vector<32x128xf32>
    %cst_6 = arith.constant dense<0.000000e+00> : vector<128xf32>
    %7 = vector.multi_reduction <add>, %6, %cst_6 [0] : vector<32x128xf32> to vector<128xf32>
    %8 = vector.shape_cast %7 : vector<128xf32> to vector<1x128xf32>
    %c0_i32 = arith.constant 0 : i32
    %9 = arith.cmpi eq, %arg0, %c0_i32 : i32
    %10 = arith.extui %9 : i1 to i32
    %c0_i32_7 = arith.constant 0 : i32
    %11 = arith.cmpi ne, %10, %c0_i32_7 : i32
    scf.if %11 {
      %cst_12 = arith.constant 0.000000e+00 : f32
      %16 = vector.broadcast %cst_12 : f32 to vector<2x128xf32>
      %c0_13 = arith.constant 0 : index
      %c0_14 = arith.constant 0 : index
      %17 = vector.load %arg4[%c0_13, %c0_14] : memref<2x128xf32, #tpu.memory_space<vmem>>, vector<2x128xf32>
      tpu.vector_store %arg4[%c0_13, %c0_14], %16 {strides = array<i32>} : memref<2x128xf32, #tpu.memory_space<vmem>>, vector<2x128xf32>,
    } else {
    }
    %c0_8 = arith.constant 0 : index
    %c0_9 = arith.constant 0 : index
    %12 = vector.load %arg4[%c0_8, %c0_9] : memref<2x128xf32, #tpu.memory_space<vmem>>, vector<2x128xf32>
    %13 = tpu.concatenate %5, %8 in 0 : vector<1x128xf32>, vector<1x128xf32> -> vector<2x128xf32>
    %14 = arith.addf %12, %13 : vector<2x128xf32>
    %c0_10 = arith.constant 0 : index
    %c0_11 = arith.constant 0 : index
    %15 = vector.load %arg4[%c0_10, %c0_11] : memref<2x128xf32, #tpu.memory_space<vmem>>, vector<2x128xf32>
    tpu.vector_store %arg4[%c0_10, %c0_11], %14 {strides = array<i32>} : memref<2x128xf32, #tpu.memory_space<vmem>>, vector<2x128xf32>,
    return
  }
  func.func @transform_0(%arg0: i32) -> (i32, i32) {
    %c0_i32 = arith.constant 0 : i32
    %c0_i32_0 = arith.constant 0 : i32
    return %arg0, %c0_i32 : i32, i32
  }
  func.func @transform_1(%arg0: i32) -> (i32, i32) {
    %c0_i32 = arith.constant 0 : i32
    %c0_i32_0 = arith.constant 0 : i32
    %c0_i32_1 = arith.constant 0 : i32
    return %c0_i32, %c0_i32_0 : i32, i32
  }
  func.func @transform_2(%arg0: i32) -> (i32, i32) {
    %c0_i32 = arith.constant 0 : i32
    %c0_i32_0 = arith.constant 0 : i32
    return %arg0, %c0_i32 : i32, i32
  }
  func.func @transform_3(%arg0: i32) -> (i32, i32) {
    %c0_i32 = arith.constant 0 : i32
    %c0_i32_0 = arith.constant 0 : i32
    %c0_i32_1 = arith.constant 0 : i32
    return %c0_i32, %c0_i32_0 : i32, i32
  }
}

module attributes {stable_mosaic.version = 11 : i64} {
  func.func @_conv_stats_kernel(%arg0: i32, %arg1: memref<32x1152xbf16, #tpu.memory_space<vmem>>, %arg2: memref<1152x128xbf16, #tpu.memory_space<vmem>>, %arg3: memref<32x128xf32, #tpu.memory_space<vmem>>, %arg4: memref<2x128xf32, #tpu.memory_space<vmem>>) attributes {dimension_semantics = [#tpu.dimension_semantics<arbitrary>], iteration_bounds = array<i64: 1>, scalar_prefetch = 0 : i64, scratch_operands = 0 : i64, tpu.core_type = #tpu.core_type<tc>, window_params = [{transform_indices = @transform_0, window_bounds = array<i64: 32, 1152>}, {pipeline_mode = #tpu.pipeline_mode<synchronous>, transform_indices = @transform_1, window_bounds = array<i64: 1152, 128>}, {transform_indices = @transform_2, window_bounds = array<i64: 32, 128>}, {pipeline_mode = #tpu.pipeline_mode<synchronous>, transform_indices = @transform_3, window_bounds = array<i64: 2, 128>}]} {
    %c0 = arith.constant 0 : index
    %c0_0 = arith.constant 0 : index
    %0 = vector.load %arg1[%c0, %c0_0] : memref<32x1152xbf16, #tpu.memory_space<vmem>>, vector<32x1152xbf16>
    %c0_1 = arith.constant 0 : index
    %c0_2 = arith.constant 0 : index
    %1 = vector.load %arg2[%c0_1, %c0_2] : memref<1152x128xbf16, #tpu.memory_space<vmem>>, vector<1152x128xbf16>
    %cst = arith.constant dense<0.000000e+00> : vector<32x128xf32>
    %2 = tpu.matmul %0, %1, %cst {dimension_numbers = #tpu.dot_dimension_numbers<[1], [0], [0], [1], [0, 0, 1, 1], [], []>} : vector<32x1152xbf16>, vector<1152x128xbf16>, vector<32x128xf32> -> vector<32x128xf32>
    %c0_3 = arith.constant 0 : index
    %c0_4 = arith.constant 0 : index
    %3 = vector.load %arg3[%c0_3, %c0_4] : memref<32x128xf32, #tpu.memory_space<vmem>>, vector<32x128xf32>
    tpu.vector_store %arg3[%c0_3, %c0_4], %2 {strides = array<i32>} : memref<32x128xf32, #tpu.memory_space<vmem>>, vector<32x128xf32>,
    %cst_5 = arith.constant dense<0.000000e+00> : vector<128xf32>
    %4 = vector.multi_reduction <add>, %2, %cst_5 [0] : vector<32x128xf32> to vector<128xf32>
    %5 = vector.shape_cast %4 : vector<128xf32> to vector<1x128xf32>
    %6 = arith.mulf %2, %2 : vector<32x128xf32>
    %cst_6 = arith.constant dense<0.000000e+00> : vector<128xf32>
    %7 = vector.multi_reduction <add>, %6, %cst_6 [0] : vector<32x128xf32> to vector<128xf32>
    %8 = vector.shape_cast %7 : vector<128xf32> to vector<1x128xf32>
    %c0_i32 = arith.constant 0 : i32
    %9 = arith.cmpi eq, %arg0, %c0_i32 : i32
    %10 = arith.extui %9 : i1 to i32
    %c0_i32_7 = arith.constant 0 : i32
    %11 = arith.cmpi ne, %10, %c0_i32_7 : i32
    scf.if %11 {
      %cst_12 = arith.constant 0.000000e+00 : f32
      %16 = vector.broadcast %cst_12 : f32 to vector<2x128xf32>
      %c0_13 = arith.constant 0 : index
      %c0_14 = arith.constant 0 : index
      %17 = vector.load %arg4[%c0_13, %c0_14] : memref<2x128xf32, #tpu.memory_space<vmem>>, vector<2x128xf32>
      tpu.vector_store %arg4[%c0_13, %c0_14], %16 {strides = array<i32>} : memref<2x128xf32, #tpu.memory_space<vmem>>, vector<2x128xf32>,
    } else {
    }
    %c0_8 = arith.constant 0 : index
    %c0_9 = arith.constant 0 : index
    %12 = vector.load %arg4[%c0_8, %c0_9] : memref<2x128xf32, #tpu.memory_space<vmem>>, vector<2x128xf32>
    %13 = tpu.concatenate %5, %8 in 0 : vector<1x128xf32>, vector<1x128xf32> -> vector<2x128xf32>
    %14 = arith.addf %12, %13 : vector<2x128xf32>
    %c0_10 = arith.constant 0 : index
    %c0_11 = arith.constant 0 : index
    %15 = vector.load %arg4[%c0_10, %c0_11] : memref<2x128xf32, #tpu.memory_space<vmem>>, vector<2x128xf32>
    tpu.vector_store %arg4[%c0_10, %c0_11], %14 {strides = array<i32>} : memref<2x128xf32, #tpu.memory_space<vmem>>, vector<2x128xf32>,
    return
  }
  func.func @transform_0(%arg0: i32) -> (i32, i32) {
    %c0_i32 = arith.constant 0 : i32
    %c0_i32_0 = arith.constant 0 : i32
    return %arg0, %c0_i32 : i32, i32
  }
  func.func @transform_1(%arg0: i32) -> (i32, i32) {
    %c0_i32 = arith.constant 0 : i32
    %c0_i32_0 = arith.constant 0 : i32
    %c0_i32_1 = arith.constant 0 : i32
    return %c0_i32, %c0_i32_0 : i32, i32
  }
  func.func @transform_2(%arg0: i32) -> (i32, i32) {
    %c0_i32 = arith.constant 0 : i32
    %c0_i32_0 = arith.constant 0 : i32
    return %arg0, %c0_i32 : i32, i32
  }
  func.func @transform_3(%arg0: i32) -> (i32, i32) {
    %c0_i32 = arith.constant 0 : i32
    %c0_i32_0 = arith.constant 0 : i32
    %c0_i32_1 = arith.constant 0 : i32
    return %c0_i32, %c0_i32_0 : i32, i32
  }
}

module attributes {stable_mosaic.version = 11 : i64} {
  func.func @_conv_bias_kernel(%arg0: i32, %arg1: memref<32x64xbf16, #tpu.memory_space<vmem>>, %arg2: memref<64x128xbf16, #tpu.memory_space<vmem>>, %arg3: memref<1x128xf32, #tpu.memory_space<vmem>>, %arg4: memref<32x128xf32, #tpu.memory_space<vmem>>) attributes {dimension_semantics = [#tpu.dimension_semantics<parallel>], iteration_bounds = array<i64: 1>, scalar_prefetch = 0 : i64, scratch_operands = 0 : i64, tpu.core_type = #tpu.core_type<tc>, window_params = [{transform_indices = @transform_0, window_bounds = array<i64: 32, 64>}, {pipeline_mode = #tpu.pipeline_mode<synchronous>, transform_indices = @transform_1, window_bounds = array<i64: 64, 128>}, {pipeline_mode = #tpu.pipeline_mode<synchronous>, transform_indices = @transform_2, window_bounds = array<i64: 1, 128>}, {transform_indices = @transform_3, window_bounds = array<i64: 32, 128>}]} {
    %c0 = arith.constant 0 : index
    %c0_0 = arith.constant 0 : index
    %0 = vector.load %arg1[%c0, %c0_0] : memref<32x64xbf16, #tpu.memory_space<vmem>>, vector<32x64xbf16>
    %c0_1 = arith.constant 0 : index
    %c0_2 = arith.constant 0 : index
    %1 = vector.load %arg2[%c0_1, %c0_2] : memref<64x128xbf16, #tpu.memory_space<vmem>>, vector<64x128xbf16>
    %cst = arith.constant dense<0.000000e+00> : vector<32x128xf32>
    %2 = tpu.matmul %0, %1, %cst {dimension_numbers = #tpu.dot_dimension_numbers<[1], [0], [0], [1], [0, 0, 1, 1], [], []>} : vector<32x64xbf16>, vector<64x128xbf16>, vector<32x128xf32> -> vector<32x128xf32>
    %c0_3 = arith.constant 0 : index
    %c0_4 = arith.constant 0 : index
    %3 = vector.load %arg3[%c0_3, %c0_4] : memref<1x128xf32, #tpu.memory_space<vmem>>, vector<1x128xf32>
    %4 = vector.broadcast %3 : vector<1x128xf32> to vector<32x128xf32>
    %5 = arith.addf %2, %4 : vector<32x128xf32>
    %c0_5 = arith.constant 0 : index
    %c0_6 = arith.constant 0 : index
    %6 = vector.load %arg4[%c0_5, %c0_6] : memref<32x128xf32, #tpu.memory_space<vmem>>, vector<32x128xf32>
    tpu.vector_store %arg4[%c0_5, %c0_6], %5 {strides = array<i32>} : memref<32x128xf32, #tpu.memory_space<vmem>>, vector<32x128xf32>,
    return
  }
  func.func @transform_0(%arg0: i32) -> (i32, i32) {
    %c0_i32 = arith.constant 0 : i32
    %c0_i32_0 = arith.constant 0 : i32
    return %arg0, %c0_i32 : i32, i32
  }
  func.func @transform_1(%arg0: i32) -> (i32, i32) {
    %c0_i32 = arith.constant 0 : i32
    %c0_i32_0 = arith.constant 0 : i32
    %c0_i32_1 = arith.constant 0 : i32
    return %c0_i32, %c0_i32_0 : i32, i32
  }
  func.func @transform_2(%arg0: i32) -> (i32, i32) {
    %c0_i32 = arith.constant 0 : i32
    %c0_i32_0 = arith.constant 0 : i32
    %c0_i32_1 = arith.constant 0 : i32
    return %c0_i32, %c0_i32_0 : i32, i32
  }
  func.func @transform_3(%arg0: i32) -> (i32, i32) {
    %c0_i32 = arith.constant 0 : i32
    %c0_i32_0 = arith.constant 0 : i32
    return %arg0, %c0_i32 : i32, i32
  }
}

module attributes {stable_mosaic.version = 11 : i64} {
  func.func @_bn_apply_kernel(%arg0: i32, %arg1: memref<32x128xf32, #tpu.memory_space<vmem>>, %arg2: memref<2x128xf32, #tpu.memory_space<vmem>>, %arg3: memref<1x128xf32, #tpu.memory_space<vmem>>, %arg4: memref<1x128xf32, #tpu.memory_space<vmem>>, %arg5: memref<32x128xf32, #tpu.memory_space<vmem>>, %arg6: memref<32x128xf32, #tpu.memory_space<vmem>>) attributes {dimension_semantics = [#tpu.dimension_semantics<parallel>], iteration_bounds = array<i64: 1>, scalar_prefetch = 0 : i64, scratch_operands = 0 : i64, tpu.core_type = #tpu.core_type<tc>, window_params = [{transform_indices = @transform_0, window_bounds = array<i64: 32, 128>}, {pipeline_mode = #tpu.pipeline_mode<synchronous>, transform_indices = @transform_1, window_bounds = array<i64: 2, 128>}, {pipeline_mode = #tpu.pipeline_mode<synchronous>, transform_indices = @transform_2, window_bounds = array<i64: 1, 128>}, {pipeline_mode = #tpu.pipeline_mode<synchronous>, transform_indices = @transform_3, window_bounds = array<i64: 1, 128>}, {transform_indices = @transform_4, window_bounds = array<i64: 32, 128>}, {transform_indices = @transform_5, window_bounds = array<i64: 32, 128>}]} {
    %c0 = arith.constant 0 : index
    %c0_0 = arith.constant 0 : index
    %0 = vector.load %arg2[%c0, %c0_0] : memref<2x128xf32, #tpu.memory_space<vmem>>, vector<2x128xf32>
    %1 = vector.extract_strided_slice %0 {offsets = [0, 0], sizes = [1, 128], strides = [1, 1]} : vector<2x128xf32> to vector<1x128xf32>
    %cst = arith.constant 3.125000e-02 : f32
    %2 = vector.broadcast %cst : f32 to vector<1x128xf32>
    %3 = arith.mulf %1, %2 : vector<1x128xf32>
    %4 = vector.extract_strided_slice %0 {offsets = [1, 0], sizes = [1, 128], strides = [1, 1]} : vector<2x128xf32> to vector<1x128xf32>
    %cst_1 = arith.constant 3.125000e-02 : f32
    %5 = vector.broadcast %cst_1 : f32 to vector<1x128xf32>
    %6 = arith.mulf %4, %5 : vector<1x128xf32>
    %7 = arith.mulf %3, %3 : vector<1x128xf32>
    %8 = arith.subf %6, %7 : vector<1x128xf32>
    %cst_2 = arith.constant 9.99999974E-6 : f32
    %9 = vector.broadcast %cst_2 : f32 to vector<1x128xf32>
    %10 = arith.addf %8, %9 : vector<1x128xf32>
    %11 = math.rsqrt %10 : vector<1x128xf32>
    %c0_3 = arith.constant 0 : index
    %c0_4 = arith.constant 0 : index
    %12 = vector.load %arg3[%c0_3, %c0_4] : memref<1x128xf32, #tpu.memory_space<vmem>>, vector<1x128xf32>
    %13 = arith.mulf %12, %11 : vector<1x128xf32>
    %c0_5 = arith.constant 0 : index
    %c0_6 = arith.constant 0 : index
    %14 = vector.load %arg4[%c0_5, %c0_6] : memref<1x128xf32, #tpu.memory_space<vmem>>, vector<1x128xf32>
    %15 = arith.mulf %3, %13 : vector<1x128xf32>
    %16 = arith.subf %14, %15 : vector<1x128xf32>
    %c0_7 = arith.constant 0 : index
    %c0_8 = arith.constant 0 : index
    %17 = vector.load %arg1[%c0_7, %c0_8] : memref<32x128xf32, #tpu.memory_space<vmem>>, vector<32x128xf32>
    %18 = vector.broadcast %13 : vector<1x128xf32> to vector<32x128xf32>
    %19 = arith.mulf %17, %18 : vector<32x128xf32>
    %20 = vector.broadcast %16 : vector<1x128xf32> to vector<32x128xf32>
    %21 = arith.addf %19, %20 : vector<32x128xf32>
    %c0_9 = arith.constant 0 : index
    %c0_10 = arith.constant 0 : index
    %22 = vector.load %arg5[%c0_9, %c0_10] : memref<32x128xf32, #tpu.memory_space<vmem>>, vector<32x128xf32>
    %23 = arith.addf %21, %22 : vector<32x128xf32>
    %cst_11 = arith.constant 0.000000e+00 : f32
    %24 = vector.broadcast %cst_11 : f32 to vector<32x128xf32>
    %25 = arith.maximumf %23, %24 : vector<32x128xf32>
    %c0_12 = arith.constant 0 : index
    %c0_13 = arith.constant 0 : index
    %26 = vector.load %arg6[%c0_12, %c0_13] : memref<32x128xf32, #tpu.memory_space<vmem>>, vector<32x128xf32>
    tpu.vector_store %arg6[%c0_12, %c0_13], %25 {strides = array<i32>} : memref<32x128xf32, #tpu.memory_space<vmem>>, vector<32x128xf32>,
    return
  }
  func.func @transform_0(%arg0: i32) -> (i32, i32) {
    %c0_i32 = arith.constant 0 : i32
    %c0_i32_0 = arith.constant 0 : i32
    return %arg0, %c0_i32 : i32, i32
  }
  func.func @transform_1(%arg0: i32) -> (i32, i32) {
    %c0_i32 = arith.constant 0 : i32
    %c0_i32_0 = arith.constant 0 : i32
    %c0_i32_1 = arith.constant 0 : i32
    return %c0_i32, %c0_i32_0 : i32, i32
  }
  func.func @transform_2(%arg0: i32) -> (i32, i32) {
    %c0_i32 = arith.constant 0 : i32
    %c0_i32_0 = arith.constant 0 : i32
    %c0_i32_1 = arith.constant 0 : i32
    return %c0_i32, %c0_i32_0 : i32, i32
  }
  func.func @transform_3(%arg0: i32) -> (i32, i32) {
    %c0_i32 = arith.constant 0 : i32
    %c0_i32_0 = arith.constant 0 : i32
    %c0_i32_1 = arith.constant 0 : i32
    return %c0_i32, %c0_i32_0 : i32, i32
  }
  func.func @transform_4(%arg0: i32) -> (i32, i32) {
    %c0_i32 = arith.constant 0 : i32
    %c0_i32_0 = arith.constant 0 : i32
    return %arg0, %c0_i32 : i32, i32
  }
  func.func @transform_5(%arg0: i32) -> (i32, i32) {
    %c0_i32 = arith.constant 0 : i32
    %c0_i32_0 = arith.constant 0 : i32
    return %arg0, %c0_i32 : i32, i32
  }
}

module attributes {stable_mosaic.version = 11 : i64} {
  func.func @_head_kernel(%arg0: memref<2x16x128xf32, #tpu.memory_space<vmem>>, %arg1: memref<128x10xf32, #tpu.memory_space<vmem>>, %arg2: memref<1x10xf32, #tpu.memory_space<vmem>>, %arg3: memref<2x10xf32, #tpu.memory_space<vmem>>) attributes {dimension_semantics = [], scalar_prefetch = 0 : i64, scratch_operands = 0 : i64, tpu.core_type = #tpu.core_type<tc>} {
    %c0 = arith.constant 0 : index
    %c0_0 = arith.constant 0 : index
    %c0_1 = arith.constant 0 : index
    %0 = vector.load %arg0[%c0, %c0_0, %c0_1] : memref<2x16x128xf32, #tpu.memory_space<vmem>>, vector<2x16x128xf32>
    %cst = arith.constant dense<0.000000e+00> : vector<2x128xf32>
    %1 = vector.multi_reduction <add>, %0, %cst [1] : vector<2x16x128xf32> to vector<2x128xf32>
    %cst_2 = arith.constant 1.600000e+01 : f32
    %2 = vector.broadcast %cst_2 : f32 to vector<2x128xf32>
    %3 = arith.divf %1, %2 : vector<2x128xf32>
    %c0_3 = arith.constant 0 : index
    %c0_4 = arith.constant 0 : index
    %4 = vector.load %arg1[%c0_3, %c0_4] : memref<128x10xf32, #tpu.memory_space<vmem>>, vector<128x10xf32>
    %cst_5 = arith.constant dense<0.000000e+00> : vector<2x10xf32>
    %5 = tpu.matmul %3, %4, %cst_5 {dimension_numbers = #tpu.dot_dimension_numbers<[1], [0], [0], [1], [0, 0, 1, 1], [], []>} : vector<2x128xf32>, vector<128x10xf32>, vector<2x10xf32> -> vector<2x10xf32>
    %c0_6 = arith.constant 0 : index
    %c0_7 = arith.constant 0 : index
    %6 = vector.load %arg2[%c0_6, %c0_7] : memref<1x10xf32, #tpu.memory_space<vmem>>, vector<1x10xf32>
    %7 = vector.broadcast %6 : vector<1x10xf32> to vector<2x10xf32>
    %8 = arith.addf %5, %7 : vector<2x10xf32>
    %c0_8 = arith.constant 0 : index
    %c0_9 = arith.constant 0 : index
    %9 = vector.load %arg3[%c0_8, %c0_9] : memref<2x10xf32, #tpu.memory_space<vmem>>, vector<2x10xf32>
    tpu.vector_store %arg3[%c0_8, %c0_9], %8 {strides = array<i32>} : memref<2x10xf32, #tpu.memory_space<vmem>>, vector<2x10xf32>,
    return
  }
}

</mosaic_0001>

<llo_original>
// kernel: resnet_forward.20
$region0: #{resnet_forward.20}
  #allocation0 [shape = 'u32[]', space=smem, size = 0x4, offset = 0x4, fixed_abs, tag = 'smem constant byte address 0x4 - core index']
  #allocation1 [shape = 'u32[144,128]{1,0:T(1,128)}', space=vmem, size = 0x12000, scoped, tag = 'internal scratch']
  %s0 = inlined_call_operand.vmem [shape: f32[16,2,8,64], index: 0, kind: input, shape index: {}]
  %s1 = inlined_call_operand.vmem [shape: f32[16,8,32], index: 1, kind: output, shape index: {}]
  %s2 = sld [smem:[#allocation0]]
  $region14: #{resnet_forward.20} parent=0
    _
  %s4 = ssub.s32 1, %s2
  %s5 = scalar_select 0, %s4, %s2
  // Predicated region
  $region2: #{resnet_forward.20} parent=0 // pred_check
    _
  $region3: #{resnet_forward.20} parent=0 // pred_check_branch
    %7 = sbr.rel (0) target = $region5
  $region4: #{resnet_forward.20} parent=0 // pred_region
    _
  $region5: #{resnet_forward.20} parent=0 // pred_fallthru
    _
  %v8 = vld [vmem:[%s0] sm:$0xff]
  %v9 = vld [vmem:[%s0 + $0x8] sm:$0xff]
  %v10 = vld [vmem:[%s0 + $0x10] sm:$0xff]
  %v11 = vld [vmem:[%s0 + $0x18] sm:$0xff]
  %v12 = vld [vmem:[%s0 + $0x20] sm:$0xff]
  %v13 = vld [vmem:[%s0 + $0x28] sm:$0xff]
  %v14 = vld [vmem:[%s0 + $0x30] sm:$0xff]
  %v15 = vld [vmem:[%s0 + $0x38] sm:$0xff]
  %v16 = vld [vmem:[%s0 + $0x40] sm:$0xff]
  %v17 = vld [vmem:[%s0 + $0x48] sm:$0xff]
  %v18 = vld [vmem:[%s0 + $0x50] sm:$0xff]
  %v19 = vld [vmem:[%s0 + $0x58] sm:$0xff]
  %v20 = vld [vmem:[%s0 + $0x60] sm:$0xff]
  %v21 = vld [vmem:[%s0 + $0x68] sm:$0xff]
  %v22 = vld [vmem:[%s0 + $0x70] sm:$0xff]
  %v23 = vld [vmem:[%s0 + $0x78] sm:$0xff]
  %v24 = vld [vmem:[%s0 + $0x80] sm:$0xff]
  %v25 = vld [vmem:[%s0 + $0x88] sm:$0xff]
  %v26 = vld [vmem:[%s0 + $0x90] sm:$0xff]
  %v27 = vld [vmem:[%s0 + $0x98] sm:$0xff]
  %v28 = vld [vmem:[%s0 + $0xa0] sm:$0xff]
  %v29 = vld [vmem:[%s0 + $0xa8] sm:$0xff]
  %v30 = vld [vmem:[%s0 + $0xb0] sm:$0xff]
  %v31 = vld [vmem:[%s0 + $0xb8] sm:$0xff]
  %v32 = vld [vmem:[%s0 + $0xc0] sm:$0xff]
  %v33 = vld [vmem:[%s0 + $0xc8] sm:$0xff]
  %v34 = vld [vmem:[%s0 + $0xd0] sm:$0xff]
  %v35 = vld [vmem:[%s0 + $0xd8] sm:$0xff]
  %v36 = vld [vmem:[%s0 + $0xe0] sm:$0xff]
  %v37 = vld [vmem:[%s0 + $0xe8] sm:$0xff]
  %v38 = vld [vmem:[%s0 + $0xf0] sm:$0xff]
  %v39 = vld [vmem:[%s0 + $0xf8] sm:$0xff]
  %vm40 = vcmask 523264
  %v41 = vsel %vm40, %v8, -inf
  %v42 = vsel %vm40, %v9, -inf
  %v43 = vmax.f32 %v41, %v42
  %v44 = vsel %vm40, %v10, -inf
  %v45 = vsel %vm40, %v11, -inf
  %v46 = vmax.f32 %v44, %v45
  %v47 = vsel %vm40, %v12, -inf
  %v48 = vsel %vm40, %v13, -inf
  %v49 = vmax.f32 %v47, %v48
  %v50 = vsel %vm40, %v14, -inf
  %v51 = vsel %vm40, %v15, -inf
  %v52 = vmax.f32 %v50, %v51
  %v53 = vsel %vm40, %v16, -inf
  %v54 = vsel %vm40, %v17, -inf
  %v55 = vmax.f32 %v53, %v54
  %v56 = vsel %vm40, %v18, -inf
  %v57 = vsel %vm40, %v19, -inf
  %v58 = vmax.f32 %v56, %v57
  %v59 = vsel %vm40, %v20, -inf
  %v60 = vsel %vm40, %v21, -inf
  %v61 = vmax.f32 %v59, %v60
  %v62 = vsel %vm40, %v22, -inf
  %v63 = vsel %vm40, %v23, -inf
  %v64 = vmax.f32 %v62, %v63
  %v65 = vsel %vm40, %v24, -inf
  %v66 = vsel %vm40, %v25, -inf
  %v67 = vmax.f32 %v65, %v66
  %v68 = vsel %vm40, %v26, -inf
  %v69 = vsel %vm40, %v27, -inf
  %v70 = vmax.f32 %v68, %v69
  %v71 = vsel %vm40, %v28, -inf
  %v72 = vsel %vm40, %v29, -inf
  %v73 = vmax.f32 %v71, %v72
  %v74 = vsel %vm40, %v30, -inf
  %v75 = vsel %vm40, %v31, -inf
  %v76 = vmax.f32 %v74, %v75
  %v77 = vsel %vm40, %v32, -inf
  %v78 = vsel %vm40, %v33, -inf
  %v79 = vmax.f32 %v77, %v78
  %v80 = vsel %vm40, %v34, -inf
  %v81 = vsel %vm40, %v35, -inf
  %v82 = vmax.f32 %v80, %v81
  %v83 = vsel %vm40, %v36, -inf
  %v84 = vsel %vm40, %v37, -inf
  %v85 = vmax.f32 %v83, %v84
  %v86 = vsel %vm40, %v38, -inf
  %v87 = vsel %vm40, %v39, -inf
  %v88 = vmax.f32 %v86, %v87
  %105 = vrot.lane.b32.xlu0 %v43, 96
  %v106 = vpop.permute.xlu0 %105
  %107 = vrot.lane.b32.xlu0 %v46, 96
  %v108 = vpop.permute.xlu0 %107
  %109 = vrot.lane.b32.xlu0 %v49, 96
  %v110 = vpop.permute.xlu0 %109
  %111 = vrot.lane.b32.xlu0 %v52, 96
  %v112 = vpop.permute.xlu0 %111
  %113 = vrot.lane.b32.xlu0 %v55, 96
  %v114 = vpop.permute.xlu0 %113
  %115 = vrot.lane.b32.xlu0 %v58, 96
  %v116 = vpop.permute.xlu0 %115
  %117 = vrot.lane.b32.xlu0 %v61, 96
  %v118 = vpop.permute.xlu0 %117
  %119 = vrot.lane.b32.xlu0 %v64, 96
  %v120 = vpop.permute.xlu0 %119
  %121 = vrot.lane.b32.xlu0 %v67, 96
  %v122 = vpop.permute.xlu0 %121
  %123 = vrot.lane.b32.xlu0 %v70, 96
  %v124 = vpop.permute.xlu0 %123
  %125 = vrot.lane.b32.xlu0 %v73, 96
  %v126 = vpop.permute.xlu0 %125
  %127 = vrot.lane.b32.xlu0 %v76, 96
  %v128 = vpop.permute.xlu0 %127
  %129 = vrot.lane.b32.xlu0 %v79, 96
  %v130 = vpop.permute.xlu0 %129
  %131 = vrot.lane.b32.xlu0 %v82, 96
  %v132 = vpop.permute.xlu0 %131
  %133 = vrot.lane.b32.xlu0 %v85, 96
  %v134 = vpop.permute.xlu0 %133
  %135 = vrot.lane.b32.xlu0 %v88, 96
  %v136 = vpop.permute.xlu0 %135
  %v153 = vmax.f32 %v43, %v106
  %v154 = vmax.f32 %v46, %v108
  %v155 = vmax.f32 %v49, %v110
  %v156 = vmax.f32 %v52, %v112
  %v157 = vmax.f32 %v55, %v114
  %v158 = vmax.f32 %v58, %v116
  %v159 = vmax.f32 %v61, %v118
  %v160 = vmax.f32 %v64, %v120
  %v161 = vmax.f32 %v67, %v122
  %v162 = vmax.f32 %v70, %v124
  %v163 = vmax.f32 %v73, %v126
  %v164 = vmax.f32 %v76, %v128
  %v165 = vmax.f32 %v79, %v130
  %v166 = vmax.f32 %v82, %v132
  %v167 = vmax.f32 %v85, %v134
  %v168 = vmax.f32 %v88, %v136
  %vm169 = vcmask 261120
  %170 = vst.msk [vmem:[%s1] sm:$0xff] %vm169, %v153
  %171 = vst.msk [vmem:[%s1 + $0x8] sm:$0xff] %vm169, %v154
  %172 = vst.msk [vmem:[%s1 + $0x10] sm:$0xff] %vm169, %v155
  %173 = vst.msk [vmem:[%s1 + $0x18] sm:$0xff] %vm169, %v156
  %174 = vst.msk [vmem:[%s1 + $0x20] sm:$0xff] %vm169, %v157
  %175 = vst.msk [vmem:[%s1 + $0x28] sm:$0xff] %vm169, %v158
  %176 = vst.msk [vmem:[%s1 + $0x30] sm:$0xff] %vm169, %v159
  %177 = vst.msk [vmem:[%s1 + $0x38] sm:$0xff] %vm169, %v160
  %178 = vst.msk [vmem:[%s1 + $0x40] sm:$0xff] %vm169, %v161
  %179 = vst.msk [vmem:[%s1 + $0x48] sm:$0xff] %vm169, %v162
  %180 = vst.msk [vmem:[%s1 + $0x50] sm:$0xff] %vm169, %v163
  %181 = vst.msk [vmem:[%s1 + $0x58] sm:$0xff] %vm169, %v164
  %182 = vst.msk [vmem:[%s1 + $0x60] sm:$0xff] %vm169, %v165
  %183 = vst.msk [vmem:[%s1 + $0x68] sm:$0xff] %vm169, %v166
  %184 = vst.msk [vmem:[%s1 + $0x70] sm:$0xff] %vm169, %v167
  %185 = vst.msk [vmem:[%s1 + $0x78] sm:$0xff] %vm169, %v168
  // Predicated region
  $region6: #{resnet_forward.20} parent=0 // pred_check
    _
  $region7: #{resnet_forward.20} parent=0 // pred_check_branch
    %187 = sbr.rel (0) target = $region9
  $region8: #{resnet_forward.20} parent=0 // pred_region
    _
  $region9: #{resnet_forward.20} parent=0 // pred_fallthru
    _
  // Predicated region
  $region10: #{resnet_forward.20} parent=0 // pred_check
    _
  $region11: #{resnet_forward.20} parent=0 // pred_check_branch
    %189 = sbr.rel (0) target = $region13
  $region12: #{resnet_forward.20} parent=0 // pred_region
    _
  $region13: #{resnet_forward.20} parent=0 // pred_fallthru
    _

// kernel: resnet_forward.18
$region0: #{resnet_forward.18}
  #allocation0 [shape = 'u32[]', space=smem, size = 0x4, offset = 0x4, fixed_abs, tag = 'smem constant byte address 0x4 - core index']
  #allocation1 [shape = 'u32[144,128]{1,0:T(1,128)}', space=vmem, size = 0x12000, scoped, tag = 'internal scratch']
  %s0 = inlined_call_operand.vmem [shape: bf16[512,9], index: 0, kind: input, shape index: {}]
  %s1 = inlined_call_operand.vmem [shape: bf16[9,32], index: 1, kind: input, shape index: {}]
  %s2 = inlined_call_operand.vmem [shape: f32[512,32], index: 2, kind: output, shape index: {0}]
  %s3 = inlined_call_operand.vmem [shape: f32[2,32], index: 3, kind: output, shape index: {1}]
  %4 = xla_tuple %s2, %s3
  %s5 = sld [smem:[#allocation0]]
  $region53: #{resnet_forward.18} parent=0
    _
  %s7 = ssub.s32 1, %s5
  %s8 = scalar_select 0, %s7, %s5
  loop: start=0, step=1, limit=4
  $region2: #{resnet_forward.18} parent=0 // loop_pre_header
    _
  $region3: #{resnet_forward.18} parent=0 // loop_header
    %s10 = sphi 0, %s14
    %p11 = scmp.ge.s32.totalorder %s10, 4
    %s20 = sphi 0, %s22
    %s23 = sphi 0, %s20
    %s24 = sphi 0, %s23
    %s40 = sphi 0, %s24
    %s44 = sphi 0, %s44
    %s46 = sphi 0, %s44
    %s47 = sphi 0, %s46
    %s61 = sphi 0, %s47
    %s67 = sphi 0, %s69
    %s70 = sphi 0, %s67
    %s71 = sphi 0, %s70
    %s87 = sphi 0, %s71
    %s91 = sphi 0, %s91
    %s93 = sphi 0, %s91
    %s94 = sphi 0, %s93
    %s108 = sphi 0, %s94
  $region4: #{resnet_forward.18} parent=0 // loop_header_branch
    %13 = sbr.rel (%p11) target = $region8
  $region5: #{resnet_forward.18} parent=0 // loop_body
    %s15 = ssub.s32 %s10, 1
    %s16 = ssub.s32 %s10, 2
    %s17 = sadd.s32 %s10, 1
    %s18 = ssub.s32 %s10, %s17
    %p19 = scmp.eq.s32.totalorder %s18, 0
    %s21 = sadd.s32 %s20, 1
    %s22 = scalar_select %p19, %s20, %s21
    %p25 = pneg %p19
    %p26 = scmp.eq.s32.totalorder %s10, 1
    %p27 = por %p25, %p26
    %p28 = scmp.ne.s32.totalorder %s20, %s23
    %p29 = scmp.eq.s32.totalorder %s10, 0
    %p30 = por %p28, %p29
    %p31 = scmp.ne.s32.totalorder %s20, %s23
    %p32 = scmp.eq.s32.totalorder %s15, 1
    %p33 = por %p31, %p32
    %p34 = scmp.ne.s32.totalorder %s23, %s24
    %p35 = scmp.eq.s32.totalorder %s15, 0
    %p36 = por %p34, %p35
    %p37 = scmp.ne.s32.totalorder %s23, %s24
    %p38 = scmp.eq.s32.totalorder %s16, 1
    %p39 = por %p37, %p38
    %p41 = scmp.ne.s32.totalorder %s24, %s40
    %p42 = scmp.eq.s32.totalorder %s16, 0
    %p43 = por %p41, %p42
    %s45 = sadd.s32 %s44, 1
    %p48 = scmp.eq.s32.totalorder %s10, 1
    %p49 = scmp.ne.s32.totalorder %s44, %s46
    %p50 = scmp.eq.s32.totalorder %s10, 0
    %p51 = por %p49, %p50
    %p52 = scmp.ne.s32.totalorder %s44, %s46
    %p53 = scmp.eq.s32.totalorder %s15, 1
    %p54 = por %p52, %p53
    %p55 = scmp.ne.s32.totalorder %s46, %s47
    %p56 = scmp.eq.s32.totalorder %s15, 0
    %p57 = por %p55, %p56
    %p58 = scmp.ne.s32.totalorder %s46, %s47
    %p59 = scmp.eq.s32.totalorder %s16, 1
    %p60 = por %p58, %p59
    %p62 = scmp.ne.s32.totalorder %s47, %s61
    %p63 = scmp.eq.s32.totalorder %s16, 0
    %p64 = por %p62, %p63
    %s65 = ssub.s32 %s10, %s17
    %p66 = scmp.eq.s32.totalorder %s65, 0
    %s68 = sadd.s32 %s67, 1
    %s69 = scalar_select %p66, %s67, %s68
    %p72 = pneg %p66
    %p73 = scmp.eq.s32.totalorder %s10, 1
    %p74 = por %p72, %p73
    %p75 = scmp.ne.s32.totalorder %s67, %s70
    %p76 = scmp.eq.s32.totalorder %s10, 0
    %p77 = por %p75, %p76
    %p78 = scmp.ne.s32.totalorder %s67, %s70
    %p79 = scmp.eq.s32.totalorder %s15, 1
    %p80 = por %p78, %p79
    %p81 = scmp.ne.s32.totalorder %s70, %s71
    %p82 = scmp.eq.s32.totalorder %s15, 0
    %p83 = por %p81, %p82
    %p84 = scmp.ne.s32.totalorder %s70, %s71
    %p85 = scmp.eq.s32.totalorder %s16, 1
    %p86 = por %p84, %p85
    %p88 = scmp.ne.s32.totalorder %s71, %s87
    %p89 = scmp.eq.s32.totalorder %s16, 0
    %p90 = por %p88, %p89
    %s92 = sadd.s32 %s91, 1
    %p95 = scmp.eq.s32.totalorder %s10, 1
    %p96 = scmp.ne.s32.totalorder %s91, %s93
    %p97 = scmp.eq.s32.totalorder %s10, 0
    %p98 = por %p96, %p97
    %p99 = scmp.ne.s32.totalorder %s91, %s93
    %p100 = scmp.eq.s32.totalorder %s15, 1
    %p101 = por %p99, %p100
    %p102 = scmp.ne.s32.totalorder %s93, %s94
    %p103 = scmp.eq.s32.totalorder %s15, 0
    %p104 = por %p102, %p103
    %p105 = scmp.ne.s32.totalorder %s93, %s94
    %p106 = scmp.eq.s32.totalorder %s16, 1
    %p107 = por %p105, %p106
    %p109 = scmp.ne.s32.totalorder %s94, %s108
    %p110 = scmp.eq.s32.totalorder %s16, 0
    %p111 = por %p109, %p110
    %p112 = scmp.le.s32.totalorder 1, %s10
    %p113 = scmp.lt.s32.totalorder %s10, 3
    %p114 = pnand %p112, %p113
    %p115 = pneg %p114
    // Predicated region
    $region9: #{resnet_forward.18} parent=5 // pred_check
      _
    $region10: #{resnet_forward.18} parent=5 // pred_check_branch
      %117 = sbr.rel (%p114) target = $region12
    $region11: #{resnet_forward.18} parent=5 // pred_region
      %s118 = ssub.s32 %s10, 1
      // Predicated region
      $region13: #{resnet_forward.18} parent=11 // pred_check
        %p119 = pneg %p57
      $region14: #{resnet_forward.18} parent=11 // pred_check_branch
        %121 = sbr.rel (%p119) target = $region16
      $region15: #{resnet_forward.18} parent=11 // pred_region
        _
      $region16: #{resnet_forward.18} parent=11 // pred_fallthru
        _
    $region12: #{resnet_forward.18} parent=5 // pred_fallthru
      _
    %p122 = scmp.lt.s32.totalorder %s10, 2
    // Predicated region
    $region17: #{resnet_forward.18} parent=5 // pred_check
      %p123 = pneg %p122
    $region18: #{resnet_forward.18} parent=5 // pred_check_branch
      %125 = sbr.rel (%p123) target = $region20
    $region19: #{resnet_forward.18} parent=5 // pred_region
      // Predicated region
      $region21: #{resnet_forward.18} parent=19 // pred_check
        %p126 = pneg %p30
      $region22: #{resnet_forward.18} parent=19 // pred_check_branch
        %128 = sbr.rel (%p126) target = $region24
      $region23: #{resnet_forward.18} parent=19 // pred_region
        %s129 = smul.u32 32, %s10
        %p130 = scmp.lt.s32.totalorder %s129, 63
        %s131 = scalar_select %p130, %s129, 63
        %s132 = smul.addr %s131, 4
        %s133 = scalar_lea.vmem %s0, %s132
        %s134 = smul.u32 32, %s10
      $region24: #{resnet_forward.18} parent=19 // pred_fallthru
        _
    $region20: #{resnet_forward.18} parent=5 // pred_fallthru
      _
    %p135 = scmp.le.s32.totalorder 1, %s10
    %p136 = scmp.lt.s32.totalorder %s10, 3
    %p137 = pnand %p135, %p136
    %p138 = pneg %p137
    // Predicated region
    $region25: #{resnet_forward.18} parent=5 // pred_check
      _
    $region26: #{resnet_forward.18} parent=5 // pred_check_branch
      %140 = sbr.rel (%p137) target = $region28
    $region27: #{resnet_forward.18} parent=5 // pred_region
      %s141 = ssub.s32 %s10, 1
      %s142 = smul.u32 32, %s15
      %p143 = scmp.lt.s32.totalorder %s142, 63
      %s144 = scalar_select %p143, %s142, 63
      %s145 = smul.addr %s144, 4
      %s146 = scalar_lea.vmem %s0, %s145
      %p147 = pneg %p36
      %p148 = pneg %p33
      %p149 = pneg %p57
      %p150 = pneg %p54
      %p151 = pneg %p83
      %p152 = pneg %p80
      %s153 = smul.u32 32, %s15
      %p154 = scmp.lt.s32.totalorder %s153, 63
      %s155 = scalar_select %p154, %s153, 63
      %s156 = smul.addr %s155, 8
      %s157 = scalar_lea.vmem %s2, %s156
      %p158 = pneg %p104
      %p159 = pneg %p101
      %s160 = smul.u32 32, %s15
      %p161 = scmp.lt.s32.totalorder %s160, 63
      %s162 = scalar_select %p161, %s160, 63
      %s163 = smul.addr %s162, 4
      %s164 = scalar_lea.vmem %s0, %s163
      %s165 = smul.u32 32, %s15
      %s166 = smul.u32 32, %s15
      %p167 = scmp.lt.s32.totalorder %s166, 63
      %s168 = scalar_select %p167, %s166, 63
      %s169 = smul.addr %s168, 8
      %s170 = scalar_lea.vmem %s2, %s169
      %s171 = smul.u32 32, %s15
      %v173 = vld [vmem:[%s164] sm:$0xf]
      %v174 = vld [vmem:[%s164 + $0x4] sm:$0xf]
      %v175 = vld [vmem:[%s164 + $0x8] sm:$0xf]
      %v176 = vld [vmem:[%s164 + $0xc] sm:$0xf]
      %v177 = vld [vmem:[%s164 + $0x10] sm:$0xf]
      %v178 = vld [vmem:[%s164 + $0x14] sm:$0xf]
      %v179 = vld [vmem:[%s164 + $0x18] sm:$0xf]
      %v180 = vld [vmem:[%s164 + $0x1c] sm:$0xf]
      %v181 = vld [vmem:[%s164 + $0x20] sm:$0xf]
      %v182 = vld [vmem:[%s164 + $0x24] sm:$0xf]
      %v183 = vld [vmem:[%s164 + $0x28] sm:$0xf]
      %v184 = vld [vmem:[%s164 + $0x2c] sm:$0xf]
      %v185 = vld [vmem:[%s164 + $0x30] sm:$0xf]
      %v186 = vld [vmem:[%s164 + $0x34] sm:$0xf]
      %v187 = vld [vmem:[%s164 + $0x38] sm:$0xf]
      %v188 = vld [vmem:[%s164 + $0x3c] sm:$0xf]
      %v189 = vld [vmem:[%s164 + $0x40] sm:$0xf]
      %v190 = vld [vmem:[%s164 + $0x44] sm:$0xf]
      %v191 = vld [vmem:[%s164 + $0x48] sm:$0xf]
      %v192 = vld [vmem:[%s164 + $0x4c] sm:$0xf]
      %v193 = vld [vmem:[%s164 + $0x50] sm:$0xf]
      %v194 = vld [vmem:[%s164 + $0x54] sm:$0xf]
      %v195 = vld [vmem:[%s164 + $0x58] sm:$0xf]
      %v196 = vld [vmem:[%s164 + $0x5c] sm:$0xf]
      %v197 = vld [vmem:[%s164 + $0x60] sm:$0xf]
      %v198 = vld [vmem:[%s164 + $0x64] sm:$0xf]
      %v199 = vld [vmem:[%s164 + $0x68] sm:$0xf]
      %v200 = vld [vmem:[%s164 + $0x6c] sm:$0xf]
      %v201 = vld [vmem:[%s164 + $0x70] sm:$0xf]
      %v202 = vld [vmem:[%s164 + $0x74] sm:$0xf]
      %v203 = vld [vmem:[%s164 + $0x78] sm:$0xf]
      %v204 = vld [vmem:[%s164 + $0x7c] sm:$0xf]
      %v205 = vld [vmem:[%s1] sm:$0xf]
      %v206 = vld [vmem:[%s1 + $0x4] sm:$0x1]
      %v239 = vunpack.c.l.b16 %v173
      %v240 = vunpack.c.l.b16 %v174
      %v241 = vunpack.c.l.b16 %v175
      %v242 = vunpack.c.l.b16 %v176
      %v243 = vunpack.c.l.b16 %v177
      %v244 = vunpack.c.l.b16 %v178
      %v245 = vunpack.c.l.b16 %v179
      %v246 = vunpack.c.l.b16 %v180
      %v247 = vunpack.c.l.b16 %v181
      %v248 = vunpack.c.l.b16 %v182
      %v249 = vunpack.c.l.b16 %v183
      %v250 = vunpack.c.l.b16 %v184
      %v251 = vunpack.c.l.b16 %v185
      %v252 = vunpack.c.l.b16 %v186
      %v253 = vunpack.c.l.b16 %v187
      %v254 = vunpack.c.l.b16 %v188
      %v255 = vunpack.c.l.b16 %v189
      %v256 = vunpack.c.l.b16 %v190
      %v257 = vunpack.c.l.b16 %v191
      %v258 = vunpack.c.l.b16 %v192
      %v259 = vunpack.c.l.b16 %v193
      %v260 = vunpack.c.l.b16 %v194
      %v261 = vunpack.c.l.b16 %v195
      %v262 = vunpack.c.l.b16 %v196
      %v263 = vunpack.c.l.b16 %v197
      %v264 = vunpack.c.l.b16 %v198
      %v265 = vunpack.c.l.b16 %v199
      %v266 = vunpack.c.l.b16 %v200
      %v267 = vunpack.c.l.b16 %v201
      %v268 = vunpack.c.l.b16 %v202
      %v269 = vunpack.c.l.b16 %v203
      %v270 = vunpack.c.l.b16 %v204
      %v271 = vpack.c.b16 %v240, %v239
      %v272 = vpack.c.b16 %v242, %v241
      %v273 = vpack.c.b16 %v244, %v243
      %v274 = vpack.c.b16 %v246, %v245
      %v275 = vpack.c.b16 %v248, %v247
      %v276 = vpack.c.b16 %v250, %v249
      %v277 = vpack.c.b16 %v252, %v251
      %v278 = vpack.c.b16 %v254, %v253
      %v279 = vpack.c.b16 %v256, %v255
      %v280 = vpack.c.b16 %v258, %v257
      %v281 = vpack.c.b16 %v260, %v259
      %v282 = vpack.c.b16 %v262, %v261
      %v283 = vpack.c.b16 %v264, %v263
      %v284 = vpack.c.b16 %v266, %v265
      %v285 = vpack.c.b16 %v268, %v267
      %v286 = vpack.c.b16 %v270, %v269
      %v289 = vunpack.c.l.b16 %v205
      %v290 = vunpack.c.l.b16 %v206
      %v291 = vpack.c.b16 %v290, %v289
      %vm292 = vcmask 72704
      %v294 = vsel %vm292, %v271, 0
      %v297 = vsel %vm292, %v272, 0
      %v300 = vsel %vm292, %v273, 0
      %v303 = vsel %vm292, %v274, 0
      %v306 = vsel %vm292, %v275, 0
      %v309 = vsel %vm292, %v276, 0
      %v312 = vsel %vm292, %v277, 0
      %v315 = vsel %vm292, %v278, 0
      %v318 = vsel %vm292, %v279, 0
      %v321 = vsel %vm292, %v280, 0
      %v324 = vsel %vm292, %v281, 0
      %v327 = vsel %vm292, %v282, 0
      %v330 = vsel %vm292, %v283, 0
      %v333 = vsel %vm292, %v284, 0
      %v336 = vsel %vm292, %v285, 0
      %v339 = vsel %vm292, %v286, 0
      %vm341 = vcmask 1043456
      %vm342 = vcmask 1044480
      %v343 = vsel %vm341, 4294967295, 65535
      %v344 = vsel %vm342, %v343, 0
      %v346 = vand.u32 %v291, %v344
      %348 = vmatprep.subr.bf16.mxu0 0
      %349 = vmatpush1.bf16.msra.mxu0 0
      %350 = vmatprep.subr.bf16.mxu0 0
      %351 = vmatpush1.bf16.msra.mxu0 0
      %352 = vmatprep.subr.bf16.mxu0 0
      %353 = vmatpush1.bf16.msra.mxu0 0
      %354 = vmatprep.subr.bf16.mxu0 0
      %355 = vmatpush1.bf16.msra.mxu0 0
      %356 = vmatprep.subr.bf16.mxu0 0
      %357 = vmatpush1.bf16.msra.mxu0 0
      %358 = vmatprep.subr.bf16.mxu0 0
      %359 = vmatpush1.bf16.msra.mxu0 0
      %360 = vmatprep.subr.bf16.mxu0 0
      %361 = vmatpush1.bf16.msra.mxu0 0
      %362 = vmatprep.subr.bf16.mxu0 0
      %363 = vmatpush1.bf16.msra.mxu0 %v346
      %364 = vmatprep.subr.bf16.mxu0 0
      %365 = vmatpush2.bf16.msra.mxu0 0
      %366 = vmatprep.subr.bf16.mxu0 0
      %367 = vmatpush2.bf16.msra.mxu0 0
      %368 = vmatprep.subr.bf16.mxu0 0
      %369 = vmatpush2.bf16.msra.mxu0 0
      %370 = vmatprep.subr.bf16.mxu0 0
      %371 = vmatpush2.bf16.msra.mxu0 0
      %372 = vmatprep.subr.bf16.mxu0 0
      %373 = vmatpush2.bf16.msra.mxu0 0
      %374 = vmatprep.subr.bf16.mxu0 0
      %375 = vmatpush2.bf16.msra.mxu0 0
      %376 = vmatprep.subr.bf16.mxu0 0
      %377 = vmatpush2.bf16.msra.mxu0 0
      %378 = vmatprep.subr.bf16.mxu0 0
      %379 = vmatpush2.bf16.msra.mxu0 0
      %380 = vmatprep.mubr.bf16.mxu0 0
      %381 = vmatmul.mubr.bf16.gmra.mxu0 %v294
      %v382 = vpop.f32.mrf.mxu0
      %v383 = vadd.f32 0.0, %v382
      %v384 = vpop.f32.mrf.mxu0
      %v385 = vpop.f32.mrf.mxu0
      %v386 = vadd.f32 0.0, %v385
      %v387 = vpop.f32.mrf.mxu0
      %388 = vmatprep.mubr.bf16.mxu0 0
      %389 = vmatmul.mubr.bf16.gmra.mxu0 %v297
      %v390 = vpop.f32.mrf.mxu0
      %v391 = vadd.f32 0.0, %v390
      %v392 = vpop.f32.mrf.mxu0
      %v393 = vpop.f32.mrf.mxu0
      %v394 = vadd.f32 0.0, %v393
      %v395 = vpop.f32.mrf.mxu0
      %396 = vmatprep.mubr.bf16.mxu0 0
      %397 = vmatmul.mubr.bf16.gmra.mxu0 %v300
      %v398 = vpop.f32.mrf.mxu0
      %v399 = vadd.f32 0.0, %v398
      %v400 = vpop.f32.mrf.mxu0
      %v401 = vpop.f32.mrf.mxu0
      %v402 = vadd.f32 0.0, %v401
      %v403 = vpop.f32.mrf.mxu0
      %404 = vmatprep.mubr.bf16.mxu0 0
      %405 = vmatmul.mubr.bf16.gmra.mxu0 %v303
      %v406 = vpop.f32.mrf.mxu0
      %v407 = vadd.f32 0.0, %v406
      %v408 = vpop.f32.mrf.mxu0
      %v409 = vpop.f32.mrf.mxu0
      %v410 = vadd.f32 0.0, %v409
      %v411 = vpop.f32.mrf.mxu0
      %412 = vmatprep.mubr.bf16.mxu0 0
      %413 = vmatmul.mubr.bf16.gmra.mxu0 %v306
      %v414 = vpop.f32.mrf.mxu0
      %v415 = vadd.f32 0.0, %v414
      %v416 = vpop.f32.mrf.mxu0
      %v417 = vpop.f32.mrf.mxu0
      %v418 = vadd.f32 0.0, %v417
      %v419 = vpop.f32.mrf.mxu0
      %420 = vmatprep.mubr.bf16.mxu0 0
      %421 = vmatmul.mubr.bf16.gmra.mxu0 %v309
      %v422 = vpop.f32.mrf.mxu0
      %v423 = vadd.f32 0.0, %v422
      %v424 = vpop.f32.mrf.mxu0
      %v425 = vpop.f32.mrf.mxu0
      %v426 = vadd.f32 0.0, %v425
      %v427 = vpop.f32.mrf.mxu0
      %428 = vmatprep.mubr.bf16.mxu0 0
      %429 = vmatmul.mubr.bf16.gmra.mxu0 %v312
      %v430 = vpop.f32.mrf.mxu0
      %v431 = vadd.f32 0.0, %v430
      %v432 = vpop.f32.mrf.mxu0
      %v433 = vpop.f32.mrf.mxu0
      %v434 = vadd.f32 0.0, %v433
      %v435 = vpop.f32.mrf.mxu0
      %436 = vmatprep.mubr.bf16.mxu0 0
      %437 = vmatmul.mubr.bf16.gmra.mxu0 %v315
      %v438 = vpop.f32.mrf.mxu0
      %v439 = vadd.f32 0.0, %v438
      %v440 = vpop.f32.mrf.mxu0
      %v441 = vpop.f32.mrf.mxu0
      %v442 = vadd.f32 0.0, %v441
      %v443 = vpop.f32.mrf.mxu0
      %444 = vmatprep.mubr.bf16.mxu0 0
      %445 = vmatmul.mubr.bf16.gmra.mxu0 %v318
      %v446 = vpop.f32.mrf.mxu0
      %v447 = vadd.f32 0.0, %v446
      %v448 = vpop.f32.mrf.mxu0
      %v449 = vpop.f32.mrf.mxu0
      %v450 = vadd.f32 0.0, %v449
      %v451 = vpop.f32.mrf.mxu0
      %452 = vmatprep.mubr.bf16.mxu0 0
      %453 = vmatmul.mubr.bf16.gmra.mxu0 %v321
      %v454 = vpop.f32.mrf.mxu0
      %v455 = vadd.f32 0.0, %v454
      %v456 = vpop.f32.mrf.mxu0
      %v457 = vpop.f32.mrf.mxu0
      %v458 = vadd.f32 0.0, %v457
      %v459 = vpop.f32.mrf.mxu0
      %460 = vmatprep.mubr.bf16.mxu0 0
      %461 = vmatmul.mubr.bf16.gmra.mxu0 %v324
      %v462 = vpop.f32.mrf.mxu0
      %v463 = vadd.f32 0.0, %v462
      %v464 = vpop.f32.mrf.mxu0
      %v465 = vpop.f32.mrf.mxu0
      %v466 = vadd.f32 0.0, %v465
      %v467 = vpop.f32.mrf.mxu0
      %468 = vmatprep.mubr.bf16.mxu0 0
      %469 = vmatmul.mubr.bf16.gmra.mxu0 %v327
      %v470 = vpop.f32.mrf.mxu0
      %v471 = vadd.f32 0.0, %v470
      %v472 = vpop.f32.mrf.mxu0
      %v473 = vpop.f32.mrf.mxu0
      %v474 = vadd.f32 0.0, %v473
      %v475 = vpop.f32.mrf.mxu0
      %476 = vmatprep.mubr.bf16.mxu0 0
      %477 = vmatmul.mubr.bf16.gmra.mxu0 %v330
      %v478 = vpop.f32.mrf.mxu0
      %v479 = vadd.f32 0.0, %v478
      %v480 = vpop.f32.mrf.mxu0
      %v481 = vpop.f32.mrf.mxu0
      %v482 = vadd.f32 0.0, %v481
      %v483 = vpop.f32.mrf.mxu0
      %484 = vmatprep.mubr.bf16.mxu0 0
      %485 = vmatmul.mubr.bf16.gmra.mxu0 %v333
      %v486 = vpop.f32.mrf.mxu0
      %v487 = vadd.f32 0.0, %v486
      %v488 = vpop.f32.mrf.mxu0
      %v489 = vpop.f32.mrf.mxu0
      %v490 = vadd.f32 0.0, %v489
      %v491 = vpop.f32.mrf.mxu0
      %492 = vmatprep.mubr.bf16.mxu0 0
      %493 = vmatmul.mubr.bf16.gmra.mxu0 %v336
      %v494 = vpop.f32.mrf.mxu0
      %v495 = vadd.f32 0.0, %v494
      %v496 = vpop.f32.mrf.mxu0
      %v497 = vpop.f32.mrf.mxu0
      %v498 = vadd.f32 0.0, %v497
      %v499 = vpop.f32.mrf.mxu0
      %500 = vmatprep.mubr.bf16.mxu0 0
      %501 = vmatmul.mubr.bf16.gmra.mxu0 %v339
      %v502 = vpop.f32.mrf.mxu0
      %v503 = vadd.f32 0.0, %v502
      %v504 = vpop.f32.mrf.mxu0
      %v505 = vpop.f32.mrf.mxu0
      %v506 = vadd.f32 0.0, %v505
      %v507 = vpop.f32.mrf.mxu0
      %508 = vdwg.mxu0
      %vm509 = vcmask 261120
      %510 = vst.msk [vmem:[%s170] sm:$0xff] %vm509, %v383
      %511 = vst.msk [vmem:[%s170 + $0x8] sm:$0xff] %vm509, %v386
      %512 = vst.msk [vmem:[%s170 + $0x10] sm:$0xff] %vm509, %v391
      %513 = vst.msk [vmem:[%s170 + $0x18] sm:$0xff] %vm509, %v394
      %514 = vst.msk [vmem:[%s170 + $0x20] sm:$0xff] %vm509, %v399
      %515 = vst.msk [vmem:[%s170 + $0x28] sm:$0xff] %vm509, %v402
      %516 = vst.msk [vmem:[%s170 + $0x30] sm:$0xff] %vm509, %v407
      %517 = vst.msk [vmem:[%s170 + $0x38] sm:$0xff] %vm509, %v410
      %518 = vst.msk [vmem:[%s170 + $0x40] sm:$0xff] %vm509, %v415
      %519 = vst.msk [vmem:[%s170 + $0x48] sm:$0xff] %vm509, %v418
      %520 = vst.msk [vmem:[%s170 + $0x50] sm:$0xff] %vm509, %v423
      %521 = vst.msk [vmem:[%s170 + $0x58] sm:$0xff] %vm509, %v426
      %522 = vst.msk [vmem:[%s170 + $0x60] sm:$0xff] %vm509, %v431
      %523 = vst.msk [vmem:[%s170 + $0x68] sm:$0xff] %vm509, %v434
      %524 = vst.msk [vmem:[%s170 + $0x70] sm:$0xff] %vm509, %v439
      %525 = vst.msk [vmem:[%s170 + $0x78] sm:$0xff] %vm509, %v442
      %526 = vst.msk [vmem:[%s170 + $0x80] sm:$0xff] %vm509, %v447
      %527 = vst.msk [vmem:[%s170 + $0x88] sm:$0xff] %vm509, %v450
      %528 = vst.msk [vmem:[%s170 + $0x90] sm:$0xff] %vm509, %v455
      %529 = vst.msk [vmem:[%s170 + $0x98] sm:$0xff] %vm509, %v458
      %530 = vst.msk [vmem:[%s170 + $0xa0] sm:$0xff] %vm509, %v463
      %531 = vst.msk [vmem:[%s170 + $0xa8] sm:$0xff] %vm509, %v466
      %532 = vst.msk [vmem:[%s170 + $0xb0] sm:$0xff] %vm509, %v471
      %533 = vst.msk [vmem:[%s170 + $0xb8] sm:$0xff] %vm509, %v474
      %534 = vst.msk [vmem:[%s170 + $0xc0] sm:$0xff] %vm509, %v479
      %535 = vst.msk [vmem:[%s170 + $0xc8] sm:$0xff] %vm509, %v482
      %536 = vst.msk [vmem:[%s170 + $0xd0] sm:$0xff] %vm509, %v487
      %537 = vst.msk [vmem:[%s170 + $0xd8] sm:$0xff] %vm509, %v490
      %538 = vst.msk [vmem:[%s170 + $0xe0] sm:$0xff] %vm509, %v495
      %539 = vst.msk [vmem:[%s170 + $0xe8] sm:$0xff] %vm509, %v498
      %540 = vst.msk [vmem:[%s170 + $0xf0] sm:$0xff] %vm509, %v503
      %541 = vst.msk [vmem:[%s170 + $0xf8] sm:$0xff] %vm509, %v506
      %v542 = vsel %vm509, %v383, 0.0
      %v543 = vsel %vm509, %v386, 0.0
      %v544 = vadd.f32 %v542, %v543
      %v545 = vsel %vm509, %v391, 0.0
      %v546 = vadd.f32 %v544, %v545
      %v547 = vsel %vm509, %v394, 0.0
      %v548 = vadd.f32 %v546, %v547
      %v549 = vsel %vm509, %v399, 0.0
      %v550 = vadd.f32 %v548, %v549
      %v551 = vsel %vm509, %v402, 0.0
      %v552 = vadd.f32 %v550, %v551
      %v553 = vsel %vm509, %v407, 0.0
      %v554 = vadd.f32 %v552, %v553
      %v555 = vsel %vm509, %v410, 0.0
      %v556 = vadd.f32 %v554, %v555
      %v557 = vsel %vm509, %v415, 0.0
      %v558 = vadd.f32 %v556, %v557
      %v559 = vsel %vm509, %v418, 0.0
      %v560 = vadd.f32 %v558, %v559
      %v561 = vsel %vm509, %v423, 0.0
      %v562 = vadd.f32 %v560, %v561
      %v563 = vsel %vm509, %v426, 0.0
      %v564 = vadd.f32 %v562, %v563
      %v565 = vsel %vm509, %v431, 0.0
      %v566 = vadd.f32 %v564, %v565
      %v567 = vsel %vm509, %v434, 0.0
      %v568 = vadd.f32 %v566, %v567
      %v569 = vsel %vm509, %v439, 0.0
      %v570 = vadd.f32 %v568, %v569
      %v571 = vsel %vm509, %v442, 0.0
      %v572 = vadd.f32 %v570, %v571
      %v573 = vsel %vm509, %v447, 0.0
      %v574 = vadd.f32 %v572, %v573
      %v575 = vsel %vm509, %v450, 0.0
      %v576 = vadd.f32 %v574, %v575
      %v577 = vsel %vm509, %v455, 0.0
      %v578 = vadd.f32 %v576, %v577
      %v579 = vsel %vm509, %v458, 0.0
      %v580 = vadd.f32 %v578, %v579
      %v581 = vsel %vm509, %v463, 0.0
      %v582 = vadd.f32 %v580, %v581
      %v583 = vsel %vm509, %v466, 0.0
      %v584 = vadd.f32 %v582, %v583
      %v585 = vsel %vm509, %v471, 0.0
      %v586 = vadd.f32 %v584, %v585
      %v587 = vsel %vm509, %v474, 0.0
      %v588 = vadd.f32 %v586, %v587
      %v589 = vsel %vm509, %v479, 0.0
      %v590 = vadd.f32 %v588, %v589
      %v591 = vsel %vm509, %v482, 0.0
      %v592 = vadd.f32 %v590, %v591
      %v593 = vsel %vm509, %v487, 0.0
      %v594 = vadd.f32 %v592, %v593
      %v595 = vsel %vm509, %v490, 0.0
      %v596 = vadd.f32 %v594, %v595
      %v597 = vsel %vm509, %v495, 0.0
      %v598 = vadd.f32 %v596, %v597
      %v599 = vsel %vm509, %v498, 0.0
      %v600 = vadd.f32 %v598, %v599
      %v601 = vsel %vm509, %v503, 0.0
      %v602 = vadd.f32 %v600, %v601
      %v603 = vsel %vm509, %v506, 0.0
      %v604 = vadd.f32 %v602, %v603
      %v605 = vrot.slane %v604, 4
      %v606 = vadd.f32 %v604, %v605
      %v607 = vrot.slane %v606, 2
      %v608 = vadd.f32 %v606, %v607
      %v609 = vrot.slane %v608, 1
      %v610 = vadd.f32 %v608, %v609
      %v611 = vmul.f32 %v383, %v383
      %v612 = vmul.f32 %v386, %v386
      %v613 = vmul.f32 %v391, %v391
      %v614 = vmul.f32 %v394, %v394
      %v615 = vmul.f32 %v399, %v399
      %v616 = vmul.f32 %v402, %v402
      %v617 = vmul.f32 %v407, %v407
      %v618 = vmul.f32 %v410, %v410
      %v619 = vmul.f32 %v415, %v415
      %v620 = vmul.f32 %v418, %v418
      %v621 = vmul.f32 %v423, %v423
      %v622 = vmul.f32 %v426, %v426
      %v623 = vmul.f32 %v431, %v431
      %v624 = vmul.f32 %v434, %v434
      %v625 = vmul.f32 %v439, %v439
      %v626 = vmul.f32 %v442, %v442
      %v627 = vmul.f32 %v447, %v447
      %v628 = vmul.f32 %v450, %v450
      %v629 = vmul.f32 %v455, %v455
      %v630 = vmul.f32 %v458, %v458
      %v631 = vmul.f32 %v463, %v463
      %v632 = vmul.f32 %v466, %v466
      %v633 = vmul.f32 %v471, %v471
      %v634 = vmul.f32 %v474, %v474
      %v635 = vmul.f32 %v479, %v479
      %v636 = vmul.f32 %v482, %v482
      %v637 = vmul.f32 %v487, %v487
      %v638 = vmul.f32 %v490, %v490
      %v639 = vmul.f32 %v495, %v495
      %v640 = vmul.f32 %v498, %v498
      %v641 = vmul.f32 %v503, %v503
      %v642 = vmul.f32 %v506, %v506
      %v643 = vsel %vm509, %v611, 0.0
      %v644 = vsel %vm509, %v612, 0.0
      %v645 = vadd.f32 %v643, %v644
      %v646 = vsel %vm509, %v613, 0.0
      %v647 = vadd.f32 %v645, %v646
      %v648 = vsel %vm509, %v614, 0.0
      %v649 = vadd.f32 %v647, %v648
      %v650 = vsel %vm509, %v615, 0.0
      %v651 = vadd.f32 %v649, %v650
      %v652 = vsel %vm509, %v616, 0.0
      %v653 = vadd.f32 %v651, %v652
      %v654 = vsel %vm509, %v617, 0.0
      %v655 = vadd.f32 %v653, %v654
      %v656 = vsel %vm509, %v618, 0.0
      %v657 = vadd.f32 %v655, %v656
      %v658 = vsel %vm509, %v619, 0.0
      %v659 = vadd.f32 %v657, %v658
      %v660 = vsel %vm509, %v620, 0.0
      %v661 = vadd.f32 %v659, %v660
      %v662 = vsel %vm509, %v621, 0.0
      %v663 = vadd.f32 %v661, %v662
      %v664 = vsel %vm509, %v622, 0.0
      %v665 = vadd.f32 %v663, %v664
      %v666 = vsel %vm509, %v623, 0.0
      %v667 = vadd.f32 %v665, %v666
      %v668 = vsel %vm509, %v624, 0.0
      %v669 = vadd.f32 %v667, %v668
      %v670 = vsel %vm509, %v625, 0.0
      %v671 = vadd.f32 %v669, %v670
      %v672 = vsel %vm509, %v626, 0.0
      %v673 = vadd.f32 %v671, %v672
      %v674 = vsel %vm509, %v627, 0.0
      %v675 = vadd.f32 %v673, %v674
      %v676 = vsel %vm509, %v628, 0.0
      %v677 = vadd.f32 %v675, %v676
      %v678 = vsel %vm509, %v629, 0.0
      %v679 = vadd.f32 %v677, %v678
      %v680 = vsel %vm509, %v630, 0.0
      %v681 = vadd.f32 %v679, %v680
      %v682 = vsel %vm509, %v631, 0.0
      %v683 = vadd.f32 %v681, %v682
      %v684 = vsel %vm509, %v632, 0.0
      %v685 = vadd.f32 %v683, %v684
      %v686 = vsel %vm509, %v633, 0.0
      %v687 = vadd.f32 %v685, %v686
      %v688 = vsel %vm509, %v634, 0.0
      %v689 = vadd.f32 %v687, %v688
      %v690 = vsel %vm509, %v635, 0.0
      %v691 = vadd.f32 %v689, %v690
      %v692 = vsel %vm509, %v636, 0.0
      %v693 = vadd.f32 %v691, %v692
      %v694 = vsel %vm509, %v637, 0.0
      %v695 = vadd.f32 %v693, %v694
      %v696 = vsel %vm509, %v638, 0.0
      %v697 = vadd.f32 %v695, %v696
      %v698 = vsel %vm509, %v639, 0.0
      %v699 = vadd.f32 %v697, %v698
      %v700 = vsel %vm509, %v640, 0.0
      %v701 = vadd.f32 %v699, %v700
      %v702 = vsel %vm509, %v641, 0.0
      %v703 = vadd.f32 %v701, %v702
      %v704 = vsel %vm509, %v642, 0.0
      %v705 = vadd.f32 %v703, %v704
      %v706 = vrot.slane %v705, 4
      %v707 = vadd.f32 %v705, %v706
      %v708 = vrot.slane %v707, 2
      %v709 = vadd.f32 %v707, %v708
      %v710 = vrot.slane %v709, 1
      %v711 = vadd.f32 %v709, %v710
      %p712 = scmp.eq.s32.totalorder %s15, 0
      // Predicated region
      $region29: #{resnet_forward.18} parent=27 // pred_check
        %p713 = pneg %p712
      $region30: #{resnet_forward.18} parent=27 // pred_check_branch
        %715 = sbr.rel (%p713) target = $region32
      $region31: #{resnet_forward.18} parent=27 // pred_region
        %vm716 = vcmask 254976
        %717 = vst.msk [vmem:[%s3] sm:$0x3] %vm716, 0.0
      $region32: #{resnet_forward.18} parent=27 // pred_fallthru
        _
      %v718 = vld [vmem:[%s3] sm:$0x3]
      %vm719 = vcmask 1040384
      %v720 = vsel %vm719, %v610, %v711
      %v721 = vadd.f32 %v718, %v720
      %vm722 = vcmask 254976
      %723 = vst.msk [vmem:[%s3] sm:$0x3] %vm722, %v721
      %s724 = smul.u32 32, %s15
      %p725 = scmp.lt.s32.totalorder %s724, 63
      %s726 = scalar_select %p725, %s724, 63
      %s727 = smul.addr %s726, 8
      %s728 = scalar_lea.vmem %s2, %s727
      // Predicated region
      $region33: #{resnet_forward.18} parent=27 // pred_check
        %p729 = pneg %p80
      $region34: #{resnet_forward.18} parent=27 // pred_check_branch
        %731 = sbr.rel (%p729) target = $region36
      $region35: #{resnet_forward.18} parent=27 // pred_region
        %s732 = smul.u32 32, %s15
      $region36: #{resnet_forward.18} parent=27 // pred_fallthru
        _
      // Predicated region
      $region37: #{resnet_forward.18} parent=27 // pred_check
        %p733 = pneg %p101
      $region38: #{resnet_forward.18} parent=27 // pred_check_branch
        %735 = sbr.rel (%p733) target = $region40
      $region39: #{resnet_forward.18} parent=27 // pred_region
        _
      $region40: #{resnet_forward.18} parent=27 // pred_fallthru
        _
      // Predicated region
      $region41: #{resnet_forward.18} parent=27 // pred_check
        %p736 = pneg %p101
      $region42: #{resnet_forward.18} parent=27 // pred_check_branch
        %738 = sbr.rel (%p736) target = $region44
      $region43: #{resnet_forward.18} parent=27 // pred_region
        _
      $region44: #{resnet_forward.18} parent=27 // pred_fallthru
        _
    $region28: #{resnet_forward.18} parent=5 // pred_fallthru
      _
    %p739 = scmp.le.s32.totalorder 2, %s10
    // Predicated region
    $region45: #{resnet_forward.18} parent=5 // pred_check
      %p740 = pneg %p739
    $region46: #{resnet_forward.18} parent=5 // pred_check_branch
      %742 = sbr.rel (%p740) target = $region48
    $region47: #{resnet_forward.18} parent=5 // pred_region
      %s743 = ssub.s32 %s10, 2
      // Predicated region
      $region49: #{resnet_forward.18} parent=47 // pred_check
        %p744 = pneg %p86
      $region50: #{resnet_forward.18} parent=47 // pred_check_branch
        %746 = sbr.rel (%p744) target = $region52
      $region51: #{resnet_forward.18} parent=47 // pred_region
        %s747 = smul.u32 32, %s16
        %p748 = scmp.lt.s32.totalorder %s747, 63
        %s749 = scalar_select %p748, %s747, 63
        %s750 = smul.addr %s749, 8
        %s751 = scalar_lea.vmem %s2, %s750
      $region52: #{resnet_forward.18} parent=47 // pred_fallthru
        _
    $region48: #{resnet_forward.18} parent=5 // pred_fallthru
      _
  $region6: #{resnet_forward.18} parent=0 // loop_footer
    %s14 = sadd.s32 1, %s10
  $region7: #{resnet_forward.18} parent=0 // loop_footer_branch
    %9 = sbr.rel target = $region3
  $region8: #{resnet_forward.18} parent=0 // loop_exit
    _

// kernel: resnet_forward.19
$region0: #{resnet_forward.19}
  #allocation0 [shape = 'u32[]', space=smem, size = 0x4, offset = 0x4, fixed_abs, tag = 'smem constant byte address 0x4 - core index']
  #allocation1 [shape = 'u32[144,128]{1,0:T(1,128)}', space=vmem, size = 0x12000, scoped, tag = 'internal scratch']
  %s0 = inlined_call_operand.vmem [shape: f32[512,32], index: 0, kind: input, shape index: {}]
  %s1 = inlined_call_operand.vmem [shape: f32[2,32], index: 1, kind: input, shape index: {}]
  %s2 = inlined_call_operand.vmem [shape: f32[1,32], index: 2, kind: input, shape index: {}]
  %s3 = inlined_call_operand.vmem [shape: f32[1,32], index: 3, kind: input, shape index: {}]
  %s4 = inlined_call_operand.vmem [shape: f32[512,32], index: 4, kind: output, shape index: {}]
  %s5 = sld [smem:[#allocation0]]
  $region49: #{resnet_forward.19} parent=0
    _
  %s7 = ssub.s32 1, %s5
  %s8 = scalar_select 0, %s7, %s5
  loop: start=0, step=1, limit=4
  $region2: #{resnet_forward.19} parent=0 // loop_pre_header
    _
  $region3: #{resnet_forward.19} parent=0 // loop_header
    %s10 = sphi 0, %s14
    %p11 = scmp.ge.s32.totalorder %s10, 4
    %s20 = sphi 0, %s22
    %s23 = sphi 0, %s20
    %s24 = sphi 0, %s23
    %s40 = sphi 0, %s24
    %s44 = sphi 0, %s44
    %s46 = sphi 0, %s44
    %s47 = sphi 0, %s46
    %s61 = sphi 0, %s47
    %s65 = sphi 0, %s65
    %s67 = sphi 0, %s65
    %s68 = sphi 0, %s67
    %s82 = sphi 0, %s68
    %s86 = sphi 0, %s86
    %s88 = sphi 0, %s86
    %s89 = sphi 0, %s88
    %s103 = sphi 0, %s89
    %s109 = sphi 0, %s111
    %s112 = sphi 0, %s109
    %s113 = sphi 0, %s112
    %s129 = sphi 0, %s113
  $region4: #{resnet_forward.19} parent=0 // loop_header_branch
    %13 = sbr.rel (%p11) target = $region8
  $region5: #{resnet_forward.19} parent=0 // loop_body
    %s15 = ssub.s32 %s10, 1
    %s16 = ssub.s32 %s10, 2
    %s17 = sadd.s32 %s10, 1
    %s18 = ssub.s32 %s10, %s17
    %p19 = scmp.eq.s32.totalorder %s18, 0
    %s21 = sadd.s32 %s20, 1
    %s22 = scalar_select %p19, %s20, %s21
    %p25 = pneg %p19
    %p26 = scmp.eq.s32.totalorder %s10, 1
    %p27 = por %p25, %p26
    %p28 = scmp.ne.s32.totalorder %s20, %s23
    %p29 = scmp.eq.s32.totalorder %s10, 0
    %p30 = por %p28, %p29
    %p31 = scmp.ne.s32.totalorder %s20, %s23
    %p32 = scmp.eq.s32.totalorder %s15, 1
    %p33 = por %p31, %p32
    %p34 = scmp.ne.s32.totalorder %s23, %s24
    %p35 = scmp.eq.s32.totalorder %s15, 0
    %p36 = por %p34, %p35
    %p37 = scmp.ne.s32.totalorder %s23, %s24
    %p38 = scmp.eq.s32.totalorder %s16, 1
    %p39 = por %p37, %p38
    %p41 = scmp.ne.s32.totalorder %s24, %s40
    %p42 = scmp.eq.s32.totalorder %s16, 0
    %p43 = por %p41, %p42
    %s45 = sadd.s32 %s44, 1
    %p48 = scmp.eq.s32.totalorder %s10, 1
    %p49 = scmp.ne.s32.totalorder %s44, %s46
    %p50 = scmp.eq.s32.totalorder %s10, 0
    %p51 = por %p49, %p50
    %p52 = scmp.ne.s32.totalorder %s44, %s46
    %p53 = scmp.eq.s32.totalorder %s15, 1
    %p54 = por %p52, %p53
    %p55 = scmp.ne.s32.totalorder %s46, %s47
    %p56 = scmp.eq.s32.totalorder %s15, 0
    %p57 = por %p55, %p56
    %p58 = scmp.ne.s32.totalorder %s46, %s47
    %p59 = scmp.eq.s32.totalorder %s16, 1
    %p60 = por %p58, %p59
    %p62 = scmp.ne.s32.totalorder %s47, %s61
    %p63 = scmp.eq.s32.totalorder %s16, 0
    %p64 = por %p62, %p63
    %s66 = sadd.s32 %s65, 1
    %p69 = scmp.eq.s32.totalorder %s10, 1
    %p70 = scmp.ne.s32.totalorder %s65, %s67
    %p71 = scmp.eq.s32.totalorder %s10, 0
    %p72 = por %p70, %p71
    %p73 = scmp.ne.s32.totalorder %s65, %s67
    %p74 = scmp.eq.s32.totalorder %s15, 1
    %p75 = por %p73, %p74
    %p76 = scmp.ne.s32.totalorder %s67, %s68
    %p77 = scmp.eq.s32.totalorder %s15, 0
    %p78 = por %p76, %p77
    %p79 = scmp.ne.s32.totalorder %s67, %s68
    %p80 = scmp.eq.s32.totalorder %s16, 1
    %p81 = por %p79, %p80
    %p83 = scmp.ne.s32.totalorder %s68, %s82
    %p84 = scmp.eq.s32.totalorder %s16, 0
    %p85 = por %p83, %p84
    %s87 = sadd.s32 %s86, 1
    %p90 = scmp.eq.s32.totalorder %s10, 1
    %p91 = scmp.ne.s32.totalorder %s86, %s88
    %p92 = scmp.eq.s32.totalorder %s10, 0
    %p93 = por %p91, %p92
    %p94 = scmp.ne.s32.totalorder %s86, %s88
    %p95 = scmp.eq.s32.totalorder %s15, 1
    %p96 = por %p94, %p95
    %p97 = scmp.ne.s32.totalorder %s88, %s89
    %p98 = scmp.eq.s32.totalorder %s15, 0
    %p99 = por %p97, %p98
    %p100 = scmp.ne.s32.totalorder %s88, %s89
    %p101 = scmp.eq.s32.totalorder %s16, 1
    %p102 = por %p100, %p101
    %p104 = scmp.ne.s32.totalorder %s89, %s103
    %p105 = scmp.eq.s32.totalorder %s16, 0
    %p106 = por %p104, %p105
    %s107 = ssub.s32 %s10, %s17
    %p108 = scmp.eq.s32.totalorder %s107, 0
    %s110 = sadd.s32 %s109, 1
    %s111 = scalar_select %p108, %s109, %s110
    %p114 = pneg %p108
    %p115 = scmp.eq.s32.totalorder %s10, 1
    %p116 = por %p114, %p115
    %p117 = scmp.ne.s32.totalorder %s109, %s112
    %p118 = scmp.eq.s32.totalorder %s10, 0
    %p119 = por %p117, %p118
    %p120 = scmp.ne.s32.totalorder %s109, %s112
    %p121 = scmp.eq.s32.totalorder %s15, 1
    %p122 = por %p120, %p121
    %p123 = scmp.ne.s32.totalorder %s112, %s113
    %p124 = scmp.eq.s32.totalorder %s15, 0
    %p125 = por %p123, %p124
    %p126 = scmp.ne.s32.totalorder %s112, %s113
    %p127 = scmp.eq.s32.totalorder %s16, 1
    %p128 = por %p126, %p127
    %p130 = scmp.ne.s32.totalorder %s113, %s129
    %p131 = scmp.eq.s32.totalorder %s16, 0
    %p132 = por %p130, %p131
    %p133 = scmp.le.s32.totalorder 1, %s10
    %p134 = scmp.lt.s32.totalorder %s10, 3
    %p135 = pnand %p133, %p134
    %p136 = pneg %p135
    // Predicated region
    $region9: #{resnet_forward.19} parent=5 // pred_check
      _
    $region10: #{resnet_forward.19} parent=5 // pred_check_branch
      %138 = sbr.rel (%p135) target = $region12
    $region11: #{resnet_forward.19} parent=5 // pred_region
      %s139 = ssub.s32 %s10, 1
      // Predicated region
      $region13: #{resnet_forward.19} parent=11 // pred_check
        %p140 = pneg %p57
      $region14: #{resnet_forward.19} parent=11 // pred_check_branch
        %142 = sbr.rel (%p140) target = $region16
      $region15: #{resnet_forward.19} parent=11 // pred_region
        _
      $region16: #{resnet_forward.19} parent=11 // pred_fallthru
        _
      // Predicated region
      $region17: #{resnet_forward.19} parent=11 // pred_check
        %p143 = pneg %p78
      $region18: #{resnet_forward.19} parent=11 // pred_check_branch
        %145 = sbr.rel (%p143) target = $region20
      $region19: #{resnet_forward.19} parent=11 // pred_region
        _
      $region20: #{resnet_forward.19} parent=11 // pred_fallthru
        _
      // Predicated region
      $region21: #{resnet_forward.19} parent=11 // pred_check
        %p146 = pneg %p99
      $region22: #{resnet_forward.19} parent=11 // pred_check_branch
        %148 = sbr.rel (%p146) target = $region24
      $region23: #{resnet_forward.19} parent=11 // pred_region
        _
      $region24: #{resnet_forward.19} parent=11 // pred_fallthru
        _
    $region12: #{resnet_forward.19} parent=5 // pred_fallthru
      _
    %p149 = scmp.lt.s32.totalorder %s10, 2
    // Predicated region
    $region25: #{resnet_forward.19} parent=5 // pred_check
      %p150 = pneg %p149
    $region26: #{resnet_forward.19} parent=5 // pred_check_branch
      %152 = sbr.rel (%p150) target = $region28
    $region27: #{resnet_forward.19} parent=5 // pred_region
      // Predicated region
      $region29: #{resnet_forward.19} parent=27 // pred_check
        %p153 = pneg %p30
      $region30: #{resnet_forward.19} parent=27 // pred_check_branch
        %155 = sbr.rel (%p153) target = $region32
      $region31: #{resnet_forward.19} parent=27 // pred_region
        %s156 = smul.u32 32, %s10
        %p157 = scmp.lt.s32.totalorder %s156, 63
        %s158 = scalar_select %p157, %s156, 63
        %s159 = smul.addr %s158, 8
        %s160 = scalar_lea.vmem %s0, %s159
        %s161 = smul.u32 32, %s10
      $region32: #{resnet_forward.19} parent=27 // pred_fallthru
        _
    $region28: #{resnet_forward.19} parent=5 // pred_fallthru
      _
    %p162 = scmp.le.s32.totalorder 1, %s10
    %p163 = scmp.lt.s32.totalorder %s10, 3
    %p164 = pnand %p162, %p163
    %p165 = pneg %p164
    // Predicated region
    $region33: #{resnet_forward.19} parent=5 // pred_check
      _
    $region34: #{resnet_forward.19} parent=5 // pred_check_branch
      %167 = sbr.rel (%p164) target = $region36
    $region35: #{resnet_forward.19} parent=5 // pred_region
      %s168 = ssub.s32 %s10, 1
      %s169 = smul.u32 32, %s15
      %p170 = scmp.lt.s32.totalorder %s169, 63
      %s171 = scalar_select %p170, %s169, 63
      %s172 = smul.addr %s171, 8
      %s173 = scalar_lea.vmem %s0, %s172
      %p174 = pneg %p36
      %p175 = pneg %p33
      %p176 = pneg %p57
      %p177 = pneg %p54
      %p178 = pneg %p78
      %p179 = pneg %p75
      %p180 = pneg %p99
      %p181 = pneg %p96
      %p182 = pneg %p125
      %p183 = pneg %p122
      %s184 = smul.u32 32, %s15
      %p185 = scmp.lt.s32.totalorder %s184, 63
      %s186 = scalar_select %p185, %s184, 63
      %s187 = smul.addr %s186, 8
      %s188 = scalar_lea.vmem %s4, %s187
      %s189 = smul.u32 32, %s15
      %p190 = scmp.lt.s32.totalorder %s189, 63
      %s191 = scalar_select %p190, %s189, 63
      %s192 = smul.addr %s191, 8
      %s193 = scalar_lea.vmem %s0, %s192
      %s194 = smul.u32 32, %s15
      %s195 = smul.u32 32, %s15
      %p196 = scmp.lt.s32.totalorder %s195, 63
      %s197 = scalar_select %p196, %s195, 63
      %s198 = smul.addr %s197, 8
      %s199 = scalar_lea.vmem %s4, %s198
      %s200 = smul.u32 32, %s15
      %v201 = vld [vmem:[%s1] sm:$0x3]
      %v202 = vmul.f32 %v201, 0.001953125
      %v203 = vmul.f32 %v202, %v202
      %v205 = vrot.slane %v203, 7
      %v207 = vsub.f32 %v202, %v205
      %v208 = vadd.f32 %v207, 1e-05
      %v209 = vrsqrt.pop %v208
      %v210 = vld [vmem:[%s2] sm:$0x1]
      %v213 = vunpack.c.l.s4 1966171168
      %v214 = vunpack.c.0.s8 %v213
      %v215 = vlaneseq
      %v216 = vshrl.u32 %v215, 7
      %v217 = vsub.s32 %v214, %v216
      %v218 = vrot.slane %v209, %v217
      %v219 = vcombine.high %v218, %v218
      %v221 = vunpack.c.l.s4 1966171168
      %v222 = vunpack.c.0.s8 %v221
      %v223 = vlaneseq
      %v224 = vshrl.u32 %v223, 7
      %v225 = vsub.s32 %v222, %v224
      %v226 = vrot.slane %v219, %v225
      %v228 = vmul.f32 %v210, %v226
      %v229 = vld [vmem:[%s3] sm:$0x1]
      %v230 = vmul.f32 %v202, %v228
      %v231 = vsub.f32 %v229, %v230
      %v232 = vld [vmem:[%s193] sm:$0xff]
      %v233 = vld [vmem:[%s193 + $0x8] sm:$0xff]
      %v234 = vld [vmem:[%s193 + $0x10] sm:$0xff]
      %v235 = vld [vmem:[%s193 + $0x18] sm:$0xff]
      %v236 = vld [vmem:[%s193 + $0x20] sm:$0xff]
      %v237 = vld [vmem:[%s193 + $0x28] sm:$0xff]
      %v238 = vld [vmem:[%s193 + $0x30] sm:$0xff]
      %v239 = vld [vmem:[%s193 + $0x38] sm:$0xff]
      %v240 = vld [vmem:[%s193 + $0x40] sm:$0xff]
      %v241 = vld [vmem:[%s193 + $0x48] sm:$0xff]
      %v242 = vld [vmem:[%s193 + $0x50] sm:$0xff]
      %v243 = vld [vmem:[%s193 + $0x58] sm:$0xff]
      %v244 = vld [vmem:[%s193 + $0x60] sm:$0xff]
      %v245 = vld [vmem:[%s193 + $0x68] sm:$0xff]
      %v246 = vld [vmem:[%s193 + $0x70] sm:$0xff]
      %v247 = vld [vmem:[%s193 + $0x78] sm:$0xff]
      %v248 = vld [vmem:[%s193 + $0x80] sm:$0xff]
      %v249 = vld [vmem:[%s193 + $0x88] sm:$0xff]
      %v250 = vld [vmem:[%s193 + $0x90] sm:$0xff]
      %v251 = vld [vmem:[%s193 + $0x98] sm:$0xff]
      %v252 = vld [vmem:[%s193 + $0xa0] sm:$0xff]
      %v253 = vld [vmem:[%s193 + $0xa8] sm:$0xff]
      %v254 = vld [vmem:[%s193 + $0xb0] sm:$0xff]
      %v255 = vld [vmem:[%s193 + $0xb8] sm:$0xff]
      %v256 = vld [vmem:[%s193 + $0xc0] sm:$0xff]
      %v257 = vld [vmem:[%s193 + $0xc8] sm:$0xff]
      %v258 = vld [vmem:[%s193 + $0xd0] sm:$0xff]
      %v259 = vld [vmem:[%s193 + $0xd8] sm:$0xff]
      %v260 = vld [vmem:[%s193 + $0xe0] sm:$0xff]
      %v261 = vld [vmem:[%s193 + $0xe8] sm:$0xff]
      %v262 = vld [vmem:[%s193 + $0xf0] sm:$0xff]
      %v263 = vld [vmem:[%s193 + $0xf8] sm:$0xff]
      %v265 = vlaneseq
      %v266 = vshrl.u32 %v265, 7
      %v267 = vsub.s32 0, %v266
      %v268 = vrot.slane %v228, %v267
      %v270 = vmul.f32 %v232, %v268
      %v271 = vmul.f32 %v233, %v268
      %v272 = vmul.f32 %v234, %v268
      %v273 = vmul.f32 %v235, %v268
      %v274 = vmul.f32 %v236, %v268
      %v275 = vmul.f32 %v237, %v268
      %v276 = vmul.f32 %v238, %v268
      %v277 = vmul.f32 %v239, %v268
      %v278 = vmul.f32 %v240, %v268
      %v279 = vmul.f32 %v241, %v268
      %v280 = vmul.f32 %v242, %v268
      %v281 = vmul.f32 %v243, %v268
      %v282 = vmul.f32 %v244, %v268
      %v283 = vmul.f32 %v245, %v268
      %v284 = vmul.f32 %v246, %v268
      %v285 = vmul.f32 %v247, %v268
      %v286 = vmul.f32 %v248, %v268
      %v287 = vmul.f32 %v249, %v268
      %v288 = vmul.f32 %v250, %v268
      %v289 = vmul.f32 %v251, %v268
      %v290 = vmul.f32 %v252, %v268
      %v291 = vmul.f32 %v253, %v268
      %v292 = vmul.f32 %v254, %v268
      %v293 = vmul.f32 %v255, %v268
      %v294 = vmul.f32 %v256, %v268
      %v295 = vmul.f32 %v257, %v268
      %v296 = vmul.f32 %v258, %v268
      %v297 = vmul.f32 %v259, %v268
      %v298 = vmul.f32 %v260, %v268
      %v299 = vmul.f32 %v261, %v268
      %v300 = vmul.f32 %v262, %v268
      %v301 = vmul.f32 %v263, %v268
      %v303 = vlaneseq
      %v304 = vshrl.u32 %v303, 7
      %v305 = vsub.s32 0, %v304
      %v306 = vrot.slane %v231, %v305
      %v308 = vadd.f32 %v270, %v306
      %v309 = vadd.f32 %v271, %v306
      %v310 = vadd.f32 %v272, %v306
      %v311 = vadd.f32 %v273, %v306
      %v312 = vadd.f32 %v274, %v306
      %v313 = vadd.f32 %v275, %v306
      %v314 = vadd.f32 %v276, %v306
      %v315 = vadd.f32 %v277, %v306
      %v316 = vadd.f32 %v278, %v306
      %v317 = vadd.f32 %v279, %v306
      %v318 = vadd.f32 %v280, %v306
      %v319 = vadd.f32 %v281, %v306
      %v320 = vadd.f32 %v282, %v306
      %v321 = vadd.f32 %v283, %v306
      %v322 = vadd.f32 %v284, %v306
      %v323 = vadd.f32 %v285, %v306
      %v324 = vadd.f32 %v286, %v306
      %v325 = vadd.f32 %v287, %v306
      %v326 = vadd.f32 %v288, %v306
      %v327 = vadd.f32 %v289, %v306
      %v328 = vadd.f32 %v290, %v306
      %v329 = vadd.f32 %v291, %v306
      %v330 = vadd.f32 %v292, %v306
      %v331 = vadd.f32 %v293, %v306
      %v332 = vadd.f32 %v294, %v306
      %v333 = vadd.f32 %v295, %v306
      %v334 = vadd.f32 %v296, %v306
      %v335 = vadd.f32 %v297, %v306
      %v336 = vadd.f32 %v298, %v306
      %v337 = vadd.f32 %v299, %v306
      %v338 = vadd.f32 %v300, %v306
      %v339 = vadd.f32 %v301, %v306
      %v340 = vmax.f32 %v308, 0.0
      %v341 = vmax.f32 %v309, 0.0
      %v342 = vmax.f32 %v310, 0.0
      %v343 = vmax.f32 %v311, 0.0
      %v344 = vmax.f32 %v312, 0.0
      %v345 = vmax.f32 %v313, 0.0
      %v346 = vmax.f32 %v314, 0.0
      %v347 = vmax.f32 %v315, 0.0
      %v348 = vmax.f32 %v316, 0.0
      %v349 = vmax.f32 %v317, 0.0
      %v350 = vmax.f32 %v318, 0.0
      %v351 = vmax.f32 %v319, 0.0
      %v352 = vmax.f32 %v320, 0.0
      %v353 = vmax.f32 %v321, 0.0
      %v354 = vmax.f32 %v322, 0.0
      %v355 = vmax.f32 %v323, 0.0
      %v356 = vmax.f32 %v324, 0.0
      %v357 = vmax.f32 %v325, 0.0
      %v358 = vmax.f32 %v326, 0.0
      %v359 = vmax.f32 %v327, 0.0
      %v360 = vmax.f32 %v328, 0.0
      %v361 = vmax.f32 %v329, 0.0
      %v362 = vmax.f32 %v330, 0.0
      %v363 = vmax.f32 %v331, 0.0
      %v364 = vmax.f32 %v332, 0.0
      %v365 = vmax.f32 %v333, 0.0
      %v366 = vmax.f32 %v334, 0.0
      %v367 = vmax.f32 %v335, 0.0
      %v368 = vmax.f32 %v336, 0.0
      %v369 = vmax.f32 %v337, 0.0
      %v370 = vmax.f32 %v338, 0.0
      %v371 = vmax.f32 %v339, 0.0
      %vm372 = vcmask 261120
      %373 = vst.msk [vmem:[%s199] sm:$0xff] %vm372, %v340
      %374 = vst.msk [vmem:[%s199 + $0x8] sm:$0xff] %vm372, %v341
      %375 = vst.msk [vmem:[%s199 + $0x10] sm:$0xff] %vm372, %v342
      %376 = vst.msk [vmem:[%s199 + $0x18] sm:$0xff] %vm372, %v343
      %377 = vst.msk [vmem:[%s199 + $0x20] sm:$0xff] %vm372, %v344
      %378 = vst.msk [vmem:[%s199 + $0x28] sm:$0xff] %vm372, %v345
      %379 = vst.msk [vmem:[%s199 + $0x30] sm:$0xff] %vm372, %v346
      %380 = vst.msk [vmem:[%s199 + $0x38] sm:$0xff] %vm372, %v347
      %381 = vst.msk [vmem:[%s199 + $0x40] sm:$0xff] %vm372, %v348
      %382 = vst.msk [vmem:[%s199 + $0x48] sm:$0xff] %vm372, %v349
      %383 = vst.msk [vmem:[%s199 + $0x50] sm:$0xff] %vm372, %v350
      %384 = vst.msk [vmem:[%s199 + $0x58] sm:$0xff] %vm372, %v351
      %385 = vst.msk [vmem:[%s199 + $0x60] sm:$0xff] %vm372, %v352
      %386 = vst.msk [vmem:[%s199 + $0x68] sm:$0xff] %vm372, %v353
      %387 = vst.msk [vmem:[%s199 + $0x70] sm:$0xff] %vm372, %v354
      %388 = vst.msk [vmem:[%s199 + $0x78] sm:$0xff] %vm372, %v355
      %389 = vst.msk [vmem:[%s199 + $0x80] sm:$0xff] %vm372, %v356
      %390 = vst.msk [vmem:[%s199 + $0x88] sm:$0xff] %vm372, %v357
      %391 = vst.msk [vmem:[%s199 + $0x90] sm:$0xff] %vm372, %v358
      %392 = vst.msk [vmem:[%s199 + $0x98] sm:$0xff] %vm372, %v359
      %393 = vst.msk [vmem:[%s199 + $0xa0] sm:$0xff] %vm372, %v360
      %394 = vst.msk [vmem:[%s199 + $0xa8] sm:$0xff] %vm372, %v361
      %395 = vst.msk [vmem:[%s199 + $0xb0] sm:$0xff] %vm372, %v362
      %396 = vst.msk [vmem:[%s199 + $0xb8] sm:$0xff] %vm372, %v363
      %397 = vst.msk [vmem:[%s199 + $0xc0] sm:$0xff] %vm372, %v364
      %398 = vst.msk [vmem:[%s199 + $0xc8] sm:$0xff] %vm372, %v365
      %399 = vst.msk [vmem:[%s199 + $0xd0] sm:$0xff] %vm372, %v366
      %400 = vst.msk [vmem:[%s199 + $0xd8] sm:$0xff] %vm372, %v367
      %401 = vst.msk [vmem:[%s199 + $0xe0] sm:$0xff] %vm372, %v368
      %402 = vst.msk [vmem:[%s199 + $0xe8] sm:$0xff] %vm372, %v369
      %403 = vst.msk [vmem:[%s199 + $0xf0] sm:$0xff] %vm372, %v370
      %404 = vst.msk [vmem:[%s199 + $0xf8] sm:$0xff] %vm372, %v371
      %s405 = smul.u32 32, %s15
      %p406 = scmp.lt.s32.totalorder %s405, 63
      %s407 = scalar_select %p406, %s405, 63
      %s408 = smul.addr %s407, 8
      %s409 = scalar_lea.vmem %s4, %s408
      // Predicated region
      $region37: #{resnet_forward.19} parent=35 // pred_check
        %p410 = pneg %p122
      $region38: #{resnet_forward.19} parent=35 // pred_check_branch
        %412 = sbr.rel (%p410) target = $region40
      $region39: #{resnet_forward.19} parent=35 // pred_region
        %s413 = smul.u32 32, %s15
      $region40: #{resnet_forward.19} parent=35 // pred_fallthru
        _
    $region36: #{resnet_forward.19} parent=5 // pred_fallthru
      _
    %p414 = scmp.le.s32.totalorder 2, %s10
    // Predicated region
    $region41: #{resnet_forward.19} parent=5 // pred_check
      %p415 = pneg %p414
    $region42: #{resnet_forward.19} parent=5 // pred_check_branch
      %417 = sbr.rel (%p415) target = $region44
    $region43: #{resnet_forward.19} parent=5 // pred_region
      %s418 = ssub.s32 %s10, 2
      // Predicated region
      $region45: #{resnet_forward.19} parent=43 // pred_check
        %p419 = pneg %p128
      $region46: #{resnet_forward.19} parent=43 // pred_check_branch
        %421 = sbr.rel (%p419) target = $region48
      $region47: #{resnet_forward.19} parent=43 // pred_region
        %s422 = smul.u32 32, %s16
        %p423 = scmp.lt.s32.totalorder %s422, 63
        %s424 = scalar_select %p423, %s422, 63
        %s425 = smul.addr %s424, 8
        %s426 = scalar_lea.vmem %s4, %s425
      $region48: #{resnet_forward.19} parent=43 // pred_fallthru
        _
    $region44: #{resnet_forward.19} parent=5 // pred_fallthru
      _
  $region6: #{resnet_forward.19} parent=0 // loop_footer
    %s14 = sadd.s32 1, %s10
  $region7: #{resnet_forward.19} parent=0 // loop_footer_branch
    %9 = sbr.rel target = $region3
  $region8: #{resnet_forward.19} parent=0 // loop_exit
    _

// kernel: resnet_forward.22
$region0: #{resnet_forward.22}
  #allocation0 [shape = 'u32[]', space=smem, size = 0x4, offset = 0x4, fixed_abs, tag = 'smem constant byte address 0x4 - core index']
  #allocation1 [shape = 'u32[144,128]{1,0:T(1,128)}', space=vmem, size = 0x12000, scoped, tag = 'internal scratch']
  %s0 = inlined_call_operand.vmem [shape: f32[128,64], index: 0, kind: input, shape index: {}]
  %s1 = inlined_call_operand.vmem [shape: f32[2,64], index: 1, kind: input, shape index: {}]
  %s2 = inlined_call_operand.vmem [shape: f32[1,64], index: 2, kind: input, shape index: {}]
  %s3 = inlined_call_operand.vmem [shape: f32[1,64], index: 3, kind: input, shape index: {}]
  %s4 = inlined_call_operand.vmem [shape: f32[128,64], index: 4, kind: output, shape index: {}]
  %s5 = sld [smem:[#allocation0]]
  $region26: #{resnet_forward.22} parent=0
    _
  %s7 = ssub.s32 1, %s5
  %s8 = scalar_select 0, %s7, %s5
  // Predicated region
  $region2: #{resnet_forward.22} parent=0 // pred_check
    _
  $region3: #{resnet_forward.22} parent=0 // pred_check_branch
    %10 = sbr.rel (0) target = $region5
  $region4: #{resnet_forward.22} parent=0 // pred_region
    _
  $region5: #{resnet_forward.22} parent=0 // pred_fallthru
    _
  // Predicated region
  $region6: #{resnet_forward.22} parent=0 // pred_check
    _
  $region7: #{resnet_forward.22} parent=0 // pred_check_branch
    %12 = sbr.rel (0) target = $region9
  $region8: #{resnet_forward.22} parent=0 // pred_region
    _
  $region9: #{resnet_forward.22} parent=0 // pred_fallthru
    _
  // Predicated region
  $region10: #{resnet_forward.22} parent=0 // pred_check
    _
  $region11: #{resnet_forward.22} parent=0 // pred_check_branch
    %14 = sbr.rel (0) target = $region13
  $region12: #{resnet_forward.22} parent=0 // pred_region
    _
  $region13: #{resnet_forward.22} parent=0 // pred_fallthru
    _
  // Predicated region
  $region14: #{resnet_forward.22} parent=0 // pred_check
    _
  $region15: #{resnet_forward.22} parent=0 // pred_check_branch
    %16 = sbr.rel (0) target = $region17
  $region16: #{resnet_forward.22} parent=0 // pred_region
    _
  $region17: #{resnet_forward.22} parent=0 // pred_fallthru
    _
  %v17 = vld [vmem:[%s1] sm:$0x3]
  %v18 = vmul.f32 %v17, 0.0078125
  %v19 = vmul.f32 %v18, %v18
  %v21 = vrot.slane %v19, 7
  %v23 = vsub.f32 %v18, %v21
  %v24 = vadd.f32 %v23, 1e-05
  %v25 = vrsqrt.pop %v24
  %v26 = vld [vmem:[%s2] sm:$0x1]
  %v29 = vunpack.c.l.s4 1966171168
  %v30 = vunpack.c.0.s8 %v29
  %v31 = vlaneseq
  %v32 = vshrl.u32 %v31, 7
  %v33 = vsub.s32 %v30, %v32
  %v34 = vrot.slane %v25, %v33
  %v35 = vcombine.high %v34, %v34
  %v37 = vunpack.c.l.s4 1966171168
  %v38 = vunpack.c.0.s8 %v37
  %v39 = vlaneseq
  %v40 = vshrl.u32 %v39, 7
  %v41 = vsub.s32 %v38, %v40
  %v42 = vrot.slane %v35, %v41
  %v44 = vmul.f32 %v26, %v42
  %v45 = vld [vmem:[%s3] sm:$0x1]
  %v46 = vmul.f32 %v18, %v44
  %v47 = vsub.f32 %v45, %v46
  %v48 = vld [vmem:[%s0] sm:$0xff]
  %v49 = vld [vmem:[%s0 + $0x8] sm:$0xff]
  %v50 = vld [vmem:[%s0 + $0x10] sm:$0xff]
  %v51 = vld [vmem:[%s0 + $0x18] sm:$0xff]
  %v52 = vld [vmem:[%s0 + $0x20] sm:$0xff]
  %v53 = vld [vmem:[%s0 + $0x28] sm:$0xff]
  %v54 = vld [vmem:[%s0 + $0x30] sm:$0xff]
  %v55 = vld [vmem:[%s0 + $0x38] sm:$0xff]
  %v56 = vld [vmem:[%s0 + $0x40] sm:$0xff]
  %v57 = vld [vmem:[%s0 + $0x48] sm:$0xff]
  %v58 = vld [vmem:[%s0 + $0x50] sm:$0xff]
  %v59 = vld [vmem:[%s0 + $0x58] sm:$0xff]
  %v60 = vld [vmem:[%s0 + $0x60] sm:$0xff]
  %v61 = vld [vmem:[%s0 + $0x68] sm:$0xff]
  %v62 = vld [vmem:[%s0 + $0x70] sm:$0xff]
  %v63 = vld [vmem:[%s0 + $0x78] sm:$0xff]
  %v65 = vlaneseq
  %v66 = vshrl.u32 %v65, 7
  %v67 = vsub.s32 0, %v66
  %v68 = vrot.slane %v44, %v67
  %v70 = vmul.f32 %v48, %v68
  %v71 = vmul.f32 %v49, %v68
  %v72 = vmul.f32 %v50, %v68
  %v73 = vmul.f32 %v51, %v68
  %v74 = vmul.f32 %v52, %v68
  %v75 = vmul.f32 %v53, %v68
  %v76 = vmul.f32 %v54, %v68
  %v77 = vmul.f32 %v55, %v68
  %v78 = vmul.f32 %v56, %v68
  %v79 = vmul.f32 %v57, %v68
  %v80 = vmul.f32 %v58, %v68
  %v81 = vmul.f32 %v59, %v68
  %v82 = vmul.f32 %v60, %v68
  %v83 = vmul.f32 %v61, %v68
  %v84 = vmul.f32 %v62, %v68
  %v85 = vmul.f32 %v63, %v68
  %v87 = vlaneseq
  %v88 = vshrl.u32 %v87, 7
  %v89 = vsub.s32 0, %v88
  %v90 = vrot.slane %v47, %v89
  %v92 = vadd.f32 %v70, %v90
  %v93 = vadd.f32 %v71, %v90
  %v94 = vadd.f32 %v72, %v90
  %v95 = vadd.f32 %v73, %v90
  %v96 = vadd.f32 %v74, %v90
  %v97 = vadd.f32 %v75, %v90
  %v98 = vadd.f32 %v76, %v90
  %v99 = vadd.f32 %v77, %v90
  %v100 = vadd.f32 %v78, %v90
  %v101 = vadd.f32 %v79, %v90
  %v102 = vadd.f32 %v80, %v90
  %v103 = vadd.f32 %v81, %v90
  %v104 = vadd.f32 %v82, %v90
  %v105 = vadd.f32 %v83, %v90
  %v106 = vadd.f32 %v84, %v90
  %v107 = vadd.f32 %v85, %v90
  %v108 = vmax.f32 %v92, 0.0
  %v109 = vmax.f32 %v93, 0.0
  %v110 = vmax.f32 %v94, 0.0
  %v111 = vmax.f32 %v95, 0.0
  %v112 = vmax.f32 %v96, 0.0
  %v113 = vmax.f32 %v97, 0.0
  %v114 = vmax.f32 %v98, 0.0
  %v115 = vmax.f32 %v99, 0.0
  %v116 = vmax.f32 %v100, 0.0
  %v117 = vmax.f32 %v101, 0.0
  %v118 = vmax.f32 %v102, 0.0
  %v119 = vmax.f32 %v103, 0.0
  %v120 = vmax.f32 %v104, 0.0
  %v121 = vmax.f32 %v105, 0.0
  %v122 = vmax.f32 %v106, 0.0
  %v123 = vmax.f32 %v107, 0.0
  %vm124 = vcmask 523264
  %125 = vst.msk [vmem:[%s4] sm:$0xff] %vm124, %v108
  %126 = vst.msk [vmem:[%s4 + $0x8] sm:$0xff] %vm124, %v109
  %127 = vst.msk [vmem:[%s4 + $0x10] sm:$0xff] %vm124, %v110
  %128 = vst.msk [vmem:[%s4 + $0x18] sm:$0xff] %vm124, %v111
  %129 = vst.msk [vmem:[%s4 + $0x20] sm:$0xff] %vm124, %v112
  %130 = vst.msk [vmem:[%s4 + $0x28] sm:$0xff] %vm124, %v113
  %131 = vst.msk [vmem:[%s4 + $0x30] sm:$0xff] %vm124, %v114
  %132 = vst.msk [vmem:[%s4 + $0x38] sm:$0xff] %vm124, %v115
  %133 = vst.msk [vmem:[%s4 + $0x40] sm:$0xff] %vm124, %v116
  %134 = vst.msk [vmem:[%s4 + $0x48] sm:$0xff] %vm124, %v117
  %135 = vst.msk [vmem:[%s4 + $0x50] sm:$0xff] %vm124, %v118
  %136 = vst.msk [vmem:[%s4 + $0x58] sm:$0xff] %vm124, %v119
  %137 = vst.msk [vmem:[%s4 + $0x60] sm:$0xff] %vm124, %v120
  %138 = vst.msk [vmem:[%s4 + $0x68] sm:$0xff] %vm124, %v121
  %139 = vst.msk [vmem:[%s4 + $0x70] sm:$0xff] %vm124, %v122
  %140 = vst.msk [vmem:[%s4 + $0x78] sm:$0xff] %vm124, %v123
  // Predicated region
  $region18: #{resnet_forward.22} parent=0 // pred_check
    _
  $region19: #{resnet_forward.22} parent=0 // pred_check_branch
    %142 = sbr.rel (0) target = $region21
  $region20: #{resnet_forward.22} parent=0 // pred_region
    _
  $region21: #{resnet_forward.22} parent=0 // pred_fallthru
    _
  // Predicated region
  $region22: #{resnet_forward.22} parent=0 // pred_check
    _
  $region23: #{resnet_forward.22} parent=0 // pred_check_branch
    %144 = sbr.rel (0) target = $region25
  $region24: #{resnet_forward.22} parent=0 // pred_region
    _
  $region25: #{resnet_forward.22} parent=0 // pred_fallthru
    _

// kernel: resnet_forward.21
$region0: #{resnet_forward.21}
  #allocation0 [shape = 'u32[]', space=smem, size = 0x4, offset = 0x4, fixed_abs, tag = 'smem constant byte address 0x4 - core index']
  #allocation1 [shape = 'u32[144,128]{1,0:T(1,128)}', space=vmem, size = 0x12000, scoped, tag = 'internal scratch']
  %s0 = inlined_call_operand.vmem [shape: bf16[128,288], index: 0, kind: input, shape index: {}]
  %s1 = inlined_call_operand.vmem [shape: bf16[288,64], index: 1, kind: input, shape index: {}]
  %s2 = inlined_call_operand.vmem [shape: f32[128,64], index: 2, kind: output, shape index: {0}]
  %s3 = inlined_call_operand.vmem [shape: f32[2,64], index: 3, kind: output, shape index: {1}]
  %4 = xla_tuple %s2, %s3
  %s5 = sld [smem:[#allocation0]]
  $region30: #{resnet_forward.21} parent=0
    _
  %s7 = ssub.s32 1, %s5
  %s8 = scalar_select 0, %s7, %s5
  // Predicated region
  $region2: #{resnet_forward.21} parent=0 // pred_check
    _
  $region3: #{resnet_forward.21} parent=0 // pred_check_branch
    %10 = sbr.rel (0) target = $region5
  $region4: #{resnet_forward.21} parent=0 // pred_region
    _
  $region5: #{resnet_forward.21} parent=0 // pred_fallthru
    _
  // Predicated region
  $region6: #{resnet_forward.21} parent=0 // pred_check
    _
  $region7: #{resnet_forward.21} parent=0 // pred_check_branch
    %12 = sbr.rel (0) target = $region9
  $region8: #{resnet_forward.21} parent=0 // pred_region
    _
  $region9: #{resnet_forward.21} parent=0 // pred_fallthru
    _
  %v14 = vld [vmem:[%s0] sm:$0xff]
  %v15 = vld [vmem:[%s0 + $0x8] sm:$0xf]
  %v16 = vld [vmem:[%s0 + $0xc] sm:$0xff]
  %v17 = vld [vmem:[%s0 + $0x14] sm:$0xf]
  %v18 = vld [vmem:[%s0 + $0x18] sm:$0xff]
  %v19 = vld [vmem:[%s0 + $0x20] sm:$0xf]
  %v20 = vld [vmem:[%s0 + $0x24] sm:$0xff]
  %v21 = vld [vmem:[%s0 + $0x2c] sm:$0xf]
  %v22 = vld [vmem:[%s0 + $0x30] sm:$0xff]
  %v23 = vld [vmem:[%s0 + $0x38] sm:$0xf]
  %v24 = vld [vmem:[%s0 + $0x3c] sm:$0xff]
  %v25 = vld [vmem:[%s0 + $0x44] sm:$0xf]
  %v26 = vld [vmem:[%s0 + $0x48] sm:$0xff]
  %v27 = vld [vmem:[%s0 + $0x50] sm:$0xf]
  %v28 = vld [vmem:[%s0 + $0x54] sm:$0xff]
  %v29 = vld [vmem:[%s0 + $0x5c] sm:$0xf]
  %v30 = vld [vmem:[%s0 + $0x60] sm:$0xff]
  %v31 = vld [vmem:[%s0 + $0x68] sm:$0xf]
  %v32 = vld [vmem:[%s0 + $0x6c] sm:$0xff]
  %v33 = vld [vmem:[%s0 + $0x74] sm:$0xf]
  %v34 = vld [vmem:[%s0 + $0x78] sm:$0xff]
  %v35 = vld [vmem:[%s0 + $0x80] sm:$0xf]
  %v36 = vld [vmem:[%s0 + $0x84] sm:$0xff]
  %v37 = vld [vmem:[%s0 + $0x8c] sm:$0xf]
  %v38 = vld [vmem:[%s0 + $0x90] sm:$0xff]
  %v39 = vld [vmem:[%s0 + $0x98] sm:$0xf]
  %v40 = vld [vmem:[%s0 + $0x9c] sm:$0xff]
  %v41 = vld [vmem:[%s0 + $0xa4] sm:$0xf]
  %v42 = vld [vmem:[%s0 + $0xa8] sm:$0xff]
  %v43 = vld [vmem:[%s0 + $0xb0] sm:$0xf]
  %v44 = vld [vmem:[%s0 + $0xb4] sm:$0xff]
  %v45 = vld [vmem:[%s0 + $0xbc] sm:$0xf]
  %v46 = vld [vmem:[%s1] sm:$0xf]
  %v47 = vld [vmem:[%s1 + $0x4] sm:$0xf]
  %v48 = vld [vmem:[%s1 + $0x8] sm:$0xf]
  %v49 = vld [vmem:[%s1 + $0xc] sm:$0xf]
  %v50 = vld [vmem:[%s1 + $0x10] sm:$0xf]
  %v51 = vld [vmem:[%s1 + $0x14] sm:$0xf]
  %v52 = vld [vmem:[%s1 + $0x18] sm:$0xf]
  %v53 = vld [vmem:[%s1 + $0x1c] sm:$0xf]
  %v54 = vld [vmem:[%s1 + $0x20] sm:$0xf]
  %v55 = vld [vmem:[%s1 + $0x24] sm:$0xf]
  %v56 = vld [vmem:[%s1 + $0x28] sm:$0xf]
  %v57 = vld [vmem:[%s1 + $0x2c] sm:$0xf]
  %v58 = vld [vmem:[%s1 + $0x30] sm:$0xf]
  %v59 = vld [vmem:[%s1 + $0x34] sm:$0xf]
  %v60 = vld [vmem:[%s1 + $0x38] sm:$0xf]
  %v61 = vld [vmem:[%s1 + $0x3c] sm:$0xf]
  %v62 = vld [vmem:[%s1 + $0x40] sm:$0xf]
  %v63 = vld [vmem:[%s1 + $0x44] sm:$0xf]
  %v64 = vld [vmem:[%s1 + $0x48] sm:$0xf]
  %v65 = vld [vmem:[%s1 + $0x4c] sm:$0xf]
  %v66 = vld [vmem:[%s1 + $0x50] sm:$0xf]
  %v67 = vld [vmem:[%s1 + $0x54] sm:$0xf]
  %v68 = vld [vmem:[%s1 + $0x58] sm:$0xf]
  %v69 = vld [vmem:[%s1 + $0x5c] sm:$0xf]
  %v70 = vld [vmem:[%s1 + $0x60] sm:$0xf]
  %v71 = vld [vmem:[%s1 + $0x64] sm:$0xf]
  %v72 = vld [vmem:[%s1 + $0x68] sm:$0xf]
  %v73 = vld [vmem:[%s1 + $0x6c] sm:$0xf]
  %v74 = vld [vmem:[%s1 + $0x70] sm:$0xf]
  %v75 = vld [vmem:[%s1 + $0x74] sm:$0xf]
  %v76 = vld [vmem:[%s1 + $0x78] sm:$0xf]
  %v77 = vld [vmem:[%s1 + $0x7c] sm:$0xf]
  %v78 = vld [vmem:[%s1 + $0x80] sm:$0xf]
  %v79 = vld [vmem:[%s1 + $0x84] sm:$0xf]
  %v80 = vld [vmem:[%s1 + $0x88] sm:$0xf]
  %v81 = vld [vmem:[%s1 + $0x8c] sm:$0xf]
  %v114 = vunpack.c.l.b16 %v14
  %v115 = vunpack.c.h.b16 %v14
  %v116 = vunpack.c.l.b16 %v15
  %v117 = vunpack.c.l.b16 %v16
  %v118 = vunpack.c.h.b16 %v16
  %v119 = vunpack.c.l.b16 %v17
  %v120 = vunpack.c.l.b16 %v18
  %v121 = vunpack.c.h.b16 %v18
  %v122 = vunpack.c.l.b16 %v19
  %v123 = vunpack.c.l.b16 %v20
  %v124 = vunpack.c.h.b16 %v20
  %v125 = vunpack.c.l.b16 %v21
  %v126 = vunpack.c.l.b16 %v22
  %v127 = vunpack.c.h.b16 %v22
  %v128 = vunpack.c.l.b16 %v23
  %v129 = vunpack.c.l.b16 %v24
  %v130 = vunpack.c.h.b16 %v24
  %v131 = vunpack.c.l.b16 %v25
  %v132 = vunpack.c.l.b16 %v26
  %v133 = vunpack.c.h.b16 %v26
  %v134 = vunpack.c.l.b16 %v27
  %v135 = vunpack.c.l.b16 %v28
  %v136 = vunpack.c.h.b16 %v28
  %v137 = vunpack.c.l.b16 %v29
  %v138 = vunpack.c.l.b16 %v30
  %v139 = vunpack.c.h.b16 %v30
  %v140 = vunpack.c.l.b16 %v31
  %v141 = vunpack.c.l.b16 %v32
  %v142 = vunpack.c.h.b16 %v32
  %v143 = vunpack.c.l.b16 %v33
  %v144 = vunpack.c.l.b16 %v34
  %v145 = vunpack.c.h.b16 %v34
  %v146 = vunpack.c.l.b16 %v35
  %v147 = vunpack.c.l.b16 %v36
  %v148 = vunpack.c.h.b16 %v36
  %v149 = vunpack.c.l.b16 %v37
  %v150 = vunpack.c.l.b16 %v38
  %v151 = vunpack.c.h.b16 %v38
  %v152 = vunpack.c.l.b16 %v39
  %v153 = vunpack.c.l.b16 %v40
  %v154 = vunpack.c.h.b16 %v40
  %v155 = vunpack.c.l.b16 %v41
  %v156 = vunpack.c.l.b16 %v42
  %v157 = vunpack.c.h.b16 %v42
  %v158 = vunpack.c.l.b16 %v43
  %v159 = vunpack.c.l.b16 %v44
  %v160 = vunpack.c.h.b16 %v44
  %v161 = vunpack.c.l.b16 %v45
  %v162 = vpack.c.b16 %v117, %v114
  %v163 = vpack.c.b16 %v118, %v115
  %v164 = vpack.c.b16 %v119, %v116
  %v165 = vpack.c.b16 %v123, %v120
  %v166 = vpack.c.b16 %v124, %v121
  %v167 = vpack.c.b16 %v125, %v122
  %v168 = vpack.c.b16 %v129, %v126
  %v169 = vpack.c.b16 %v130, %v127
  %v170 = vpack.c.b16 %v131, %v128
  %v171 = vpack.c.b16 %v135, %v132
  %v172 = vpack.c.b16 %v136, %v133
  %v173 = vpack.c.b16 %v137, %v134
  %v174 = vpack.c.b16 %v141, %v138
  %v175 = vpack.c.b16 %v142, %v139
  %v176 = vpack.c.b16 %v143, %v140
  %v177 = vpack.c.b16 %v147, %v144
  %v178 = vpack.c.b16 %v148, %v145
  %v179 = vpack.c.b16 %v149, %v146
  %v180 = vpack.c.b16 %v153, %v150
  %v181 = vpack.c.b16 %v154, %v151
  %v182 = vpack.c.b16 %v155, %v152
  %v183 = vpack.c.b16 %v159, %v156
  %v184 = vpack.c.b16 %v160, %v157
  %v185 = vpack.c.b16 %v161, %v158
  %v238 = vunpack.c.l.b16 %v46
  %v239 = vunpack.c.l.b16 %v47
  %v240 = vunpack.c.l.b16 %v48
  %v241 = vunpack.c.l.b16 %v49
  %v242 = vunpack.c.l.b16 %v50
  %v243 = vunpack.c.l.b16 %v51
  %v244 = vunpack.c.l.b16 %v52
  %v245 = vunpack.c.l.b16 %v53
  %v246 = vunpack.c.l.b16 %v54
  %v247 = vunpack.c.l.b16 %v55
  %v248 = vunpack.c.l.b16 %v56
  %v249 = vunpack.c.l.b16 %v57
  %v250 = vunpack.c.l.b16 %v58
  %v251 = vunpack.c.l.b16 %v59
  %v252 = vunpack.c.l.b16 %v60
  %v253 = vunpack.c.l.b16 %v61
  %v254 = vunpack.c.l.b16 %v62
  %v255 = vunpack.c.l.b16 %v63
  %v256 = vunpack.c.l.b16 %v64
  %v257 = vunpack.c.l.b16 %v65
  %v258 = vunpack.c.l.b16 %v66
  %v259 = vunpack.c.l.b16 %v67
  %v260 = vunpack.c.l.b16 %v68
  %v261 = vunpack.c.l.b16 %v69
  %v262 = vunpack.c.l.b16 %v70
  %v263 = vunpack.c.l.b16 %v71
  %v264 = vunpack.c.l.b16 %v72
  %v265 = vunpack.c.l.b16 %v73
  %v266 = vunpack.c.l.b16 %v74
  %v267 = vunpack.c.l.b16 %v75
  %v268 = vunpack.c.l.b16 %v76
  %v269 = vunpack.c.l.b16 %v77
  %v270 = vunpack.c.l.b16 %v78
  %v271 = vunpack.c.l.b16 %v79
  %v272 = vunpack.c.l.b16 %v80
  %v273 = vunpack.c.l.b16 %v81
  %v274 = vpack.c.b16 %v239, %v238
  %v275 = vpack.c.b16 %v241, %v240
  %v276 = vpack.c.b16 %v243, %v242
  %v277 = vpack.c.b16 %v245, %v244
  %v278 = vpack.c.b16 %v247, %v246
  %v279 = vpack.c.b16 %v249, %v248
  %v280 = vpack.c.b16 %v251, %v250
  %v281 = vpack.c.b16 %v253, %v252
  %v282 = vpack.c.b16 %v255, %v254
  %v283 = vpack.c.b16 %v257, %v256
  %v284 = vpack.c.b16 %v259, %v258
  %v285 = vpack.c.b16 %v261, %v260
  %v286 = vpack.c.b16 %v263, %v262
  %v287 = vpack.c.b16 %v265, %v264
  %v288 = vpack.c.b16 %v267, %v266
  %v289 = vpack.c.b16 %v269, %v268
  %v290 = vpack.c.b16 %v271, %v270
  %v291 = vpack.c.b16 %v273, %v272
  %vm310 = vcmask 261120
  %v312 = vsel %vm310, %v164, 0
  %v315 = vsel %vm310, %v167, 0
  %v318 = vsel %vm310, %v170, 0
  %v321 = vsel %vm310, %v173, 0
  %v324 = vsel %vm310, %v176, 0
  %v327 = vsel %vm310, %v179, 0
  %v330 = vsel %vm310, %v182, 0
  %v333 = vsel %vm310, %v185, 0
  %335 = vmatprep.subr.bf16.mxu0 0
  %336 = vmatpush1.bf16.msra.mxu0 %v281
  %337 = vmatprep.subr.bf16.mxu0 0
  %338 = vmatpush1.bf16.msra.mxu0 %v280
  %339 = vmatprep.subr.bf16.mxu0 0
  %340 = vmatpush1.bf16.msra.mxu0 %v279
  %341 = vmatprep.subr.bf16.mxu0 0
  %342 = vmatpush1.bf16.msra.mxu0 %v278
  %343 = vmatprep.subr.bf16.mxu0 0
  %344 = vmatpush1.bf16.msra.mxu0 %v277
  %345 = vmatprep.subr.bf16.mxu0 0
  %346 = vmatpush1.bf16.msra.mxu0 %v276
  %347 = vmatprep.subr.bf16.mxu0 0
  %348 = vmatpush1.bf16.msra.mxu0 %v275
  %349 = vmatprep.subr.bf16.mxu0 0
  %350 = vmatpush1.bf16.msra.mxu0 %v274
  %351 = vmatprep.subr.bf16.mxu0 0
  %352 = vmatpush2.bf16.msra.mxu0 %v289
  %353 = vmatprep.subr.bf16.mxu0 0
  %354 = vmatpush2.bf16.msra.mxu0 %v288
  %355 = vmatprep.subr.bf16.mxu0 0
  %356 = vmatpush2.bf16.msra.mxu0 %v287
  %357 = vmatprep.subr.bf16.mxu0 0
  %358 = vmatpush2.bf16.msra.mxu0 %v286
  %359 = vmatprep.subr.bf16.mxu0 0
  %360 = vmatpush2.bf16.msra.mxu0 %v285
  %361 = vmatprep.subr.bf16.mxu0 0
  %362 = vmatpush2.bf16.msra.mxu0 %v284
  %363 = vmatprep.subr.bf16.mxu0 0
  %364 = vmatpush2.bf16.msra.mxu0 %v283
  %365 = vmatprep.subr.bf16.mxu0 0
  %366 = vmatpush2.bf16.msra.mxu0 %v282
  %367 = vmatprep.mubr.bf16.mxu0 %v163
  %368 = vmatmul.mubr.bf16.gmra.mxu0 %v162
  %v369 = vpop.f32.mrf.mxu0
  %v370 = vadd.f32 0.0, %v369
  %v371 = vpop.f32.mrf.mxu0
  %v372 = vpop.f32.mrf.mxu0
  %v373 = vadd.f32 0.0, %v372
  %v374 = vpop.f32.mrf.mxu0
  %375 = vmatprep.mubr.bf16.mxu0 %v166
  %376 = vmatmul.mubr.bf16.gmra.mxu0 %v165
  %v377 = vpop.f32.mrf.mxu0
  %v378 = vadd.f32 0.0, %v377
  %v379 = vpop.f32.mrf.mxu0
  %v380 = vpop.f32.mrf.mxu0
  %v381 = vadd.f32 0.0, %v380
  %v382 = vpop.f32.mrf.mxu0
  %383 = vmatprep.mubr.bf16.mxu0 %v169
  %384 = vmatmul.mubr.bf16.gmra.mxu0 %v168
  %v385 = vpop.f32.mrf.mxu0
  %v386 = vadd.f32 0.0, %v385
  %v387 = vpop.f32.mrf.mxu0
  %v388 = vpop.f32.mrf.mxu0
  %v389 = vadd.f32 0.0, %v388
  %v390 = vpop.f32.mrf.mxu0
  %391 = vmatprep.mubr.bf16.mxu0 %v172
  %392 = vmatmul.mubr.bf16.gmra.mxu0 %v171
  %v393 = vpop.f32.mrf.mxu0
  %v394 = vadd.f32 0.0, %v393
  %v395 = vpop.f32.mrf.mxu0
  %v396 = vpop.f32.mrf.mxu0
  %v397 = vadd.f32 0.0, %v396
  %v398 = vpop.f32.mrf.mxu0
  %399 = vmatprep.mubr.bf16.mxu0 %v175
  %400 = vmatmul.mubr.bf16.gmra.mxu0 %v174
  %v401 = vpop.f32.mrf.mxu0
  %v402 = vadd.f32 0.0, %v401
  %v403 = vpop.f32.mrf.mxu0
  %v404 = vpop.f32.mrf.mxu0
  %v405 = vadd.f32 0.0, %v404
  %v406 = vpop.f32.mrf.mxu0
  %407 = vmatprep.mubr.bf16.mxu0 %v178
  %408 = vmatmul.mubr.bf16.gmra.mxu0 %v177
  %v409 = vpop.f32.mrf.mxu0
  %v410 = vadd.f32 0.0, %v409
  %v411 = vpop.f32.mrf.mxu0
  %v412 = vpop.f32.mrf.mxu0
  %v413 = vadd.f32 0.0, %v412
  %v414 = vpop.f32.mrf.mxu0
  %415 = vmatprep.mubr.bf16.mxu0 %v181
  %416 = vmatmul.mubr.bf16.gmra.mxu0 %v180
  %v417 = vpop.f32.mrf.mxu0
  %v418 = vadd.f32 0.0, %v417
  %v419 = vpop.f32.mrf.mxu0
  %v420 = vpop.f32.mrf.mxu0
  %v421 = vadd.f32 0.0, %v420
  %v422 = vpop.f32.mrf.mxu0
  %423 = vmatprep.mubr.bf16.mxu0 %v184
  %424 = vmatmul.mubr.bf16.gmra.mxu0 %v183
  %v425 = vpop.f32.mrf.mxu0
  %v426 = vadd.f32 0.0, %v425
  %v427 = vpop.f32.mrf.mxu0
  %v428 = vpop.f32.mrf.mxu0
  %v429 = vadd.f32 0.0, %v428
  %v430 = vpop.f32.mrf.mxu0
  %431 = vdwg.mxu0
  %432 = vmatprep.subr.bf16.mxu0 0
  %433 = vmatpush1.bf16.msra.mxu0 0
  %434 = vmatprep.subr.bf16.mxu0 0
  %435 = vmatpush1.bf16.msra.mxu0 0
  %436 = vmatprep.subr.bf16.mxu0 0
  %437 = vmatpush1.bf16.msra.mxu0 0
  %438 = vmatprep.subr.bf16.mxu0 0
  %439 = vmatpush1.bf16.msra.mxu0 0
  %440 = vmatprep.subr.bf16.mxu0 0
  %441 = vmatpush1.bf16.msra.mxu0 0
  %442 = vmatprep.subr.bf16.mxu0 0
  %443 = vmatpush1.bf16.msra.mxu0 0
  %444 = vmatprep.subr.bf16.mxu0 0
  %445 = vmatpush1.bf16.msra.mxu0 %v291
  %446 = vmatprep.subr.bf16.mxu0 0
  %447 = vmatpush1.bf16.msra.mxu0 %v290
  %448 = vmatprep.subr.bf16.mxu0 0
  %449 = vmatpush2.bf16.msra.mxu0 0
  %450 = vmatprep.subr.bf16.mxu0 0
  %451 = vmatpush2.bf16.msra.mxu0 0
  %452 = vmatprep.subr.bf16.mxu0 0
  %453 = vmatpush2.bf16.msra.mxu0 0
  %454 = vmatprep.subr.bf16.mxu0 0
  %455 = vmatpush2.bf16.msra.mxu0 0
  %456 = vmatprep.subr.bf16.mxu0 0
  %457 = vmatpush2.bf16.msra.mxu0 0
  %458 = vmatprep.subr.bf16.mxu0 0
  %459 = vmatpush2.bf16.msra.mxu0 0
  %460 = vmatprep.subr.bf16.mxu0 0
  %461 = vmatpush2.bf16.msra.mxu0 0
  %462 = vmatprep.subr.bf16.mxu0 0
  %463 = vmatpush2.bf16.msra.mxu0 0
  %464 = vmatprep.mubr.bf16.mxu0 0
  %465 = vmatmul.mubr.bf16.gmra.mxu0 %v312
  %v466 = vpop.f32.mrf.mxu0
  %v467 = vadd.f32 %v370, %v466
  %v468 = vpop.f32.mrf.mxu0
  %v469 = vpop.f32.mrf.mxu0
  %v470 = vadd.f32 %v373, %v469
  %v471 = vpop.f32.mrf.mxu0
  %472 = vmatprep.mubr.bf16.mxu0 0
  %473 = vmatmul.mubr.bf16.gmra.mxu0 %v315
  %v474 = vpop.f32.mrf.mxu0
  %v475 = vadd.f32 %v378, %v474
  %v476 = vpop.f32.mrf.mxu0
  %v477 = vpop.f32.mrf.mxu0
  %v478 = vadd.f32 %v381, %v477
  %v479 = vpop.f32.mrf.mxu0
  %480 = vmatprep.mubr.bf16.mxu0 0
  %481 = vmatmul.mubr.bf16.gmra.mxu0 %v318
  %v482 = vpop.f32.mrf.mxu0
  %v483 = vadd.f32 %v386, %v482
  %v484 = vpop.f32.mrf.mxu0
  %v485 = vpop.f32.mrf.mxu0
  %v486 = vadd.f32 %v389, %v485
  %v487 = vpop.f32.mrf.mxu0
  %488 = vmatprep.mubr.bf16.mxu0 0
  %489 = vmatmul.mubr.bf16.gmra.mxu0 %v321
  %v490 = vpop.f32.mrf.mxu0
  %v491 = vadd.f32 %v394, %v490
  %v492 = vpop.f32.mrf.mxu0
  %v493 = vpop.f32.mrf.mxu0
  %v494 = vadd.f32 %v397, %v493
  %v495 = vpop.f32.mrf.mxu0
  %496 = vmatprep.mubr.bf16.mxu0 0
  %497 = vmatmul.mubr.bf16.gmra.mxu0 %v324
  %v498 = vpop.f32.mrf.mxu0
  %v499 = vadd.f32 %v402, %v498
  %v500 = vpop.f32.mrf.mxu0
  %v501 = vpop.f32.mrf.mxu0
  %v502 = vadd.f32 %v405, %v501
  %v503 = vpop.f32.mrf.mxu0
  %504 = vmatprep.mubr.bf16.mxu0 0
  %505 = vmatmul.mubr.bf16.gmra.mxu0 %v327
  %v506 = vpop.f32.mrf.mxu0
  %v507 = vadd.f32 %v410, %v506
  %v508 = vpop.f32.mrf.mxu0
  %v509 = vpop.f32.mrf.mxu0
  %v510 = vadd.f32 %v413, %v509
  %v511 = vpop.f32.mrf.mxu0
  %512 = vmatprep.mubr.bf16.mxu0 0
  %513 = vmatmul.mubr.bf16.gmra.mxu0 %v330
  %v514 = vpop.f32.mrf.mxu0
  %v515 = vadd.f32 %v418, %v514
  %v516 = vpop.f32.mrf.mxu0
  %v517 = vpop.f32.mrf.mxu0
  %v518 = vadd.f32 %v421, %v517
  %v519 = vpop.f32.mrf.mxu0
  %520 = vmatprep.mubr.bf16.mxu0 0
  %521 = vmatmul.mubr.bf16.gmra.mxu0 %v333
  %v522 = vpop.f32.mrf.mxu0
  %v523 = vadd.f32 %v426, %v522
  %v524 = vpop.f32.mrf.mxu0
  %v525 = vpop.f32.mrf.mxu0
  %v526 = vadd.f32 %v429, %v525
  %v527 = vpop.f32.mrf.mxu0
  %528 = vdwg.mxu0
  %vm529 = vcmask 523264
  %530 = vst.msk [vmem:[%s2] sm:$0xff] %vm529, %v467
  %531 = vst.msk [vmem:[%s2 + $0x8] sm:$0xff] %vm529, %v470
  %532 = vst.msk [vmem:[%s2 + $0x10] sm:$0xff] %vm529, %v475
  %533 = vst.msk [vmem:[%s2 + $0x18] sm:$0xff] %vm529, %v478
  %534 = vst.msk [vmem:[%s2 + $0x20] sm:$0xff] %vm529, %v483
  %535 = vst.msk [vmem:[%s2 + $0x28] sm:$0xff] %vm529, %v486
  %536 = vst.msk [vmem:[%s2 + $0x30] sm:$0xff] %vm529, %v491
  %537 = vst.msk [vmem:[%s2 + $0x38] sm:$0xff] %vm529, %v494
  %538 = vst.msk [vmem:[%s2 + $0x40] sm:$0xff] %vm529, %v499
  %539 = vst.msk [vmem:[%s2 + $0x48] sm:$0xff] %vm529, %v502
  %540 = vst.msk [vmem:[%s2 + $0x50] sm:$0xff] %vm529, %v507
  %541 = vst.msk [vmem:[%s2 + $0x58] sm:$0xff] %vm529, %v510
  %542 = vst.msk [vmem:[%s2 + $0x60] sm:$0xff] %vm529, %v515
  %543 = vst.msk [vmem:[%s2 + $0x68] sm:$0xff] %vm529, %v518
  %544 = vst.msk [vmem:[%s2 + $0x70] sm:$0xff] %vm529, %v523
  %545 = vst.msk [vmem:[%s2 + $0x78] sm:$0xff] %vm529, %v526
  %v546 = vsel %vm529, %v467, 0.0
  %v547 = vsel %vm529, %v470, 0.0
  %v548 = vadd.f32 %v546, %v547
  %v549 = vsel %vm529, %v475, 0.0
  %v550 = vadd.f32 %v548, %v549
  %v551 = vsel %vm529, %v478, 0.0
  %v552 = vadd.f32 %v550, %v551
  %v553 = vsel %vm529, %v483, 0.0
  %v554 = vadd.f32 %v552, %v553
  %v555 = vsel %vm529, %v486, 0.0
  %v556 = vadd.f32 %v554, %v555
  %v557 = vsel %vm529, %v491, 0.0
  %v558 = vadd.f32 %v556, %v557
  %v559 = vsel %vm529, %v494, 0.0
  %v560 = vadd.f32 %v558, %v559
  %v561 = vsel %vm529, %v499, 0.0
  %v562 = vadd.f32 %v560, %v561
  %v563 = vsel %vm529, %v502, 0.0
  %v564 = vadd.f32 %v562, %v563
  %v565 = vsel %vm529, %v507, 0.0
  %v566 = vadd.f32 %v564, %v565
  %v567 = vsel %vm529, %v510, 0.0
  %v568 = vadd.f32 %v566, %v567
  %v569 = vsel %vm529, %v515, 0.0
  %v570 = vadd.f32 %v568, %v569
  %v571 = vsel %vm529, %v518, 0.0
  %v572 = vadd.f32 %v570, %v571
  %v573 = vsel %vm529, %v523, 0.0
  %v574 = vadd.f32 %v572, %v573
  %v575 = vsel %vm529, %v526, 0.0
  %v576 = vadd.f32 %v574, %v575
  %v577 = vrot.slane %v576, 4
  %v578 = vadd.f32 %v576, %v577
  %v579 = vrot.slane %v578, 2
  %v580 = vadd.f32 %v578, %v579
  %v581 = vrot.slane %v580, 1
  %v582 = vadd.f32 %v580, %v581
  %v583 = vmul.f32 %v467, %v467
  %v584 = vmul.f32 %v470, %v470
  %v585 = vmul.f32 %v475, %v475
  %v586 = vmul.f32 %v478, %v478
  %v587 = vmul.f32 %v483, %v483
  %v588 = vmul.f32 %v486, %v486
  %v589 = vmul.f32 %v491, %v491
  %v590 = vmul.f32 %v494, %v494
  %v591 = vmul.f32 %v499, %v499
  %v592 = vmul.f32 %v502, %v502
  %v593 = vmul.f32 %v507, %v507
  %v594 = vmul.f32 %v510, %v510
  %v595 = vmul.f32 %v515, %v515
  %v596 = vmul.f32 %v518, %v518
  %v597 = vmul.f32 %v523, %v523
  %v598 = vmul.f32 %v526, %v526
  %v599 = vsel %vm529, %v583, 0.0
  %v600 = vsel %vm529, %v584, 0.0
  %v601 = vadd.f32 %v599, %v600
  %v602 = vsel %vm529, %v585, 0.0
  %v603 = vadd.f32 %v601, %v602
  %v604 = vsel %vm529, %v586, 0.0
  %v605 = vadd.f32 %v603, %v604
  %v606 = vsel %vm529, %v587, 0.0
  %v607 = vadd.f32 %v605, %v606
  %v608 = vsel %vm529, %v588, 0.0
  %v609 = vadd.f32 %v607, %v608
  %v610 = vsel %vm529, %v589, 0.0
  %v611 = vadd.f32 %v609, %v610
  %v612 = vsel %vm529, %v590, 0.0
  %v613 = vadd.f32 %v611, %v612
  %v614 = vsel %vm529, %v591, 0.0
  %v615 = vadd.f32 %v613, %v614
  %v616 = vsel %vm529, %v592, 0.0
  %v617 = vadd.f32 %v615, %v616
  %v618 = vsel %vm529, %v593, 0.0
  %v619 = vadd.f32 %v617, %v618
  %v620 = vsel %vm529, %v594, 0.0
  %v621 = vadd.f32 %v619, %v620
  %v622 = vsel %vm529, %v595, 0.0
  %v623 = vadd.f32 %v621, %v622
  %v624 = vsel %vm529, %v596, 0.0
  %v625 = vadd.f32 %v623, %v624
  %v626 = vsel %vm529, %v597, 0.0
  %v627 = vadd.f32 %v625, %v626
  %v628 = vsel %vm529, %v598, 0.0
  %v629 = vadd.f32 %v627, %v628
  %v630 = vrot.slane %v629, 4
  %v631 = vadd.f32 %v629, %v630
  %v632 = vrot.slane %v631, 2
  %v633 = vadd.f32 %v631, %v632
  %v634 = vrot.slane %v633, 1
  %v635 = vadd.f32 %v633, %v634
  %p636 = scmp.eq.s32.totalorder 0, 0
  // Predicated region
  $region10: #{resnet_forward.21} parent=0 // pred_check
    %p637 = pneg %p636
  $region11: #{resnet_forward.21} parent=0 // pred_check_branch
    %639 = sbr.rel (%p637) target = $region13
  $region12: #{resnet_forward.21} parent=0 // pred_region
    %vm640 = vcmask 517120
    %641 = vst.msk [vmem:[%s3] sm:$0x3] %vm640, 0.0
  $region13: #{resnet_forward.21} parent=0 // pred_fallthru
    _
  %v642 = vld [vmem:[%s3] sm:$0x3]
  %vm643 = vcmask 1040384
  %v644 = vsel %vm643, %v582, %v635
  %v645 = vadd.f32 %v642, %v644
  %vm646 = vcmask 517120
  %647 = vst.msk [vmem:[%s3] sm:$0x3] %vm646, %v645
  // Predicated region
  $region14: #{resnet_forward.21} parent=0 // pred_check
    _
  $region15: #{resnet_forward.21} parent=0 // pred_check_branch
    %649 = sbr.rel (0) target = $region17
  $region16: #{resnet_forward.21} parent=0 // pred_region
    _
  $region17: #{resnet_forward.21} parent=0 // pred_fallthru
    _
  // Predicated region
  $region18: #{resnet_forward.21} parent=0 // pred_check
    _
  $region19: #{resnet_forward.21} parent=0 // pred_check_branch
    %651 = sbr.rel (0) target = $region21
  $region20: #{resnet_forward.21} parent=0 // pred_region
    _
  $region21: #{resnet_forward.21} parent=0 // pred_fallthru
    _
  // Predicated region
  $region22: #{resnet_forward.21} parent=0 // pred_check
    _
  $region23: #{resnet_forward.21} parent=0 // pred_check_branch
    %653 = sbr.rel (0) target = $region25
  $region24: #{resnet_forward.21} parent=0 // pred_region
    _
  $region25: #{resnet_forward.21} parent=0 // pred_fallthru
    _
  // Predicated region
  $region26: #{resnet_forward.21} parent=0 // pred_check
    _
  $region27: #{resnet_forward.21} parent=0 // pred_check_branch
    %655 = sbr.rel (0) target = $region29
  $region28: #{resnet_forward.21} parent=0 // pred_region
    _
  $region29: #{resnet_forward.21} parent=0 // pred_fallthru
    _

// kernel: resnet_forward.25
$region0: #{resnet_forward.25}
  #allocation0 [shape = 'u32[]', space=smem, size = 0x4, offset = 0x4, fixed_abs, tag = 'smem constant byte address 0x4 - core index']
  #allocation1 [shape = 'u32[144,128]{1,0:T(1,128)}', space=vmem, size = 0x12000, scoped, tag = 'internal scratch']
  %s0 = inlined_call_operand.vmem [shape: f32[128,64], index: 0, kind: input, shape index: {}]
  %s1 = inlined_call_operand.vmem [shape: f32[2,64], index: 1, kind: input, shape index: {}]
  %s2 = inlined_call_operand.vmem [shape: f32[1,64], index: 2, kind: input, shape index: {}]
  %s3 = inlined_call_operand.vmem [shape: f32[1,64], index: 3, kind: input, shape index: {}]
  %s4 = inlined_call_operand.vmem [shape: f32[128,64], index: 4, kind: input, shape index: {}]
  %s5 = inlined_call_operand.vmem [shape: f32[128,64], index: 5, kind: output, shape index: {}]
  %s6 = sld [smem:[#allocation0]]
  $region30: #{resnet_forward.25} parent=0
    _
  %s8 = ssub.s32 1, %s6
  %s9 = scalar_select 0, %s8, %s6
  // Predicated region
  $region2: #{resnet_forward.25} parent=0 // pred_check
    _
  $region3: #{resnet_forward.25} parent=0 // pred_check_branch
    %11 = sbr.rel (0) target = $region5
  $region4: #{resnet_forward.25} parent=0 // pred_region
    _
  $region5: #{resnet_forward.25} parent=0 // pred_fallthru
    _
  // Predicated region
  $region6: #{resnet_forward.25} parent=0 // pred_check
    _
  $region7: #{resnet_forward.25} parent=0 // pred_check_branch
    %13 = sbr.rel (0) target = $region9
  $region8: #{resnet_forward.25} parent=0 // pred_region
    _
  $region9: #{resnet_forward.25} parent=0 // pred_fallthru
    _
  // Predicated region
  $region10: #{resnet_forward.25} parent=0 // pred_check
    _
  $region11: #{resnet_forward.25} parent=0 // pred_check_branch
    %15 = sbr.rel (0) target = $region13
  $region12: #{resnet_forward.25} parent=0 // pred_region
    _
  $region13: #{resnet_forward.25} parent=0 // pred_fallthru
    _
  // Predicated region
  $region14: #{resnet_forward.25} parent=0 // pred_check
    _
  $region15: #{resnet_forward.25} parent=0 // pred_check_branch
    %17 = sbr.rel (0) target = $region17
  $region16: #{resnet_forward.25} parent=0 // pred_region
    _
  $region17: #{resnet_forward.25} parent=0 // pred_fallthru
    _
  // Predicated region
  $region18: #{resnet_forward.25} parent=0 // pred_check
    _
  $region19: #{resnet_forward.25} parent=0 // pred_check_branch
    %19 = sbr.rel (0) target = $region21
  $region20: #{resnet_forward.25} parent=0 // pred_region
    _
  $region21: #{resnet_forward.25} parent=0 // pred_fallthru
    _
  %v20 = vld [vmem:[%s1] sm:$0x3]
  %v21 = vmul.f32 %v20, 0.0078125
  %v22 = vmul.f32 %v21, %v21
  %v24 = vrot.slane %v22, 7
  %v26 = vsub.f32 %v21, %v24
  %v27 = vadd.f32 %v26, 1e-05
  %v28 = vrsqrt.pop %v27
  %v29 = vld [vmem:[%s2] sm:$0x1]
  %v32 = vunpack.c.l.s4 1966171168
  %v33 = vunpack.c.0.s8 %v32
  %v34 = vlaneseq
  %v35 = vshrl.u32 %v34, 7
  %v36 = vsub.s32 %v33, %v35
  %v37 = vrot.slane %v28, %v36
  %v38 = vcombine.high %v37, %v37
  %v40 = vunpack.c.l.s4 1966171168
  %v41 = vunpack.c.0.s8 %v40
  %v42 = vlaneseq
  %v43 = vshrl.u32 %v42, 7
  %v44 = vsub.s32 %v41, %v43
  %v45 = vrot.slane %v38, %v44
  %v47 = vmul.f32 %v29, %v45
  %v48 = vld [vmem:[%s3] sm:$0x1]
  %v49 = vmul.f32 %v21, %v47
  %v50 = vsub.f32 %v48, %v49
  %v51 = vld [vmem:[%s0] sm:$0xff]
  %v52 = vld [vmem:[%s0 + $0x8] sm:$0xff]
  %v53 = vld [vmem:[%s0 + $0x10] sm:$0xff]
  %v54 = vld [vmem:[%s0 + $0x18] sm:$0xff]
  %v55 = vld [vmem:[%s0 + $0x20] sm:$0xff]
  %v56 = vld [vmem:[%s0 + $0x28] sm:$0xff]
  %v57 = vld [vmem:[%s0 + $0x30] sm:$0xff]
  %v58 = vld [vmem:[%s0 + $0x38] sm:$0xff]
  %v59 = vld [vmem:[%s0 + $0x40] sm:$0xff]
  %v60 = vld [vmem:[%s0 + $0x48] sm:$0xff]
  %v61 = vld [vmem:[%s0 + $0x50] sm:$0xff]
  %v62 = vld [vmem:[%s0 + $0x58] sm:$0xff]
  %v63 = vld [vmem:[%s0 + $0x60] sm:$0xff]
  %v64 = vld [vmem:[%s0 + $0x68] sm:$0xff]
  %v65 = vld [vmem:[%s0 + $0x70] sm:$0xff]
  %v66 = vld [vmem:[%s0 + $0x78] sm:$0xff]
  %v68 = vlaneseq
  %v69 = vshrl.u32 %v68, 7
  %v70 = vsub.s32 0, %v69
  %v71 = vrot.slane %v47, %v70
  %v73 = vmul.f32 %v51, %v71
  %v74 = vmul.f32 %v52, %v71
  %v75 = vmul.f32 %v53, %v71
  %v76 = vmul.f32 %v54, %v71
  %v77 = vmul.f32 %v55, %v71
  %v78 = vmul.f32 %v56, %v71
  %v79 = vmul.f32 %v57, %v71
  %v80 = vmul.f32 %v58, %v71
  %v81 = vmul.f32 %v59, %v71
  %v82 = vmul.f32 %v60, %v71
  %v83 = vmul.f32 %v61, %v71
  %v84 = vmul.f32 %v62, %v71
  %v85 = vmul.f32 %v63, %v71
  %v86 = vmul.f32 %v64, %v71
  %v87 = vmul.f32 %v65, %v71
  %v88 = vmul.f32 %v66, %v71
  %v90 = vlaneseq
  %v91 = vshrl.u32 %v90, 7
  %v92 = vsub.s32 0, %v91
  %v93 = vrot.slane %v50, %v92
  %v95 = vadd.f32 %v73, %v93
  %v96 = vadd.f32 %v74, %v93
  %v97 = vadd.f32 %v75, %v93
  %v98 = vadd.f32 %v76, %v93
  %v99 = vadd.f32 %v77, %v93
  %v100 = vadd.f32 %v78, %v93
  %v101 = vadd.f32 %v79, %v93
  %v102 = vadd.f32 %v80, %v93
  %v103 = vadd.f32 %v81, %v93
  %v104 = vadd.f32 %v82, %v93
  %v105 = vadd.f32 %v83, %v93
  %v106 = vadd.f32 %v84, %v93
  %v107 = vadd.f32 %v85, %v93
  %v108 = vadd.f32 %v86, %v93
  %v109 = vadd.f32 %v87, %v93
  %v110 = vadd.f32 %v88, %v93
  %v111 = vld [vmem:[%s4] sm:$0xff]
  %v112 = vld [vmem:[%s4 + $0x8] sm:$0xff]
  %v113 = vld [vmem:[%s4 + $0x10] sm:$0xff]
  %v114 = vld [vmem:[%s4 + $0x18] sm:$0xff]
  %v115 = vld [vmem:[%s4 + $0x20] sm:$0xff]
  %v116 = vld [vmem:[%s4 + $0x28] sm:$0xff]
  %v117 = vld [vmem:[%s4 + $0x30] sm:$0xff]
  %v118 = vld [vmem:[%s4 + $0x38] sm:$0xff]
  %v119 = vld [vmem:[%s4 + $0x40] sm:$0xff]
  %v120 = vld [vmem:[%s4 + $0x48] sm:$0xff]
  %v121 = vld [vmem:[%s4 + $0x50] sm:$0xff]
  %v122 = vld [vmem:[%s4 + $0x58] sm:$0xff]
  %v123 = vld [vmem:[%s4 + $0x60] sm:$0xff]
  %v124 = vld [vmem:[%s4 + $0x68] sm:$0xff]
  %v125 = vld [vmem:[%s4 + $0x70] sm:$0xff]
  %v126 = vld [vmem:[%s4 + $0x78] sm:$0xff]
  %v127 = vadd.f32 %v95, %v111
  %v128 = vadd.f32 %v96, %v112
  %v129 = vadd.f32 %v97, %v113
  %v130 = vadd.f32 %v98, %v114
  %v131 = vadd.f32 %v99, %v115
  %v132 = vadd.f32 %v100, %v116
  %v133 = vadd.f32 %v101, %v117
  %v134 = vadd.f32 %v102, %v118
  %v135 = vadd.f32 %v103, %v119
  %v136 = vadd.f32 %v104, %v120
  %v137 = vadd.f32 %v105, %v121
  %v138 = vadd.f32 %v106, %v122
  %v139 = vadd.f32 %v107, %v123
  %v140 = vadd.f32 %v108, %v124
  %v141 = vadd.f32 %v109, %v125
  %v142 = vadd.f32 %v110, %v126
  %v143 = vmax.f32 %v127, 0.0
  %v144 = vmax.f32 %v128, 0.0
  %v145 = vmax.f32 %v129, 0.0
  %v146 = vmax.f32 %v130, 0.0
  %v147 = vmax.f32 %v131, 0.0
  %v148 = vmax.f32 %v132, 0.0
  %v149 = vmax.f32 %v133, 0.0
  %v150 = vmax.f32 %v134, 0.0
  %v151 = vmax.f32 %v135, 0.0
  %v152 = vmax.f32 %v136, 0.0
  %v153 = vmax.f32 %v137, 0.0
  %v154 = vmax.f32 %v138, 0.0
  %v155 = vmax.f32 %v139, 0.0
  %v156 = vmax.f32 %v140, 0.0
  %v157 = vmax.f32 %v141, 0.0
  %v158 = vmax.f32 %v142, 0.0
  %vm159 = vcmask 523264
  %160 = vst.msk [vmem:[%s5] sm:$0xff] %vm159, %v143
  %161 = vst.msk [vmem:[%s5 + $0x8] sm:$0xff] %vm159, %v144
  %162 = vst.msk [vmem:[%s5 + $0x10] sm:$0xff] %vm159, %v145
  %163 = vst.msk [vmem:[%s5 + $0x18] sm:$0xff] %vm159, %v146
  %164 = vst.msk [vmem:[%s5 + $0x20] sm:$0xff] %vm159, %v147
  %165 = vst.msk [vmem:[%s5 + $0x28] sm:$0xff] %vm159, %v148
  %166 = vst.msk [vmem:[%s5 + $0x30] sm:$0xff] %vm159, %v149
  %167 = vst.msk [vmem:[%s5 + $0x38] sm:$0xff] %vm159, %v150
  %168 = vst.msk [vmem:[%s5 + $0x40] sm:$0xff] %vm159, %v151
  %169 = vst.msk [vmem:[%s5 + $0x48] sm:$0xff] %vm159, %v152
  %170 = vst.msk [vmem:[%s5 + $0x50] sm:$0xff] %vm159, %v153
  %171 = vst.msk [vmem:[%s5 + $0x58] sm:$0xff] %vm159, %v154
  %172 = vst.msk [vmem:[%s5 + $0x60] sm:$0xff] %vm159, %v155
  %173 = vst.msk [vmem:[%s5 + $0x68] sm:$0xff] %vm159, %v156
  %174 = vst.msk [vmem:[%s5 + $0x70] sm:$0xff] %vm159, %v157
  %175 = vst.msk [vmem:[%s5 + $0x78] sm:$0xff] %vm159, %v158
  // Predicated region
  $region22: #{resnet_forward.25} parent=0 // pred_check
    _
  $region23: #{resnet_forward.25} parent=0 // pred_check_branch
    %177 = sbr.rel (0) target = $region25
  $region24: #{resnet_forward.25} parent=0 // pred_region
    _
  $region25: #{resnet_forward.25} parent=0 // pred_fallthru
    _
  // Predicated region
  $region26: #{resnet_forward.25} parent=0 // pred_check
    _
  $region27: #{resnet_forward.25} parent=0 // pred_check_branch
    %179 = sbr.rel (0) target = $region29
  $region28: #{resnet_forward.25} parent=0 // pred_region
    _
  $region29: #{resnet_forward.25} parent=0 // pred_fallthru
    _

// kernel: resnet_forward.23
$region0: #{resnet_forward.23}
  #allocation0 [shape = 'u32[]', space=smem, size = 0x4, offset = 0x4, fixed_abs, tag = 'smem constant byte address 0x4 - core index']
  #allocation1 [shape = 'u32[144,128]{1,0:T(1,128)}', space=vmem, size = 0x12000, scoped, tag = 'internal scratch']
  %s0 = inlined_call_operand.vmem [shape: bf16[128,32], index: 0, kind: input, shape index: {}]
  %s1 = inlined_call_operand.vmem [shape: bf16[32,64], index: 1, kind: input, shape index: {}]
  %s2 = inlined_call_operand.vmem [shape: f32[1,64], index: 2, kind: input, shape index: {}]
  %s3 = inlined_call_operand.vmem [shape: f32[128,64], index: 3, kind: output, shape index: {}]
  %s4 = sld [smem:[#allocation0]]
  $region22: #{resnet_forward.23} parent=0
    _
  %s6 = ssub.s32 1, %s4
  %s7 = scalar_select 0, %s6, %s4
  // Predicated region
  $region2: #{resnet_forward.23} parent=0 // pred_check
    _
  $region3: #{resnet_forward.23} parent=0 // pred_check_branch
    %9 = sbr.rel (0) target = $region5
  $region4: #{resnet_forward.23} parent=0 // pred_region
    _
  $region5: #{resnet_forward.23} parent=0 // pred_fallthru
    _
  // Predicated region
  $region6: #{resnet_forward.23} parent=0 // pred_check
    _
  $region7: #{resnet_forward.23} parent=0 // pred_check_branch
    %11 = sbr.rel (0) target = $region9
  $region8: #{resnet_forward.23} parent=0 // pred_region
    _
  $region9: #{resnet_forward.23} parent=0 // pred_fallthru
    _
  // Predicated region
  $region10: #{resnet_forward.23} parent=0 // pred_check
    _
  $region11: #{resnet_forward.23} parent=0 // pred_check_branch
    %13 = sbr.rel (0) target = $region13
  $region12: #{resnet_forward.23} parent=0 // pred_region
    _
  $region13: #{resnet_forward.23} parent=0 // pred_fallthru
    _
  %v15 = vld [vmem:[%s0] sm:$0xf]
  %v16 = vld [vmem:[%s0 + $0x4] sm:$0xf]
  %v17 = vld [vmem:[%s0 + $0x8] sm:$0xf]
  %v18 = vld [vmem:[%s0 + $0xc] sm:$0xf]
  %v19 = vld [vmem:[%s0 + $0x10] sm:$0xf]
  %v20 = vld [vmem:[%s0 + $0x14] sm:$0xf]
  %v21 = vld [vmem:[%s0 + $0x18] sm:$0xf]
  %v22 = vld [vmem:[%s0 + $0x1c] sm:$0xf]
  %v23 = vld [vmem:[%s0 + $0x20] sm:$0xf]
  %v24 = vld [vmem:[%s0 + $0x24] sm:$0xf]
  %v25 = vld [vmem:[%s0 + $0x28] sm:$0xf]
  %v26 = vld [vmem:[%s0 + $0x2c] sm:$0xf]
  %v27 = vld [vmem:[%s0 + $0x30] sm:$0xf]
  %v28 = vld [vmem:[%s0 + $0x34] sm:$0xf]
  %v29 = vld [vmem:[%s0 + $0x38] sm:$0xf]
  %v30 = vld [vmem:[%s0 + $0x3c] sm:$0xf]
  %v31 = vld [vmem:[%s1] sm:$0xf]
  %v32 = vld [vmem:[%s1 + $0x4] sm:$0xf]
  %v33 = vld [vmem:[%s1 + $0x8] sm:$0xf]
  %v34 = vld [vmem:[%s1 + $0xc] sm:$0xf]
  %v35 = vld [vmem:[%s2] sm:$0x1]
  %v37 = vlaneseq
  %v38 = vshrl.u32 %v37, 7
  %v39 = vsub.s32 0, %v38
  %v40 = vrot.slane %v35, %v39
  %v58 = vunpack.c.l.b16 %v15
  %v59 = vunpack.c.l.b16 %v16
  %v60 = vunpack.c.l.b16 %v17
  %v61 = vunpack.c.l.b16 %v18
  %v62 = vunpack.c.l.b16 %v19
  %v63 = vunpack.c.l.b16 %v20
  %v64 = vunpack.c.l.b16 %v21
  %v65 = vunpack.c.l.b16 %v22
  %v66 = vunpack.c.l.b16 %v23
  %v67 = vunpack.c.l.b16 %v24
  %v68 = vunpack.c.l.b16 %v25
  %v69 = vunpack.c.l.b16 %v26
  %v70 = vunpack.c.l.b16 %v27
  %v71 = vunpack.c.l.b16 %v28
  %v72 = vunpack.c.l.b16 %v29
  %v73 = vunpack.c.l.b16 %v30
  %v74 = vpack.c.b16 %v59, %v58
  %v75 = vpack.c.b16 %v61, %v60
  %v76 = vpack.c.b16 %v63, %v62
  %v77 = vpack.c.b16 %v65, %v64
  %v78 = vpack.c.b16 %v67, %v66
  %v79 = vpack.c.b16 %v69, %v68
  %v80 = vpack.c.b16 %v71, %v70
  %v81 = vpack.c.b16 %v73, %v72
  %v86 = vunpack.c.l.b16 %v31
  %v87 = vunpack.c.l.b16 %v32
  %v88 = vunpack.c.l.b16 %v33
  %v89 = vunpack.c.l.b16 %v34
  %v90 = vpack.c.b16 %v87, %v86
  %v91 = vpack.c.b16 %v89, %v88
  %vm94 = vcmask 261120
  %v96 = vsel %vm94, %v74, 0
  %v99 = vsel %vm94, %v75, 0
  %v102 = vsel %vm94, %v76, 0
  %v105 = vsel %vm94, %v77, 0
  %v108 = vsel %vm94, %v78, 0
  %v111 = vsel %vm94, %v79, 0
  %v114 = vsel %vm94, %v80, 0
  %v117 = vsel %vm94, %v81, 0
  %119 = vmatprep.subr.bf16.mxu0 0
  %120 = vmatpush1.bf16.msra.mxu0 0
  %121 = vmatprep.subr.bf16.mxu0 0
  %122 = vmatpush1.bf16.msra.mxu0 0
  %123 = vmatprep.subr.bf16.mxu0 0
  %124 = vmatpush1.bf16.msra.mxu0 0
  %125 = vmatprep.subr.bf16.mxu0 0
  %126 = vmatpush1.bf16.msra.mxu0 0
  %127 = vmatprep.subr.bf16.mxu0 0
  %128 = vmatpush1.bf16.msra.mxu0 0
  %129 = vmatprep.subr.bf16.mxu0 0
  %130 = vmatpush1.bf16.msra.mxu0 0
  %131 = vmatprep.subr.bf16.mxu0 0
  %132 = vmatpush1.bf16.msra.mxu0 %v91
  %133 = vmatprep.subr.bf16.mxu0 0
  %134 = vmatpush1.bf16.msra.mxu0 %v90
  %135 = vmatprep.subr.bf16.mxu0 0
  %136 = vmatpush2.bf16.msra.mxu0 0
  %137 = vmatprep.subr.bf16.mxu0 0
  %138 = vmatpush2.bf16.msra.mxu0 0
  %139 = vmatprep.subr.bf16.mxu0 0
  %140 = vmatpush2.bf16.msra.mxu0 0
  %141 = vmatprep.subr.bf16.mxu0 0
  %142 = vmatpush2.bf16.msra.mxu0 0
  %143 = vmatprep.subr.bf16.mxu0 0
  %144 = vmatpush2.bf16.msra.mxu0 0
  %145 = vmatprep.subr.bf16.mxu0 0
  %146 = vmatpush2.bf16.msra.mxu0 0
  %147 = vmatprep.subr.bf16.mxu0 0
  %148 = vmatpush2.bf16.msra.mxu0 0
  %149 = vmatprep.subr.bf16.mxu0 0
  %150 = vmatpush2.bf16.msra.mxu0 0
  %151 = vmatprep.mubr.bf16.mxu0 0
  %152 = vmatmul.mubr.bf16.gmra.mxu0 %v96
  %v153 = vpop.f32.mrf.mxu0
  %v154 = vadd.f32 %v40, %v153
  %v155 = vpop.f32.mrf.mxu0
  %v156 = vpop.f32.mrf.mxu0
  %v157 = vadd.f32 %v40, %v156
  %v158 = vpop.f32.mrf.mxu0
  %159 = vmatprep.mubr.bf16.mxu0 0
  %160 = vmatmul.mubr.bf16.gmra.mxu0 %v99
  %v161 = vpop.f32.mrf.mxu0
  %v162 = vadd.f32 %v40, %v161
  %v163 = vpop.f32.mrf.mxu0
  %v164 = vpop.f32.mrf.mxu0
  %v165 = vadd.f32 %v40, %v164
  %v166 = vpop.f32.mrf.mxu0
  %167 = vmatprep.mubr.bf16.mxu0 0
  %168 = vmatmul.mubr.bf16.gmra.mxu0 %v102
  %v169 = vpop.f32.mrf.mxu0
  %v170 = vadd.f32 %v40, %v169
  %v171 = vpop.f32.mrf.mxu0
  %v172 = vpop.f32.mrf.mxu0
  %v173 = vadd.f32 %v40, %v172
  %v174 = vpop.f32.mrf.mxu0
  %175 = vmatprep.mubr.bf16.mxu0 0
  %176 = vmatmul.mubr.bf16.gmra.mxu0 %v105
  %v177 = vpop.f32.mrf.mxu0
  %v178 = vadd.f32 %v40, %v177
  %v179 = vpop.f32.mrf.mxu0
  %v180 = vpop.f32.mrf.mxu0
  %v181 = vadd.f32 %v40, %v180
  %v182 = vpop.f32.mrf.mxu0
  %183 = vmatprep.mubr.bf16.mxu0 0
  %184 = vmatmul.mubr.bf16.gmra.mxu0 %v108
  %v185 = vpop.f32.mrf.mxu0
  %v186 = vadd.f32 %v40, %v185
  %v187 = vpop.f32.mrf.mxu0
  %v188 = vpop.f32.mrf.mxu0
  %v189 = vadd.f32 %v40, %v188
  %v190 = vpop.f32.mrf.mxu0
  %191 = vmatprep.mubr.bf16.mxu0 0
  %192 = vmatmul.mubr.bf16.gmra.mxu0 %v111
  %v193 = vpop.f32.mrf.mxu0
  %v194 = vadd.f32 %v40, %v193
  %v195 = vpop.f32.mrf.mxu0
  %v196 = vpop.f32.mrf.mxu0
  %v197 = vadd.f32 %v40, %v196
  %v198 = vpop.f32.mrf.mxu0
  %199 = vmatprep.mubr.bf16.mxu0 0
  %200 = vmatmul.mubr.bf16.gmra.mxu0 %v114
  %v201 = vpop.f32.mrf.mxu0
  %v202 = vadd.f32 %v40, %v201
  %v203 = vpop.f32.mrf.mxu0
  %v204 = vpop.f32.mrf.mxu0
  %v205 = vadd.f32 %v40, %v204
  %v206 = vpop.f32.mrf.mxu0
  %207 = vmatprep.mubr.bf16.mxu0 0
  %208 = vmatmul.mubr.bf16.gmra.mxu0 %v117
  %v209 = vpop.f32.mrf.mxu0
  %v210 = vadd.f32 %v40, %v209
  %v211 = vpop.f32.mrf.mxu0
  %v212 = vpop.f32.mrf.mxu0
  %v213 = vadd.f32 %v40, %v212
  %v214 = vpop.f32.mrf.mxu0
  %215 = vdwg.mxu0
  %vm216 = vcmask 523264
  %217 = vst.msk [vmem:[%s3] sm:$0xff] %vm216, %v154
  %218 = vst.msk [vmem:[%s3 + $0x8] sm:$0xff] %vm216, %v157
  %219 = vst.msk [vmem:[%s3 + $0x10] sm:$0xff] %vm216, %v162
  %220 = vst.msk [vmem:[%s3 + $0x18] sm:$0xff] %vm216, %v165
  %221 = vst.msk [vmem:[%s3 + $0x20] sm:$0xff] %vm216, %v170
  %222 = vst.msk [vmem:[%s3 + $0x28] sm:$0xff] %vm216, %v173
  %223 = vst.msk [vmem:[%s3 + $0x30] sm:$0xff] %vm216, %v178
  %224 = vst.msk [vmem:[%s3 + $0x38] sm:$0xff] %vm216, %v181
  %225 = vst.msk [vmem:[%s3 + $0x40] sm:$0xff] %vm216, %v186
  %226 = vst.msk [vmem:[%s3 + $0x48] sm:$0xff] %vm216, %v189
  %227 = vst.msk [vmem:[%s3 + $0x50] sm:$0xff] %vm216, %v194
  %228 = vst.msk [vmem:[%s3 + $0x58] sm:$0xff] %vm216, %v197
  %229 = vst.msk [vmem:[%s3 + $0x60] sm:$0xff] %vm216, %v202
  %230 = vst.msk [vmem:[%s3 + $0x68] sm:$0xff] %vm216, %v205
  %231 = vst.msk [vmem:[%s3 + $0x70] sm:$0xff] %vm216, %v210
  %232 = vst.msk [vmem:[%s3 + $0x78] sm:$0xff] %vm216, %v213
  // Predicated region
  $region14: #{resnet_forward.23} parent=0 // pred_check
    _
  $region15: #{resnet_forward.23} parent=0 // pred_check_branch
    %234 = sbr.rel (0) target = $region17
  $region16: #{resnet_forward.23} parent=0 // pred_region
    _
  $region17: #{resnet_forward.23} parent=0 // pred_fallthru
    _
  // Predicated region
  $region18: #{resnet_forward.23} parent=0 // pred_check
    _
  $region19: #{resnet_forward.23} parent=0 // pred_check_branch
    %236 = sbr.rel (0) target = $region21
  $region20: #{resnet_forward.23} parent=0 // pred_region
    _
  $region21: #{resnet_forward.23} parent=0 // pred_fallthru
    _

// kernel: resnet_forward.24
$region0: #{resnet_forward.24}
  #allocation0 [shape = 'u32[]', space=smem, size = 0x4, offset = 0x4, fixed_abs, tag = 'smem constant byte address 0x4 - core index']
  #allocation1 [shape = 'u32[144,128]{1,0:T(1,128)}', space=vmem, size = 0x12000, scoped, tag = 'internal scratch']
  %s0 = inlined_call_operand.vmem [shape: bf16[128,576], index: 0, kind: input, shape index: {}]
  %s1 = inlined_call_operand.vmem [shape: bf16[576,64], index: 1, kind: input, shape index: {}]
  %s2 = inlined_call_operand.vmem [shape: f32[128,64], index: 2, kind: output, shape index: {0}]
  %s3 = inlined_call_operand.vmem [shape: f32[2,64], index: 3, kind: output, shape index: {1}]
  %4 = xla_tuple %s2, %s3
  %s5 = sld [smem:[#allocation0]]
  $region30: #{resnet_forward.24} parent=0
    _
  %s7 = ssub.s32 1, %s5
  %s8 = scalar_select 0, %s7, %s5
  // Predicated region
  $region2: #{resnet_forward.24} parent=0 // pred_check
    _
  $region3: #{resnet_forward.24} parent=0 // pred_check_branch
    %10 = sbr.rel (0) target = $region5
  $region4: #{resnet_forward.24} parent=0 // pred_region
    _
  $region5: #{resnet_forward.24} parent=0 // pred_fallthru
    _
  // Predicated region
  $region6: #{resnet_forward.24} parent=0 // pred_check
    _
  $region7: #{resnet_forward.24} parent=0 // pred_check_branch
    %12 = sbr.rel (0) target = $region9
  $region8: #{resnet_forward.24} parent=0 // pred_region
    _
  $region9: #{resnet_forward.24} parent=0 // pred_fallthru
    _
  %v14 = vld [vmem:[%s0] sm:$0xff]
  %v15 = vld [vmem:[%s0 + $0x8] sm:$0xff]
  %v16 = vld [vmem:[%s0 + $0x10] sm:$0xf]
  %v17 = vld [vmem:[%s0 + $0x14] sm:$0xff]
  %v18 = vld [vmem:[%s0 + $0x1c] sm:$0xff]
  %v19 = vld [vmem:[%s0 + $0x24] sm:$0xf]
  %v20 = vld [vmem:[%s0 + $0x28] sm:$0xff]
  %v21 = vld [vmem:[%s0 + $0x30] sm:$0xff]
  %v22 = vld [vmem:[%s0 + $0x38] sm:$0xf]
  %v23 = vld [vmem:[%s0 + $0x3c] sm:$0xff]
  %v24 = vld [vmem:[%s0 + $0x44] sm:$0xff]
  %v25 = vld [vmem:[%s0 + $0x4c] sm:$0xf]
  %v26 = vld [vmem:[%s0 + $0x50] sm:$0xff]
  %v27 = vld [vmem:[%s0 + $0x58] sm:$0xff]
  %v28 = vld [vmem:[%s0 + $0x60] sm:$0xf]
  %v29 = vld [vmem:[%s0 + $0x64] sm:$0xff]
  %v30 = vld [vmem:[%s0 + $0x6c] sm:$0xff]
  %v31 = vld [vmem:[%s0 + $0x74] sm:$0xf]
  %v32 = vld [vmem:[%s0 + $0x78] sm:$0xff]
  %v33 = vld [vmem:[%s0 + $0x80] sm:$0xff]
  %v34 = vld [vmem:[%s0 + $0x88] sm:$0xf]
  %v35 = vld [vmem:[%s0 + $0x8c] sm:$0xff]
  %v36 = vld [vmem:[%s0 + $0x94] sm:$0xff]
  %v37 = vld [vmem:[%s0 + $0x9c] sm:$0xf]
  %v38 = vld [vmem:[%s0 + $0xa0] sm:$0xff]
  %v39 = vld [vmem:[%s0 + $0xa8] sm:$0xff]
  %v40 = vld [vmem:[%s0 + $0xb0] sm:$0xf]
  %v41 = vld [vmem:[%s0 + $0xb4] sm:$0xff]
  %v42 = vld [vmem:[%s0 + $0xbc] sm:$0xff]
  %v43 = vld [vmem:[%s0 + $0xc4] sm:$0xf]
  %v44 = vld [vmem:[%s0 + $0xc8] sm:$0xff]
  %v45 = vld [vmem:[%s0 + $0xd0] sm:$0xff]
  %v46 = vld [vmem:[%s0 + $0xd8] sm:$0xf]
  %v47 = vld [vmem:[%s0 + $0xdc] sm:$0xff]
  %v48 = vld [vmem:[%s0 + $0xe4] sm:$0xff]
  %v49 = vld [vmem:[%s0 + $0xec] sm:$0xf]
  %v50 = vld [vmem:[%s0 + $0xf0] sm:$0xff]
  %v51 = vld [vmem:[%s0 + $0xf8] sm:$0xff]
  %v52 = vld [vmem:[%s0 + $0x100] sm:$0xf]
  %v53 = vld [vmem:[%s0 + $0x104] sm:$0xff]
  %v54 = vld [vmem:[%s0 + $0x10c] sm:$0xff]
  %v55 = vld [vmem:[%s0 + $0x114] sm:$0xf]
  %v56 = vld [vmem:[%s0 + $0x118] sm:$0xff]
  %v57 = vld [vmem:[%s0 + $0x120] sm:$0xff]
  %v58 = vld [vmem:[%s0 + $0x128] sm:$0xf]
  %v59 = vld [vmem:[%s0 + $0x12c] sm:$0xff]
  %v60 = vld [vmem:[%s0 + $0x134] sm:$0xff]
  %v61 = vld [vmem:[%s0 + $0x13c] sm:$0xf]
  %v62 = vld [vmem:[%s1] sm:$0xf]
  %v63 = vld [vmem:[%s1 + $0x4] sm:$0xf]
  %v64 = vld [vmem:[%s1 + $0x8] sm:$0xf]
  %v65 = vld [vmem:[%s1 + $0xc] sm:$0xf]
  %v66 = vld [vmem:[%s1 + $0x10] sm:$0xf]
  %v67 = vld [vmem:[%s1 + $0x14] sm:$0xf]
  %v68 = vld [vmem:[%s1 + $0x18] sm:$0xf]
  %v69 = vld [vmem:[%s1 + $0x1c] sm:$0xf]
  %v70 = vld [vmem:[%s1 + $0x20] sm:$0xf]
  %v71 = vld [vmem:[%s1 + $0x24] sm:$0xf]
  %v72 = vld [vmem:[%s1 + $0x28] sm:$0xf]
  %v73 = vld [vmem:[%s1 + $0x2c] sm:$0xf]
  %v74 = vld [vmem:[%s1 + $0x30] sm:$0xf]
  %v75 = vld [vmem:[%s1 + $0x34] sm:$0xf]
  %v76 = vld [vmem:[%s1 + $0x38] sm:$0xf]
  %v77 = vld [vmem:[%s1 + $0x3c] sm:$0xf]
  %v78 = vld [vmem:[%s1 + $0x40] sm:$0xf]
  %v79 = vld [vmem:[%s1 + $0x44] sm:$0xf]
  %v80 = vld [vmem:[%s1 + $0x48] sm:$0xf]
  %v81 = vld [vmem:[%s1 + $0x4c] sm:$0xf]
  %v82 = vld [vmem:[%s1 + $0x50] sm:$0xf]
  %v83 = vld [vmem:[%s1 + $0x54] sm:$0xf]
  %v84 = vld [vmem:[%s1 + $0x58] sm:$0xf]
  %v85 = vld [vmem:[%s1 + $0x5c] sm:$0xf]
  %v86 = vld [vmem:[%s1 + $0x60] sm:$0xf]
  %v87 = vld [vmem:[%s1 + $0x64] sm:$0xf]
  %v88 = vld [vmem:[%s1 + $0x68] sm:$0xf]
  %v89 = vld [vmem:[%s1 + $0x6c] sm:$0xf]
  %v90 = vld [vmem:[%s1 + $0x70] sm:$0xf]
  %v91 = vld [vmem:[%s1 + $0x74] sm:$0xf]
  %v92 = vld [vmem:[%s1 + $0x78] sm:$0xf]
  %v93 = vld [vmem:[%s1 + $0x7c] sm:$0xf]
  %v94 = vld [vmem:[%s1 + $0x80] sm:$0xf]
  %v95 = vld [vmem:[%s1 + $0x84] sm:$0xf]
  %v96 = vld [vmem:[%s1 + $0x88] sm:$0xf]
  %v97 = vld [vmem:[%s1 + $0x8c] sm:$0xf]
  %v98 = vld [vmem:[%s1 + $0x90] sm:$0xf]
  %v99 = vld [vmem:[%s1 + $0x94] sm:$0xf]
  %v100 = vld [vmem:[%s1 + $0x98] sm:$0xf]
  %v101 = vld [vmem:[%s1 + $0x9c] sm:$0xf]
  %v102 = vld [vmem:[%s1 + $0xa0] sm:$0xf]
  %v103 = vld [vmem:[%s1 + $0xa4] sm:$0xf]
  %v104 = vld [vmem:[%s1 + $0xa8] sm:$0xf]
  %v105 = vld [vmem:[%s1 + $0xac] sm:$0xf]
  %v106 = vld [vmem:[%s1 + $0xb0] sm:$0xf]
  %v107 = vld [vmem:[%s1 + $0xb4] sm:$0xf]
  %v108 = vld [vmem:[%s1 + $0xb8] sm:$0xf]
  %v109 = vld [vmem:[%s1 + $0xbc] sm:$0xf]
  %v110 = vld [vmem:[%s1 + $0xc0] sm:$0xf]
  %v111 = vld [vmem:[%s1 + $0xc4] sm:$0xf]
  %v112 = vld [vmem:[%s1 + $0xc8] sm:$0xf]
  %v113 = vld [vmem:[%s1 + $0xcc] sm:$0xf]
  %v114 = vld [vmem:[%s1 + $0xd0] sm:$0xf]
  %v115 = vld [vmem:[%s1 + $0xd4] sm:$0xf]
  %v116 = vld [vmem:[%s1 + $0xd8] sm:$0xf]
  %v117 = vld [vmem:[%s1 + $0xdc] sm:$0xf]
  %v118 = vld [vmem:[%s1 + $0xe0] sm:$0xf]
  %v119 = vld [vmem:[%s1 + $0xe4] sm:$0xf]
  %v120 = vld [vmem:[%s1 + $0xe8] sm:$0xf]
  %v121 = vld [vmem:[%s1 + $0xec] sm:$0xf]
  %v122 = vld [vmem:[%s1 + $0xf0] sm:$0xf]
  %v123 = vld [vmem:[%s1 + $0xf4] sm:$0xf]
  %v124 = vld [vmem:[%s1 + $0xf8] sm:$0xf]
  %v125 = vld [vmem:[%s1 + $0xfc] sm:$0xf]
  %v126 = vld [vmem:[%s1 + $0x100] sm:$0xf]
  %v127 = vld [vmem:[%s1 + $0x104] sm:$0xf]
  %v128 = vld [vmem:[%s1 + $0x108] sm:$0xf]
  %v129 = vld [vmem:[%s1 + $0x10c] sm:$0xf]
  %v130 = vld [vmem:[%s1 + $0x110] sm:$0xf]
  %v131 = vld [vmem:[%s1 + $0x114] sm:$0xf]
  %v132 = vld [vmem:[%s1 + $0x118] sm:$0xf]
  %v133 = vld [vmem:[%s1 + $0x11c] sm:$0xf]
  %v182 = vunpack.c.l.b16 %v14
  %v183 = vunpack.c.h.b16 %v14
  %v184 = vunpack.c.l.b16 %v15
  %v185 = vunpack.c.h.b16 %v15
  %v186 = vunpack.c.l.b16 %v16
  %v187 = vunpack.c.l.b16 %v17
  %v188 = vunpack.c.h.b16 %v17
  %v189 = vunpack.c.l.b16 %v18
  %v190 = vunpack.c.h.b16 %v18
  %v191 = vunpack.c.l.b16 %v19
  %v192 = vunpack.c.l.b16 %v20
  %v193 = vunpack.c.h.b16 %v20
  %v194 = vunpack.c.l.b16 %v21
  %v195 = vunpack.c.h.b16 %v21
  %v196 = vunpack.c.l.b16 %v22
  %v197 = vunpack.c.l.b16 %v23
  %v198 = vunpack.c.h.b16 %v23
  %v199 = vunpack.c.l.b16 %v24
  %v200 = vunpack.c.h.b16 %v24
  %v201 = vunpack.c.l.b16 %v25
  %v202 = vunpack.c.l.b16 %v26
  %v203 = vunpack.c.h.b16 %v26
  %v204 = vunpack.c.l.b16 %v27
  %v205 = vunpack.c.h.b16 %v27
  %v206 = vunpack.c.l.b16 %v28
  %v207 = vunpack.c.l.b16 %v29
  %v208 = vunpack.c.h.b16 %v29
  %v209 = vunpack.c.l.b16 %v30
  %v210 = vunpack.c.h.b16 %v30
  %v211 = vunpack.c.l.b16 %v31
  %v212 = vunpack.c.l.b16 %v32
  %v213 = vunpack.c.h.b16 %v32
  %v214 = vunpack.c.l.b16 %v33
  %v215 = vunpack.c.h.b16 %v33
  %v216 = vunpack.c.l.b16 %v34
  %v217 = vunpack.c.l.b16 %v35
  %v218 = vunpack.c.h.b16 %v35
  %v219 = vunpack.c.l.b16 %v36
  %v220 = vunpack.c.h.b16 %v36
  %v221 = vunpack.c.l.b16 %v37
  %v222 = vunpack.c.l.b16 %v38
  %v223 = vunpack.c.h.b16 %v38
  %v224 = vunpack.c.l.b16 %v39
  %v225 = vunpack.c.h.b16 %v39
  %v226 = vunpack.c.l.b16 %v40
  %v227 = vunpack.c.l.b16 %v41
  %v228 = vunpack.c.h.b16 %v41
  %v229 = vunpack.c.l.b16 %v42
  %v230 = vunpack.c.h.b16 %v42
  %v231 = vunpack.c.l.b16 %v43
  %v232 = vunpack.c.l.b16 %v44
  %v233 = vunpack.c.h.b16 %v44
  %v234 = vunpack.c.l.b16 %v45
  %v235 = vunpack.c.h.b16 %v45
  %v236 = vunpack.c.l.b16 %v46
  %v237 = vunpack.c.l.b16 %v47
  %v238 = vunpack.c.h.b16 %v47
  %v239 = vunpack.c.l.b16 %v48
  %v240 = vunpack.c.h.b16 %v48
  %v241 = vunpack.c.l.b16 %v49
  %v242 = vunpack.c.l.b16 %v50
  %v243 = vunpack.c.h.b16 %v50
  %v244 = vunpack.c.l.b16 %v51
  %v245 = vunpack.c.h.b16 %v51
  %v246 = vunpack.c.l.b16 %v52
  %v247 = vunpack.c.l.b16 %v53
  %v248 = vunpack.c.h.b16 %v53
  %v249 = vunpack.c.l.b16 %v54
  %v250 = vunpack.c.h.b16 %v54
  %v251 = vunpack.c.l.b16 %v55
  %v252 = vunpack.c.l.b16 %v56
  %v253 = vunpack.c.h.b16 %v56
  %v254 = vunpack.c.l.b16 %v57
  %v255 = vunpack.c.h.b16 %v57
  %v256 = vunpack.c.l.b16 %v58
  %v257 = vunpack.c.l.b16 %v59
  %v258 = vunpack.c.h.b16 %v59
  %v259 = vunpack.c.l.b16 %v60
  %v260 = vunpack.c.h.b16 %v60
  %v261 = vunpack.c.l.b16 %v61
  %v262 = vpack.c.b16 %v187, %v182
  %v263 = vpack.c.b16 %v188, %v183
  %v264 = vpack.c.b16 %v189, %v184
  %v265 = vpack.c.b16 %v190, %v185
  %v266 = vpack.c.b16 %v191, %v186
  %v267 = vpack.c.b16 %v197, %v192
  %v268 = vpack.c.b16 %v198, %v193
  %v269 = vpack.c.b16 %v199, %v194
  %v270 = vpack.c.b16 %v200, %v195
  %v271 = vpack.c.b16 %v201, %v196
  %v272 = vpack.c.b16 %v207, %v202
  %v273 = vpack.c.b16 %v208, %v203
  %v274 = vpack.c.b16 %v209, %v204
  %v275 = vpack.c.b16 %v210, %v205
  %v276 = vpack.c.b16 %v211, %v206
  %v277 = vpack.c.b16 %v217, %v212
  %v278 = vpack.c.b16 %v218, %v213
  %v279 = vpack.c.b16 %v219, %v214
  %v280 = vpack.c.b16 %v220, %v215
  %v281 = vpack.c.b16 %v221, %v216
  %v282 = vpack.c.b16 %v227, %v222
  %v283 = vpack.c.b16 %v228, %v223
  %v284 = vpack.c.b16 %v229, %v224
  %v285 = vpack.c.b16 %v230, %v225
  %v286 = vpack.c.b16 %v231, %v226
  %v287 = vpack.c.b16 %v237, %v232
  %v288 = vpack.c.b16 %v238, %v233
  %v289 = vpack.c.b16 %v239, %v234
  %v290 = vpack.c.b16 %v240, %v235
  %v291 = vpack.c.b16 %v241, %v236
  %v292 = vpack.c.b16 %v247, %v242
  %v293 = vpack.c.b16 %v248, %v243
  %v294 = vpack.c.b16 %v249, %v244
  %v295 = vpack.c.b16 %v250, %v245
  %v296 = vpack.c.b16 %v251, %v246
  %v297 = vpack.c.b16 %v257, %v252
  %v298 = vpack.c.b16 %v258, %v253
  %v299 = vpack.c.b16 %v259, %v254
  %v300 = vpack.c.b16 %v260, %v255
  %v301 = vpack.c.b16 %v261, %v256
  %v406 = vunpack.c.l.b16 %v62
  %v407 = vunpack.c.l.b16 %v63
  %v408 = vunpack.c.l.b16 %v64
  %v409 = vunpack.c.l.b16 %v65
  %v410 = vunpack.c.l.b16 %v66
  %v411 = vunpack.c.l.b16 %v67
  %v412 = vunpack.c.l.b16 %v68
  %v413 = vunpack.c.l.b16 %v69
  %v414 = vunpack.c.l.b16 %v70
  %v415 = vunpack.c.l.b16 %v71
  %v416 = vunpack.c.l.b16 %v72
  %v417 = vunpack.c.l.b16 %v73
  %v418 = vunpack.c.l.b16 %v74
  %v419 = vunpack.c.l.b16 %v75
  %v420 = vunpack.c.l.b16 %v76
  %v421 = vunpack.c.l.b16 %v77
  %v422 = vunpack.c.l.b16 %v78
  %v423 = vunpack.c.l.b16 %v79
  %v424 = vunpack.c.l.b16 %v80
  %v425 = vunpack.c.l.b16 %v81
  %v426 = vunpack.c.l.b16 %v82
  %v427 = vunpack.c.l.b16 %v83
  %v428 = vunpack.c.l.b16 %v84
  %v429 = vunpack.c.l.b16 %v85
  %v430 = vunpack.c.l.b16 %v86
  %v431 = vunpack.c.l.b16 %v87
  %v432 = vunpack.c.l.b16 %v88
  %v433 = vunpack.c.l.b16 %v89
  %v434 = vunpack.c.l.b16 %v90
  %v435 = vunpack.c.l.b16 %v91
  %v436 = vunpack.c.l.b16 %v92
  %v437 = vunpack.c.l.b16 %v93
  %v438 = vunpack.c.l.b16 %v94
  %v439 = vunpack.c.l.b16 %v95
  %v440 = vunpack.c.l.b16 %v96
  %v441 = vunpack.c.l.b16 %v97
  %v442 = vunpack.c.l.b16 %v98
  %v443 = vunpack.c.l.b16 %v99
  %v444 = vunpack.c.l.b16 %v100
  %v445 = vunpack.c.l.b16 %v101
  %v446 = vunpack.c.l.b16 %v102
  %v447 = vunpack.c.l.b16 %v103
  %v448 = vunpack.c.l.b16 %v104
  %v449 = vunpack.c.l.b16 %v105
  %v450 = vunpack.c.l.b16 %v106
  %v451 = vunpack.c.l.b16 %v107
  %v452 = vunpack.c.l.b16 %v108
  %v453 = vunpack.c.l.b16 %v109
  %v454 = vunpack.c.l.b16 %v110
  %v455 = vunpack.c.l.b16 %v111
  %v456 = vunpack.c.l.b16 %v112
  %v457 = vunpack.c.l.b16 %v113
  %v458 = vunpack.c.l.b16 %v114
  %v459 = vunpack.c.l.b16 %v115
  %v460 = vunpack.c.l.b16 %v116
  %v461 = vunpack.c.l.b16 %v117
  %v462 = vunpack.c.l.b16 %v118
  %v463 = vunpack.c.l.b16 %v119
  %v464 = vunpack.c.l.b16 %v120
  %v465 = vunpack.c.l.b16 %v121
  %v466 = vunpack.c.l.b16 %v122
  %v467 = vunpack.c.l.b16 %v123
  %v468 = vunpack.c.l.b16 %v124
  %v469 = vunpack.c.l.b16 %v125
  %v470 = vunpack.c.l.b16 %v126
  %v471 = vunpack.c.l.b16 %v127
  %v472 = vunpack.c.l.b16 %v128
  %v473 = vunpack.c.l.b16 %v129
  %v474 = vunpack.c.l.b16 %v130
  %v475 = vunpack.c.l.b16 %v131
  %v476 = vunpack.c.l.b16 %v132
  %v477 = vunpack.c.l.b16 %v133
  %v478 = vpack.c.b16 %v407, %v406
  %v479 = vpack.c.b16 %v409, %v408
  %v480 = vpack.c.b16 %v411, %v410
  %v481 = vpack.c.b16 %v413, %v412
  %v482 = vpack.c.b16 %v415, %v414
  %v483 = vpack.c.b16 %v417, %v416
  %v484 = vpack.c.b16 %v419, %v418
  %v485 = vpack.c.b16 %v421, %v420
  %v486 = vpack.c.b16 %v423, %v422
  %v487 = vpack.c.b16 %v425, %v424
  %v488 = vpack.c.b16 %v427, %v426
  %v489 = vpack.c.b16 %v429, %v428
  %v490 = vpack.c.b16 %v431, %v430
  %v491 = vpack.c.b16 %v433, %v432
  %v492 = vpack.c.b16 %v435, %v434
  %v493 = vpack.c.b16 %v437, %v436
  %v494 = vpack.c.b16 %v439, %v438
  %v495 = vpack.c.b16 %v441, %v440
  %v496 = vpack.c.b16 %v443, %v442
  %v497 = vpack.c.b16 %v445, %v444
  %v498 = vpack.c.b16 %v447, %v446
  %v499 = vpack.c.b16 %v449, %v448
  %v500 = vpack.c.b16 %v451, %v450
  %v501 = vpack.c.b16 %v453, %v452
  %v502 = vpack.c.b16 %v455, %v454
  %v503 = vpack.c.b16 %v457, %v456
  %v504 = vpack.c.b16 %v459, %v458
  %v505 = vpack.c.b16 %v461, %v460
  %v506 = vpack.c.b16 %v463, %v462
  %v507 = vpack.c.b16 %v465, %v464
  %v508 = vpack.c.b16 %v467, %v466
  %v509 = vpack.c.b16 %v469, %v468
  %v510 = vpack.c.b16 %v471, %v470
  %v511 = vpack.c.b16 %v473, %v472
  %v512 = vpack.c.b16 %v475, %v474
  %v513 = vpack.c.b16 %v477, %v476
  %vm550 = vcmask 523264
  %v552 = vsel %vm550, %v266, 0
  %v555 = vsel %vm550, %v271, 0
  %v558 = vsel %vm550, %v276, 0
  %v561 = vsel %vm550, %v281, 0
  %v564 = vsel %vm550, %v286, 0
  %v567 = vsel %vm550, %v291, 0
  %v570 = vsel %vm550, %v296, 0
  %v573 = vsel %vm550, %v301, 0
  %575 = vmatprep.subr.bf16.mxu0 0
  %576 = vmatpush1.bf16.msra.mxu0 %v485
  %577 = vmatprep.subr.bf16.mxu0 0
  %578 = vmatpush1.bf16.msra.mxu0 %v484
  %579 = vmatprep.subr.bf16.mxu0 0
  %580 = vmatpush1.bf16.msra.mxu0 %v483
  %581 = vmatprep.subr.bf16.mxu0 0
  %582 = vmatpush1.bf16.msra.mxu0 %v482
  %583 = vmatprep.subr.bf16.mxu0 0
  %584 = vmatpush1.bf16.msra.mxu0 %v481
  %585 = vmatprep.subr.bf16.mxu0 0
  %586 = vmatpush1.bf16.msra.mxu0 %v480
  %587 = vmatprep.subr.bf16.mxu0 0
  %588 = vmatpush1.bf16.msra.mxu0 %v479
  %589 = vmatprep.subr.bf16.mxu0 0
  %590 = vmatpush1.bf16.msra.mxu0 %v478
  %591 = vmatprep.subr.bf16.mxu0 0
  %592 = vmatpush2.bf16.msra.mxu0 %v493
  %593 = vmatprep.subr.bf16.mxu0 0
  %594 = vmatpush2.bf16.msra.mxu0 %v492
  %595 = vmatprep.subr.bf16.mxu0 0
  %596 = vmatpush2.bf16.msra.mxu0 %v491
  %597 = vmatprep.subr.bf16.mxu0 0
  %598 = vmatpush2.bf16.msra.mxu0 %v490
  %599 = vmatprep.subr.bf16.mxu0 0
  %600 = vmatpush2.bf16.msra.mxu0 %v489
  %601 = vmatprep.subr.bf16.mxu0 0
  %602 = vmatpush2.bf16.msra.mxu0 %v488
  %603 = vmatprep.subr.bf16.mxu0 0
  %604 = vmatpush2.bf16.msra.mxu0 %v487
  %605 = vmatprep.subr.bf16.mxu0 0
  %606 = vmatpush2.bf16.msra.mxu0 %v486
  %607 = vmatprep.mubr.bf16.mxu0 %v263
  %608 = vmatmul.mubr.bf16.gmra.mxu0 %v262
  %v609 = vpop.f32.mrf.mxu0
  %v610 = vadd.f32 0.0, %v609
  %v611 = vpop.f32.mrf.mxu0
  %v612 = vpop.f32.mrf.mxu0
  %v613 = vadd.f32 0.0, %v612
  %v614 = vpop.f32.mrf.mxu0
  %615 = vmatprep.mubr.bf16.mxu0 %v268
  %616 = vmatmul.mubr.bf16.gmra.mxu0 %v267
  %v617 = vpop.f32.mrf.mxu0
  %v618 = vadd.f32 0.0, %v617
  %v619 = vpop.f32.mrf.mxu0
  %v620 = vpop.f32.mrf.mxu0
  %v621 = vadd.f32 0.0, %v620
  %v622 = vpop.f32.mrf.mxu0
  %623 = vmatprep.mubr.bf16.mxu0 %v273
  %624 = vmatmul.mubr.bf16.gmra.mxu0 %v272
  %v625 = vpop.f32.mrf.mxu0
  %v626 = vadd.f32 0.0, %v625
  %v627 = vpop.f32.mrf.mxu0
  %v628 = vpop.f32.mrf.mxu0
  %v629 = vadd.f32 0.0, %v628
  %v630 = vpop.f32.mrf.mxu0
  %631 = vmatprep.mubr.bf16.mxu0 %v278
  %632 = vmatmul.mubr.bf16.gmra.mxu0 %v277
  %v633 = vpop.f32.mrf.mxu0
  %v634 = vadd.f32 0.0, %v633
  %v635 = vpop.f32.mrf.mxu0
  %v636 = vpop.f32.mrf.mxu0
  %v637 = vadd.f32 0.0, %v636
  %v638 = vpop.f32.mrf.mxu0
  %639 = vmatprep.mubr.bf16.mxu0 %v283
  %640 = vmatmul.mubr.bf16.gmra.mxu0 %v282
  %v641 = vpop.f32.mrf.mxu0
  %v642 = vadd.f32 0.0, %v641
  %v643 = vpop.f32.mrf.mxu0
  %v644 = vpop.f32.mrf.mxu0
  %v645 = vadd.f32 0.0, %v644
  %v646 = vpop.f32.mrf.mxu0
  %647 = vmatprep.mubr.bf16.mxu0 %v288
  %648 = vmatmul.mubr.bf16.gmra.mxu0 %v287
  %v649 = vpop.f32.mrf.mxu0
  %v650 = vadd.f32 0.0, %v649
  %v651 = vpop.f32.mrf.mxu0
  %v652 = vpop.f32.mrf.mxu0
  %v653 = vadd.f32 0.0, %v652
  %v654 = vpop.f32.mrf.mxu0
  %655 = vmatprep.mubr.bf16.mxu0 %v293
  %656 = vmatmul.mubr.bf16.gmra.mxu0 %v292
  %v657 = vpop.f32.mrf.mxu0
  %v658 = vadd.f32 0.0, %v657
  %v659 = vpop.f32.mrf.mxu0
  %v660 = vpop.f32.mrf.mxu0
  %v661 = vadd.f32 0.0, %v660
  %v662 = vpop.f32.mrf.mxu0
  %663 = vmatprep.mubr.bf16.mxu0 %v298
  %664 = vmatmul.mubr.bf16.gmra.mxu0 %v297
  %v665 = vpop.f32.mrf.mxu0
  %v666 = vadd.f32 0.0, %v665
  %v667 = vpop.f32.mrf.mxu0
  %v668 = vpop.f32.mrf.mxu0
  %v669 = vadd.f32 0.0, %v668
  %v670 = vpop.f32.mrf.mxu0
  %671 = vdwg.mxu0
  %672 = vmatprep.subr.bf16.mxu0 0
  %673 = vmatpush1.bf16.msra.mxu0 %v501
  %674 = vmatprep.subr.bf16.mxu0 0
  %675 = vmatpush1.bf16.msra.mxu0 %v500
  %676 = vmatprep.subr.bf16.mxu0 0
  %677 = vmatpush1.bf16.msra.mxu0 %v499
  %678 = vmatprep.subr.bf16.mxu0 0
  %679 = vmatpush1.bf16.msra.mxu0 %v498
  %680 = vmatprep.subr.bf16.mxu0 0
  %681 = vmatpush1.bf16.msra.mxu0 %v497
  %682 = vmatprep.subr.bf16.mxu0 0
  %683 = vmatpush1.bf16.msra.mxu0 %v496
  %684 = vmatprep.subr.bf16.mxu0 0
  %685 = vmatpush1.bf16.msra.mxu0 %v495
  %686 = vmatprep.subr.bf16.mxu0 0
  %687 = vmatpush1.bf16.msra.mxu0 %v494
  %688 = vmatprep.subr.bf16.mxu0 0
  %689 = vmatpush2.bf16.msra.mxu0 %v509
  %690 = vmatprep.subr.bf16.mxu0 0
  %691 = vmatpush2.bf16.msra.mxu0 %v508
  %692 = vmatprep.subr.bf16.mxu0 0
  %693 = vmatpush2.bf16.msra.mxu0 %v507
  %694 = vmatprep.subr.bf16.mxu0 0
  %695 = vmatpush2.bf16.msra.mxu0 %v506
  %696 = vmatprep.subr.bf16.mxu0 0
  %697 = vmatpush2.bf16.msra.mxu0 %v505
  %698 = vmatprep.subr.bf16.mxu0 0
  %699 = vmatpush2.bf16.msra.mxu0 %v504
  %700 = vmatprep.subr.bf16.mxu0 0
  %701 = vmatpush2.bf16.msra.mxu0 %v503
  %702 = vmatprep.subr.bf16.mxu0 0
  %703 = vmatpush2.bf16.msra.mxu0 %v502
  %704 = vmatprep.mubr.bf16.mxu0 %v265
  %705 = vmatmul.mubr.bf16.gmra.mxu0 %v264
  %v706 = vpop.f32.mrf.mxu0
  %v707 = vadd.f32 %v610, %v706
  %v708 = vpop.f32.mrf.mxu0
  %v709 = vpop.f32.mrf.mxu0
  %v710 = vadd.f32 %v613, %v709
  %v711 = vpop.f32.mrf.mxu0
  %712 = vmatprep.mubr.bf16.mxu0 %v270
  %713 = vmatmul.mubr.bf16.gmra.mxu0 %v269
  %v714 = vpop.f32.mrf.mxu0
  %v715 = vadd.f32 %v618, %v714
  %v716 = vpop.f32.mrf.mxu0
  %v717 = vpop.f32.mrf.mxu0
  %v718 = vadd.f32 %v621, %v717
  %v719 = vpop.f32.mrf.mxu0
  %720 = vmatprep.mubr.bf16.mxu0 %v275
  %721 = vmatmul.mubr.bf16.gmra.mxu0 %v274
  %v722 = vpop.f32.mrf.mxu0
  %v723 = vadd.f32 %v626, %v722
  %v724 = vpop.f32.mrf.mxu0
  %v725 = vpop.f32.mrf.mxu0
  %v726 = vadd.f32 %v629, %v725
  %v727 = vpop.f32.mrf.mxu0
  %728 = vmatprep.mubr.bf16.mxu0 %v280
  %729 = vmatmul.mubr.bf16.gmra.mxu0 %v279
  %v730 = vpop.f32.mrf.mxu0
  %v731 = vadd.f32 %v634, %v730
  %v732 = vpop.f32.mrf.mxu0
  %v733 = vpop.f32.mrf.mxu0
  %v734 = vadd.f32 %v637, %v733
  %v735 = vpop.f32.mrf.mxu0
  %736 = vmatprep.mubr.bf16.mxu0 %v285
  %737 = vmatmul.mubr.bf16.gmra.mxu0 %v284
  %v738 = vpop.f32.mrf.mxu0
  %v739 = vadd.f32 %v642, %v738
  %v740 = vpop.f32.mrf.mxu0
  %v741 = vpop.f32.mrf.mxu0
  %v742 = vadd.f32 %v645, %v741
  %v743 = vpop.f32.mrf.mxu0
  %744 = vmatprep.mubr.bf16.mxu0 %v290
  %745 = vmatmul.mubr.bf16.gmra.mxu0 %v289
  %v746 = vpop.f32.mrf.mxu0
  %v747 = vadd.f32 %v650, %v746
  %v748 = vpop.f32.mrf.mxu0
  %v749 = vpop.f32.mrf.mxu0
  %v750 = vadd.f32 %v653, %v749
  %v751 = vpop.f32.mrf.mxu0
  %752 = vmatprep.mubr.bf16.mxu0 %v295
  %753 = vmatmul.mubr.bf16.gmra.mxu0 %v294
  %v754 = vpop.f32.mrf.mxu0
  %v755 = vadd.f32 %v658, %v754
  %v756 = vpop.f32.mrf.mxu0
  %v757 = vpop.f32.mrf.mxu0
  %v758 = vadd.f32 %v661, %v757
  %v759 = vpop.f32.mrf.mxu0
  %760 = vmatprep.mubr.bf16.mxu0 %v300
  %761 = vmatmul.mubr.bf16.gmra.mxu0 %v299
  %v762 = vpop.f32.mrf.mxu0
  %v763 = vadd.f32 %v666, %v762
  %v764 = vpop.f32.mrf.mxu0
  %v765 = vpop.f32.mrf.mxu0
  %v766 = vadd.f32 %v669, %v765
  %v767 = vpop.f32.mrf.mxu0
  %768 = vdwg.mxu0
  %769 = vmatprep.subr.bf16.mxu0 0
  %770 = vmatpush1.bf16.msra.mxu0 0
  %771 = vmatprep.subr.bf16.mxu0 0
  %772 = vmatpush1.bf16.msra.mxu0 0
  %773 = vmatprep.subr.bf16.mxu0 0
  %774 = vmatpush1.bf16.msra.mxu0 0
  %775 = vmatprep.subr.bf16.mxu0 0
  %776 = vmatpush1.bf16.msra.mxu0 0
  %777 = vmatprep.subr.bf16.mxu0 0
  %778 = vmatpush1.bf16.msra.mxu0 %v513
  %779 = vmatprep.subr.bf16.mxu0 0
  %780 = vmatpush1.bf16.msra.mxu0 %v512
  %781 = vmatprep.subr.bf16.mxu0 0
  %782 = vmatpush1.bf16.msra.mxu0 %v511
  %783 = vmatprep.subr.bf16.mxu0 0
  %784 = vmatpush1.bf16.msra.mxu0 %v510
  %785 = vmatprep.subr.bf16.mxu0 0
  %786 = vmatpush2.bf16.msra.mxu0 0
  %787 = vmatprep.subr.bf16.mxu0 0
  %788 = vmatpush2.bf16.msra.mxu0 0
  %789 = vmatprep.subr.bf16.mxu0 0
  %790 = vmatpush2.bf16.msra.mxu0 0
  %791 = vmatprep.subr.bf16.mxu0 0
  %792 = vmatpush2.bf16.msra.mxu0 0
  %793 = vmatprep.subr.bf16.mxu0 0
  %794 = vmatpush2.bf16.msra.mxu0 0
  %795 = vmatprep.subr.bf16.mxu0 0
  %796 = vmatpush2.bf16.msra.mxu0 0
  %797 = vmatprep.subr.bf16.mxu0 0
  %798 = vmatpush2.bf16.msra.mxu0 0
  %799 = vmatprep.subr.bf16.mxu0 0
  %800 = vmatpush2.bf16.msra.mxu0 0
  %801 = vmatprep.mubr.bf16.mxu0 0
  %802 = vmatmul.mubr.bf16.gmra.mxu0 %v552
  %v803 = vpop.f32.mrf.mxu0
  %v804 = vadd.f32 %v707, %v803
  %v805 = vpop.f32.mrf.mxu0
  %v806 = vpop.f32.mrf.mxu0
  %v807 = vadd.f32 %v710, %v806
  %v808 = vpop.f32.mrf.mxu0
  %809 = vmatprep.mubr.bf16.mxu0 0
  %810 = vmatmul.mubr.bf16.gmra.mxu0 %v555
  %v811 = vpop.f32.mrf.mxu0
  %v812 = vadd.f32 %v715, %v811
  %v813 = vpop.f32.mrf.mxu0
  %v814 = vpop.f32.mrf.mxu0
  %v815 = vadd.f32 %v718, %v814
  %v816 = vpop.f32.mrf.mxu0
  %817 = vmatprep.mubr.bf16.mxu0 0
  %818 = vmatmul.mubr.bf16.gmra.mxu0 %v558
  %v819 = vpop.f32.mrf.mxu0
  %v820 = vadd.f32 %v723, %v819
  %v821 = vpop.f32.mrf.mxu0
  %v822 = vpop.f32.mrf.mxu0
  %v823 = vadd.f32 %v726, %v822
  %v824 = vpop.f32.mrf.mxu0
  %825 = vmatprep.mubr.bf16.mxu0 0
  %826 = vmatmul.mubr.bf16.gmra.mxu0 %v561
  %v827 = vpop.f32.mrf.mxu0
  %v828 = vadd.f32 %v731, %v827
  %v829 = vpop.f32.mrf.mxu0
  %v830 = vpop.f32.mrf.mxu0
  %v831 = vadd.f32 %v734, %v830
  %v832 = vpop.f32.mrf.mxu0
  %833 = vmatprep.mubr.bf16.mxu0 0
  %834 = vmatmul.mubr.bf16.gmra.mxu0 %v564
  %v835 = vpop.f32.mrf.mxu0
  %v836 = vadd.f32 %v739, %v835
  %v837 = vpop.f32.mrf.mxu0
  %v838 = vpop.f32.mrf.mxu0
  %v839 = vadd.f32 %v742, %v838
  %v840 = vpop.f32.mrf.mxu0
  %841 = vmatprep.mubr.bf16.mxu0 0
  %842 = vmatmul.mubr.bf16.gmra.mxu0 %v567
  %v843 = vpop.f32.mrf.mxu0
  %v844 = vadd.f32 %v747, %v843
  %v845 = vpop.f32.mrf.mxu0
  %v846 = vpop.f32.mrf.mxu0
  %v847 = vadd.f32 %v750, %v846
  %v848 = vpop.f32.mrf.mxu0
  %849 = vmatprep.mubr.bf16.mxu0 0
  %850 = vmatmul.mubr.bf16.gmra.mxu0 %v570
  %v851 = vpop.f32.mrf.mxu0
  %v852 = vadd.f32 %v755, %v851
  %v853 = vpop.f32.mrf.mxu0
  %v854 = vpop.f32.mrf.mxu0
  %v855 = vadd.f32 %v758, %v854
  %v856 = vpop.f32.mrf.mxu0
  %857 = vmatprep.mubr.bf16.mxu0 0
  %858 = vmatmul.mubr.bf16.gmra.mxu0 %v573
  %v859 = vpop.f32.mrf.mxu0
  %v860 = vadd.f32 %v763, %v859
  %v861 = vpop.f32.mrf.mxu0
  %v862 = vpop.f32.mrf.mxu0
  %v863 = vadd.f32 %v766, %v862
  %v864 = vpop.f32.mrf.mxu0
  %865 = vdwg.mxu0
  %866 = vst.msk [vmem:[%s2] sm:$0xff] %vm550, %v804
  %867 = vst.msk [vmem:[%s2 + $0x8] sm:$0xff] %vm550, %v807
  %868 = vst.msk [vmem:[%s2 + $0x10] sm:$0xff] %vm550, %v812
  %869 = vst.msk [vmem:[%s2 + $0x18] sm:$0xff] %vm550, %v815
  %870 = vst.msk [vmem:[%s2 + $0x20] sm:$0xff] %vm550, %v820
  %871 = vst.msk [vmem:[%s2 + $0x28] sm:$0xff] %vm550, %v823
  %872 = vst.msk [vmem:[%s2 + $0x30] sm:$0xff] %vm550, %v828
  %873 = vst.msk [vmem:[%s2 + $0x38] sm:$0xff] %vm550, %v831
  %874 = vst.msk [vmem:[%s2 + $0x40] sm:$0xff] %vm550, %v836
  %875 = vst.msk [vmem:[%s2 + $0x48] sm:$0xff] %vm550, %v839
  %876 = vst.msk [vmem:[%s2 + $0x50] sm:$0xff] %vm550, %v844
  %877 = vst.msk [vmem:[%s2 + $0x58] sm:$0xff] %vm550, %v847
  %878 = vst.msk [vmem:[%s2 + $0x60] sm:$0xff] %vm550, %v852
  %879 = vst.msk [vmem:[%s2 + $0x68] sm:$0xff] %vm550, %v855
  %880 = vst.msk [vmem:[%s2 + $0x70] sm:$0xff] %vm550, %v860
  %881 = vst.msk [vmem:[%s2 + $0x78] sm:$0xff] %vm550, %v863
  %v882 = vsel %vm550, %v804, 0.0
  %v883 = vsel %vm550, %v807, 0.0
  %v884 = vadd.f32 %v882, %v883
  %v885 = vsel %vm550, %v812, 0.0
  %v886 = vadd.f32 %v884, %v885
  %v887 = vsel %vm550, %v815, 0.0
  %v888 = vadd.f32 %v886, %v887
  %v889 = vsel %vm550, %v820, 0.0
  %v890 = vadd.f32 %v888, %v889
  %v891 = vsel %vm550, %v823, 0.0
  %v892 = vadd.f32 %v890, %v891
  %v893 = vsel %vm550, %v828, 0.0
  %v894 = vadd.f32 %v892, %v893
  %v895 = vsel %vm550, %v831, 0.0
  %v896 = vadd.f32 %v894, %v895
  %v897 = vsel %vm550, %v836, 0.0
  %v898 = vadd.f32 %v896, %v897
  %v899 = vsel %vm550, %v839, 0.0
  %v900 = vadd.f32 %v898, %v899
  %v901 = vsel %vm550, %v844, 0.0
  %v902 = vadd.f32 %v900, %v901
  %v903 = vsel %vm550, %v847, 0.0
  %v904 = vadd.f32 %v902, %v903
  %v905 = vsel %vm550, %v852, 0.0
  %v906 = vadd.f32 %v904, %v905
  %v907 = vsel %vm550, %v855, 0.0
  %v908 = vadd.f32 %v906, %v907
  %v909 = vsel %vm550, %v860, 0.0
  %v910 = vadd.f32 %v908, %v909
  %v911 = vsel %vm550, %v863, 0.0
  %v912 = vadd.f32 %v910, %v911
  %v913 = vrot.slane %v912, 4
  %v914 = vadd.f32 %v912, %v913
  %v915 = vrot.slane %v914, 2
  %v916 = vadd.f32 %v914, %v915
  %v917 = vrot.slane %v916, 1
  %v918 = vadd.f32 %v916, %v917
  %v919 = vmul.f32 %v804, %v804
  %v920 = vmul.f32 %v807, %v807
  %v921 = vmul.f32 %v812, %v812
  %v922 = vmul.f32 %v815, %v815
  %v923 = vmul.f32 %v820, %v820
  %v924 = vmul.f32 %v823, %v823
  %v925 = vmul.f32 %v828, %v828
  %v926 = vmul.f32 %v831, %v831
  %v927 = vmul.f32 %v836, %v836
  %v928 = vmul.f32 %v839, %v839
  %v929 = vmul.f32 %v844, %v844
  %v930 = vmul.f32 %v847, %v847
  %v931 = vmul.f32 %v852, %v852
  %v932 = vmul.f32 %v855, %v855
  %v933 = vmul.f32 %v860, %v860
  %v934 = vmul.f32 %v863, %v863
  %v935 = vsel %vm550, %v919, 0.0
  %v936 = vsel %vm550, %v920, 0.0
  %v937 = vadd.f32 %v935, %v936
  %v938 = vsel %vm550, %v921, 0.0
  %v939 = vadd.f32 %v937, %v938
  %v940 = vsel %vm550, %v922, 0.0
  %v941 = vadd.f32 %v939, %v940
  %v942 = vsel %vm550, %v923, 0.0
  %v943 = vadd.f32 %v941, %v942
  %v944 = vsel %vm550, %v924, 0.0
  %v945 = vadd.f32 %v943, %v944
  %v946 = vsel %vm550, %v925, 0.0
  %v947 = vadd.f32 %v945, %v946
  %v948 = vsel %vm550, %v926, 0.0
  %v949 = vadd.f32 %v947, %v948
  %v950 = vsel %vm550, %v927, 0.0
  %v951 = vadd.f32 %v949, %v950
  %v952 = vsel %vm550, %v928, 0.0
  %v953 = vadd.f32 %v951, %v952
  %v954 = vsel %vm550, %v929, 0.0
  %v955 = vadd.f32 %v953, %v954
  %v956 = vsel %vm550, %v930, 0.0
  %v957 = vadd.f32 %v955, %v956
  %v958 = vsel %vm550, %v931, 0.0
  %v959 = vadd.f32 %v957, %v958
  %v960 = vsel %vm550, %v932, 0.0
  %v961 = vadd.f32 %v959, %v960
  %v962 = vsel %vm550, %v933, 0.0
  %v963 = vadd.f32 %v961, %v962
  %v964 = vsel %vm550, %v934, 0.0
  %v965 = vadd.f32 %v963, %v964
  %v966 = vrot.slane %v965, 4
  %v967 = vadd.f32 %v965, %v966
  %v968 = vrot.slane %v967, 2
  %v969 = vadd.f32 %v967, %v968
  %v970 = vrot.slane %v969, 1
  %v971 = vadd.f32 %v969, %v970
  %p972 = scmp.eq.s32.totalorder 0, 0
  // Predicated region
  $region10: #{resnet_forward.24} parent=0 // pred_check
    %p973 = pneg %p972
  $region11: #{resnet_forward.24} parent=0 // pred_check_branch
    %975 = sbr.rel (%p973) target = $region13
  $region12: #{resnet_forward.24} parent=0 // pred_region
    %vm976 = vcmask 517120
    %977 = vst.msk [vmem:[%s3] sm:$0x3] %vm976, 0.0
  $region13: #{resnet_forward.24} parent=0 // pred_fallthru
    _
  %v978 = vld [vmem:[%s3] sm:$0x3]
  %vm979 = vcmask 1040384
  %v980 = vsel %vm979, %v918, %v971
  %v981 = vadd.f32 %v978, %v980
  %vm982 = vcmask 517120
  %983 = vst.msk [vmem:[%s3] sm:$0x3] %vm982, %v981
  // Predicated region
  $region14: #{resnet_forward.24} parent=0 // pred_check
    _
  $region15: #{resnet_forward.24} parent=0 // pred_check_branch
    %985 = sbr.rel (0) target = $region17
  $region16: #{resnet_forward.24} parent=0 // pred_region
    _
  $region17: #{resnet_forward.24} parent=0 // pred_fallthru
    _
  // Predicated region
  $region18: #{resnet_forward.24} parent=0 // pred_check
    _
  $region19: #{resnet_forward.24} parent=0 // pred_check_branch
    %987 = sbr.rel (0) target = $region21
  $region20: #{resnet_forward.24} parent=0 // pred_region
    _
  $region21: #{resnet_forward.24} parent=0 // pred_fallthru
    _
  // Predicated region
  $region22: #{resnet_forward.24} parent=0 // pred_check
    _
  $region23: #{resnet_forward.24} parent=0 // pred_check_branch
    %989 = sbr.rel (0) target = $region25
  $region24: #{resnet_forward.24} parent=0 // pred_region
    _
  $region25: #{resnet_forward.24} parent=0 // pred_fallthru
    _
  // Predicated region
  $region26: #{resnet_forward.24} parent=0 // pred_check
    _
  $region27: #{resnet_forward.24} parent=0 // pred_check_branch
    %991 = sbr.rel (0) target = $region29
  $region28: #{resnet_forward.24} parent=0 // pred_region
    _
  $region29: #{resnet_forward.24} parent=0 // pred_fallthru
    _

// kernel: resnet_forward.27
$region0: #{resnet_forward.27}
  #allocation0 [shape = 'u32[]', space=smem, size = 0x4, offset = 0x4, fixed_abs, tag = 'smem constant byte address 0x4 - core index']
  #allocation1 [shape = 'u32[144,128]{1,0:T(1,128)}', space=vmem, size = 0x12000, scoped, tag = 'internal scratch']
  %s0 = inlined_call_operand.vmem [shape: f32[32,128], index: 0, kind: input, shape index: {}]
  %s1 = inlined_call_operand.vmem [shape: f32[2,128], index: 1, kind: input, shape index: {}]
  %s2 = inlined_call_operand.vmem [shape: f32[1,128], index: 2, kind: input, shape index: {}]
  %s3 = inlined_call_operand.vmem [shape: f32[1,128], index: 3, kind: input, shape index: {}]
  %s4 = inlined_call_operand.vmem [shape: f32[32,128], index: 4, kind: output, shape index: {}]
  %s5 = sld [smem:[#allocation0]]
  $region26: #{resnet_forward.27} parent=0
    _
  %s7 = ssub.s32 1, %s5
  %s8 = scalar_select 0, %s7, %s5
  // Predicated region
  $region2: #{resnet_forward.27} parent=0 // pred_check
    _
  $region3: #{resnet_forward.27} parent=0 // pred_check_branch
    %10 = sbr.rel (0) target = $region5
  $region4: #{resnet_forward.27} parent=0 // pred_region
    _
  $region5: #{resnet_forward.27} parent=0 // pred_fallthru
    _
  // Predicated region
  $region6: #{resnet_forward.27} parent=0 // pred_check
    _
  $region7: #{resnet_forward.27} parent=0 // pred_check_branch
    %12 = sbr.rel (0) target = $region9
  $region8: #{resnet_forward.27} parent=0 // pred_region
    _
  $region9: #{resnet_forward.27} parent=0 // pred_fallthru
    _
  // Predicated region
  $region10: #{resnet_forward.27} parent=0 // pred_check
    _
  $region11: #{resnet_forward.27} parent=0 // pred_check_branch
    %14 = sbr.rel (0) target = $region13
  $region12: #{resnet_forward.27} parent=0 // pred_region
    _
  $region13: #{resnet_forward.27} parent=0 // pred_fallthru
    _
  // Predicated region
  $region14: #{resnet_forward.27} parent=0 // pred_check
    _
  $region15: #{resnet_forward.27} parent=0 // pred_check_branch
    %16 = sbr.rel (0) target = $region17
  $region16: #{resnet_forward.27} parent=0 // pred_region
    _
  $region17: #{resnet_forward.27} parent=0 // pred_fallthru
    _
  %v17 = vld [vmem:[%s1] sm:$0x3]
  %v18 = vmul.f32 %v17, 0.03125
  %v19 = vmul.f32 %v18, %v18
  %v21 = vrot.slane %v19, 7
  %v23 = vsub.f32 %v18, %v21
  %v24 = vadd.f32 %v23, 1e-05
  %v25 = vrsqrt.pop %v24
  %v26 = vld [vmem:[%s2] sm:$0x1]
  %v29 = vunpack.c.l.s4 1966171168
  %v30 = vunpack.c.0.s8 %v29
  %v31 = vlaneseq
  %v32 = vshrl.u32 %v31, 7
  %v33 = vsub.s32 %v30, %v32
  %v34 = vrot.slane %v25, %v33
  %v35 = vcombine.high %v34, %v34
  %v37 = vunpack.c.l.s4 1966171168
  %v38 = vunpack.c.0.s8 %v37
  %v39 = vlaneseq
  %v40 = vshrl.u32 %v39, 7
  %v41 = vsub.s32 %v38, %v40
  %v42 = vrot.slane %v35, %v41
  %v44 = vmul.f32 %v26, %v42
  %v45 = vld [vmem:[%s3] sm:$0x1]
  %v46 = vmul.f32 %v18, %v44
  %v47 = vsub.f32 %v45, %v46
  %v48 = vld [vmem:[%s0] sm:$0xff]
  %v49 = vld [vmem:[%s0 + $0x8] sm:$0xff]
  %v50 = vld [vmem:[%s0 + $0x10] sm:$0xff]
  %v51 = vld [vmem:[%s0 + $0x18] sm:$0xff]
  %v53 = vlaneseq
  %v54 = vshrl.u32 %v53, 7
  %v55 = vsub.s32 0, %v54
  %v56 = vrot.slane %v44, %v55
  %v58 = vmul.f32 %v48, %v56
  %v59 = vmul.f32 %v49, %v56
  %v60 = vmul.f32 %v50, %v56
  %v61 = vmul.f32 %v51, %v56
  %v63 = vlaneseq
  %v64 = vshrl.u32 %v63, 7
  %v65 = vsub.s32 0, %v64
  %v66 = vrot.slane %v47, %v65
  %v68 = vadd.f32 %v58, %v66
  %v69 = vadd.f32 %v59, %v66
  %v70 = vadd.f32 %v60, %v66
  %v71 = vadd.f32 %v61, %v66
  %v72 = vmax.f32 %v68, 0.0
  %v73 = vmax.f32 %v69, 0.0
  %v74 = vmax.f32 %v70, 0.0
  %v75 = vmax.f32 %v71, 0.0
  %76 = vst [vmem:[%s4] sm:$0xff] %v72
  %77 = vst [vmem:[%s4 + $0x8] sm:$0xff] %v73
  %78 = vst [vmem:[%s4 + $0x10] sm:$0xff] %v74
  %79 = vst [vmem:[%s4 + $0x18] sm:$0xff] %v75
  // Predicated region
  $region18: #{resnet_forward.27} parent=0 // pred_check
    _
  $region19: #{resnet_forward.27} parent=0 // pred_check_branch
    %81 = sbr.rel (0) target = $region21
  $region20: #{resnet_forward.27} parent=0 // pred_region
    _
  $region21: #{resnet_forward.27} parent=0 // pred_fallthru
    _
  // Predicated region
  $region22: #{resnet_forward.27} parent=0 // pred_check
    _
  $region23: #{resnet_forward.27} parent=0 // pred_check_branch
    %83 = sbr.rel (0) target = $region25
  $region24: #{resnet_forward.27} parent=0 // pred_region
    _
  $region25: #{resnet_forward.27} parent=0 // pred_fallthru
    _

// kernel: resnet_forward.28
$region0: #{resnet_forward.28}
  #allocation0 [shape = 'u32[]', space=smem, size = 0x4, offset = 0x4, fixed_abs, tag = 'smem constant byte address 0x4 - core index']
  #allocation1 [shape = 'u32[144,128]{1,0:T(1,128)}', space=vmem, size = 0x12000, scoped, tag = 'internal scratch']
  %s0 = inlined_call_operand.vmem [shape: bf16[32,64], index: 0, kind: input, shape index: {}]
  %s1 = inlined_call_operand.vmem [shape: bf16[64,128], index: 1, kind: input, shape index: {}]
  %s2 = inlined_call_operand.vmem [shape: f32[1,128], index: 2, kind: input, shape index: {}]
  %s3 = inlined_call_operand.vmem [shape: f32[32,128], index: 3, kind: output, shape index: {}]
  %s4 = sld [smem:[#allocation0]]
  $region22: #{resnet_forward.28} parent=0
    _
  %s6 = ssub.s32 1, %s4
  %s7 = scalar_select 0, %s6, %s4
  // Predicated region
  $region2: #{resnet_forward.28} parent=0 // pred_check
    _
  $region3: #{resnet_forward.28} parent=0 // pred_check_branch
    %9 = sbr.rel (0) target = $region5
  $region4: #{resnet_forward.28} parent=0 // pred_region
    _
  $region5: #{resnet_forward.28} parent=0 // pred_fallthru
    _
  // Predicated region
  $region6: #{resnet_forward.28} parent=0 // pred_check
    _
  $region7: #{resnet_forward.28} parent=0 // pred_check_branch
    %11 = sbr.rel (0) target = $region9
  $region8: #{resnet_forward.28} parent=0 // pred_region
    _
  $region9: #{resnet_forward.28} parent=0 // pred_fallthru
    _
  // Predicated region
  $region10: #{resnet_forward.28} parent=0 // pred_check
    _
  $region11: #{resnet_forward.28} parent=0 // pred_check_branch
    %13 = sbr.rel (0) target = $region13
  $region12: #{resnet_forward.28} parent=0 // pred_region
    _
  $region13: #{resnet_forward.28} parent=0 // pred_fallthru
    _
  %v15 = vld [vmem:[%s0] sm:$0xf]
  %v16 = vld [vmem:[%s0 + $0x4] sm:$0xf]
  %v17 = vld [vmem:[%s0 + $0x8] sm:$0xf]
  %v18 = vld [vmem:[%s0 + $0xc] sm:$0xf]
  %v19 = vld [vmem:[%s1] sm:$0xf]
  %v20 = vld [vmem:[%s1 + $0x4] sm:$0xf]
  %v21 = vld [vmem:[%s1 + $0x8] sm:$0xf]
  %v22 = vld [vmem:[%s1 + $0xc] sm:$0xf]
  %v23 = vld [vmem:[%s1 + $0x10] sm:$0xf]
  %v24 = vld [vmem:[%s1 + $0x14] sm:$0xf]
  %v25 = vld [vmem:[%s1 + $0x18] sm:$0xf]
  %v26 = vld [vmem:[%s1 + $0x1c] sm:$0xf]
  %v27 = vld [vmem:[%s2] sm:$0x1]
  %v29 = vlaneseq
  %v30 = vshrl.u32 %v29, 7
  %v31 = vsub.s32 0, %v30
  %v32 = vrot.slane %v27, %v31
  %v38 = vunpack.c.l.b16 %v15
  %v39 = vunpack.c.l.b16 %v16
  %v40 = vunpack.c.l.b16 %v17
  %v41 = vunpack.c.l.b16 %v18
  %v42 = vpack.c.b16 %v39, %v38
  %v43 = vpack.c.b16 %v41, %v40
  %v52 = vunpack.c.l.b16 %v19
  %v53 = vunpack.c.l.b16 %v20
  %v54 = vunpack.c.l.b16 %v21
  %v55 = vunpack.c.l.b16 %v22
  %v56 = vunpack.c.l.b16 %v23
  %v57 = vunpack.c.l.b16 %v24
  %v58 = vunpack.c.l.b16 %v25
  %v59 = vunpack.c.l.b16 %v26
  %v60 = vpack.c.b16 %v53, %v52
  %v61 = vpack.c.b16 %v55, %v54
  %v62 = vpack.c.b16 %v57, %v56
  %v63 = vpack.c.b16 %v59, %v58
  %vm68 = vcmask 523264
  %v70 = vsel %vm68, %v42, 0
  %v73 = vsel %vm68, %v43, 0
  %75 = vmatprep.subr.bf16.mxu0 0
  %76 = vmatpush1.bf16.msra.mxu0 0
  %77 = vmatprep.subr.bf16.mxu0 0
  %78 = vmatpush1.bf16.msra.mxu0 0
  %79 = vmatprep.subr.bf16.mxu0 0
  %80 = vmatpush1.bf16.msra.mxu0 0
  %81 = vmatprep.subr.bf16.mxu0 0
  %82 = vmatpush1.bf16.msra.mxu0 0
  %83 = vmatprep.subr.bf16.mxu0 0
  %84 = vmatpush1.bf16.msra.mxu0 %v63
  %85 = vmatprep.subr.bf16.mxu0 0
  %86 = vmatpush1.bf16.msra.mxu0 %v62
  %87 = vmatprep.subr.bf16.mxu0 0
  %88 = vmatpush1.bf16.msra.mxu0 %v61
  %89 = vmatprep.subr.bf16.mxu0 0
  %90 = vmatpush1.bf16.msra.mxu0 %v60
  %91 = vmatprep.subr.bf16.mxu0 0
  %92 = vmatpush2.bf16.msra.mxu0 0
  %93 = vmatprep.subr.bf16.mxu0 0
  %94 = vmatpush2.bf16.msra.mxu0 0
  %95 = vmatprep.subr.bf16.mxu0 0
  %96 = vmatpush2.bf16.msra.mxu0 0
  %97 = vmatprep.subr.bf16.mxu0 0
  %98 = vmatpush2.bf16.msra.mxu0 0
  %99 = vmatprep.subr.bf16.mxu0 0
  %100 = vmatpush2.bf16.msra.mxu0 0
  %101 = vmatprep.subr.bf16.mxu0 0
  %102 = vmatpush2.bf16.msra.mxu0 0
  %103 = vmatprep.subr.bf16.mxu0 0
  %104 = vmatpush2.bf16.msra.mxu0 0
  %105 = vmatprep.subr.bf16.mxu0 0
  %106 = vmatpush2.bf16.msra.mxu0 0
  %107 = vmatprep.mubr.bf16.mxu0 0
  %108 = vmatmul.mubr.bf16.gmra.mxu0 %v70
  %v109 = vpop.f32.mrf.mxu0
  %v110 = vadd.f32 %v32, %v109
  %v111 = vpop.f32.mrf.mxu0
  %v112 = vpop.f32.mrf.mxu0
  %v113 = vadd.f32 %v32, %v112
  %v114 = vpop.f32.mrf.mxu0
  %115 = vmatprep.mubr.bf16.mxu0 0
  %116 = vmatmul.mubr.bf16.gmra.mxu0 %v73
  %v117 = vpop.f32.mrf.mxu0
  %v118 = vadd.f32 %v32, %v117
  %v119 = vpop.f32.mrf.mxu0
  %v120 = vpop.f32.mrf.mxu0
  %v121 = vadd.f32 %v32, %v120
  %v122 = vpop.f32.mrf.mxu0
  %123 = vdwg.mxu0
  %124 = vst [vmem:[%s3] sm:$0xff] %v110
  %125 = vst [vmem:[%s3 + $0x8] sm:$0xff] %v113
  %126 = vst [vmem:[%s3 + $0x10] sm:$0xff] %v118
  %127 = vst [vmem:[%s3 + $0x18] sm:$0xff] %v121
  // Predicated region
  $region14: #{resnet_forward.28} parent=0 // pred_check
    _
  $region15: #{resnet_forward.28} parent=0 // pred_check_branch
    %129 = sbr.rel (0) target = $region17
  $region16: #{resnet_forward.28} parent=0 // pred_region
    _
  $region17: #{resnet_forward.28} parent=0 // pred_fallthru
    _
  // Predicated region
  $region18: #{resnet_forward.28} parent=0 // pred_check
    _
  $region19: #{resnet_forward.28} parent=0 // pred_check_branch
    %131 = sbr.rel (0) target = $region21
  $region20: #{resnet_forward.28} parent=0 // pred_region
    _
  $region21: #{resnet_forward.28} parent=0 // pred_fallthru
    _

// kernel: resnet_forward.26
$region0: #{resnet_forward.26}
  #allocation0 [shape = 'u32[]', space=smem, size = 0x4, offset = 0x4, fixed_abs, tag = 'smem constant byte address 0x4 - core index']
  #allocation1 [shape = 'u32[144,128]{1,0:T(1,128)}', space=vmem, size = 0x12000, scoped, tag = 'internal scratch']
  %s0 = inlined_call_operand.vmem [shape: bf16[32,576], index: 0, kind: input, shape index: {}]
  %s1 = inlined_call_operand.vmem [shape: bf16[576,128], index: 1, kind: input, shape index: {}]
  %s2 = inlined_call_operand.vmem [shape: f32[32,128], index: 2, kind: output, shape index: {0}]
  %s3 = inlined_call_operand.vmem [shape: f32[2,128], index: 3, kind: output, shape index: {1}]
  %4 = xla_tuple %s2, %s3
  %s5 = sld [smem:[#allocation0]]
  $region30: #{resnet_forward.26} parent=0
    _
  %s7 = ssub.s32 1, %s5
  %s8 = scalar_select 0, %s7, %s5
  // Predicated region
  $region2: #{resnet_forward.26} parent=0 // pred_check
    _
  $region3: #{resnet_forward.26} parent=0 // pred_check_branch
    %10 = sbr.rel (0) target = $region5
  $region4: #{resnet_forward.26} parent=0 // pred_region
    _
  $region5: #{resnet_forward.26} parent=0 // pred_fallthru
    _
  // Predicated region
  $region6: #{resnet_forward.26} parent=0 // pred_check
    _
  $region7: #{resnet_forward.26} parent=0 // pred_check_branch
    %12 = sbr.rel (0) target = $region9
  $region8: #{resnet_forward.26} parent=0 // pred_region
    _
  $region9: #{resnet_forward.26} parent=0 // pred_fallthru
    _
  %v14 = vld [vmem:[%s0] sm:$0xff]
  %v15 = vld [vmem:[%s0 + $0x8] sm:$0xff]
  %v16 = vld [vmem:[%s0 + $0x10] sm:$0xf]
  %v17 = vld [vmem:[%s0 + $0x14] sm:$0xff]
  %v18 = vld [vmem:[%s0 + $0x1c] sm:$0xff]
  %v19 = vld [vmem:[%s0 + $0x24] sm:$0xf]
  %v20 = vld [vmem:[%s0 + $0x28] sm:$0xff]
  %v21 = vld [vmem:[%s0 + $0x30] sm:$0xff]
  %v22 = vld [vmem:[%s0 + $0x38] sm:$0xf]
  %v23 = vld [vmem:[%s0 + $0x3c] sm:$0xff]
  %v24 = vld [vmem:[%s0 + $0x44] sm:$0xff]
  %v25 = vld [vmem:[%s0 + $0x4c] sm:$0xf]
  %v26 = vld [vmem:[%s1] sm:$0xf]
  %v27 = vld [vmem:[%s1 + $0x4] sm:$0xf]
  %v28 = vld [vmem:[%s1 + $0x8] sm:$0xf]
  %v29 = vld [vmem:[%s1 + $0xc] sm:$0xf]
  %v30 = vld [vmem:[%s1 + $0x10] sm:$0xf]
  %v31 = vld [vmem:[%s1 + $0x14] sm:$0xf]
  %v32 = vld [vmem:[%s1 + $0x18] sm:$0xf]
  %v33 = vld [vmem:[%s1 + $0x1c] sm:$0xf]
  %v34 = vld [vmem:[%s1 + $0x20] sm:$0xf]
  %v35 = vld [vmem:[%s1 + $0x24] sm:$0xf]
  %v36 = vld [vmem:[%s1 + $0x28] sm:$0xf]
  %v37 = vld [vmem:[%s1 + $0x2c] sm:$0xf]
  %v38 = vld [vmem:[%s1 + $0x30] sm:$0xf]
  %v39 = vld [vmem:[%s1 + $0x34] sm:$0xf]
  %v40 = vld [vmem:[%s1 + $0x38] sm:$0xf]
  %v41 = vld [vmem:[%s1 + $0x3c] sm:$0xf]
  %v42 = vld [vmem:[%s1 + $0x40] sm:$0xf]
  %v43 = vld [vmem:[%s1 + $0x44] sm:$0xf]
  %v44 = vld [vmem:[%s1 + $0x48] sm:$0xf]
  %v45 = vld [vmem:[%s1 + $0x4c] sm:$0xf]
  %v46 = vld [vmem:[%s1 + $0x50] sm:$0xf]
  %v47 = vld [vmem:[%s1 + $0x54] sm:$0xf]
  %v48 = vld [vmem:[%s1 + $0x58] sm:$0xf]
  %v49 = vld [vmem:[%s1 + $0x5c] sm:$0xf]
  %v50 = vld [vmem:[%s1 + $0x60] sm:$0xf]
  %v51 = vld [vmem:[%s1 + $0x64] sm:$0xf]
  %v52 = vld [vmem:[%s1 + $0x68] sm:$0xf]
  %v53 = vld [vmem:[%s1 + $0x6c] sm:$0xf]
  %v54 = vld [vmem:[%s1 + $0x70] sm:$0xf]
  %v55 = vld [vmem:[%s1 + $0x74] sm:$0xf]
  %v56 = vld [vmem:[%s1 + $0x78] sm:$0xf]
  %v57 = vld [vmem:[%s1 + $0x7c] sm:$0xf]
  %v58 = vld [vmem:[%s1 + $0x80] sm:$0xf]
  %v59 = vld [vmem:[%s1 + $0x84] sm:$0xf]
  %v60 = vld [vmem:[%s1 + $0x88] sm:$0xf]
  %v61 = vld [vmem:[%s1 + $0x8c] sm:$0xf]
  %v62 = vld [vmem:[%s1 + $0x90] sm:$0xf]
  %v63 = vld [vmem:[%s1 + $0x94] sm:$0xf]
  %v64 = vld [vmem:[%s1 + $0x98] sm:$0xf]
  %v65 = vld [vmem:[%s1 + $0x9c] sm:$0xf]
  %v66 = vld [vmem:[%s1 + $0xa0] sm:$0xf]
  %v67 = vld [vmem:[%s1 + $0xa4] sm:$0xf]
  %v68 = vld [vmem:[%s1 + $0xa8] sm:$0xf]
  %v69 = vld [vmem:[%s1 + $0xac] sm:$0xf]
  %v70 = vld [vmem:[%s1 + $0xb0] sm:$0xf]
  %v71 = vld [vmem:[%s1 + $0xb4] sm:$0xf]
  %v72 = vld [vmem:[%s1 + $0xb8] sm:$0xf]
  %v73 = vld [vmem:[%s1 + $0xbc] sm:$0xf]
  %v74 = vld [vmem:[%s1 + $0xc0] sm:$0xf]
  %v75 = vld [vmem:[%s1 + $0xc4] sm:$0xf]
  %v76 = vld [vmem:[%s1 + $0xc8] sm:$0xf]
  %v77 = vld [vmem:[%s1 + $0xcc] sm:$0xf]
  %v78 = vld [vmem:[%s1 + $0xd0] sm:$0xf]
  %v79 = vld [vmem:[%s1 + $0xd4] sm:$0xf]
  %v80 = vld [vmem:[%s1 + $0xd8] sm:$0xf]
  %v81 = vld [vmem:[%s1 + $0xdc] sm:$0xf]
  %v82 = vld [vmem:[%s1 + $0xe0] sm:$0xf]
  %v83 = vld [vmem:[%s1 + $0xe4] sm:$0xf]
  %v84 = vld [vmem:[%s1 + $0xe8] sm:$0xf]
  %v85 = vld [vmem:[%s1 + $0xec] sm:$0xf]
  %v86 = vld [vmem:[%s1 + $0xf0] sm:$0xf]
  %v87 = vld [vmem:[%s1 + $0xf4] sm:$0xf]
  %v88 = vld [vmem:[%s1 + $0xf8] sm:$0xf]
  %v89 = vld [vmem:[%s1 + $0xfc] sm:$0xf]
  %v90 = vld [vmem:[%s1 + $0x100] sm:$0xf]
  %v91 = vld [vmem:[%s1 + $0x104] sm:$0xf]
  %v92 = vld [vmem:[%s1 + $0x108] sm:$0xf]
  %v93 = vld [vmem:[%s1 + $0x10c] sm:$0xf]
  %v94 = vld [vmem:[%s1 + $0x110] sm:$0xf]
  %v95 = vld [vmem:[%s1 + $0x114] sm:$0xf]
  %v96 = vld [vmem:[%s1 + $0x118] sm:$0xf]
  %v97 = vld [vmem:[%s1 + $0x11c] sm:$0xf]
  %v110 = vunpack.c.l.b16 %v14
  %v111 = vunpack.c.h.b16 %v14
  %v112 = vunpack.c.l.b16 %v15
  %v113 = vunpack.c.h.b16 %v15
  %v114 = vunpack.c.l.b16 %v16
  %v115 = vunpack.c.l.b16 %v17
  %v116 = vunpack.c.h.b16 %v17
  %v117 = vunpack.c.l.b16 %v18
  %v118 = vunpack.c.h.b16 %v18
  %v119 = vunpack.c.l.b16 %v19
  %v120 = vunpack.c.l.b16 %v20
  %v121 = vunpack.c.h.b16 %v20
  %v122 = vunpack.c.l.b16 %v21
  %v123 = vunpack.c.h.b16 %v21
  %v124 = vunpack.c.l.b16 %v22
  %v125 = vunpack.c.l.b16 %v23
  %v126 = vunpack.c.h.b16 %v23
  %v127 = vunpack.c.l.b16 %v24
  %v128 = vunpack.c.h.b16 %v24
  %v129 = vunpack.c.l.b16 %v25
  %v130 = vpack.c.b16 %v115, %v110
  %v131 = vpack.c.b16 %v116, %v111
  %v132 = vpack.c.b16 %v117, %v112
  %v133 = vpack.c.b16 %v118, %v113
  %v134 = vpack.c.b16 %v119, %v114
  %v135 = vpack.c.b16 %v125, %v120
  %v136 = vpack.c.b16 %v126, %v121
  %v137 = vpack.c.b16 %v127, %v122
  %v138 = vpack.c.b16 %v128, %v123
  %v139 = vpack.c.b16 %v129, %v124
  %v220 = vunpack.c.l.b16 %v26
  %v221 = vunpack.c.l.b16 %v27
  %v222 = vunpack.c.l.b16 %v28
  %v223 = vunpack.c.l.b16 %v29
  %v224 = vunpack.c.l.b16 %v30
  %v225 = vunpack.c.l.b16 %v31
  %v226 = vunpack.c.l.b16 %v32
  %v227 = vunpack.c.l.b16 %v33
  %v228 = vunpack.c.l.b16 %v34
  %v229 = vunpack.c.l.b16 %v35
  %v230 = vunpack.c.l.b16 %v36
  %v231 = vunpack.c.l.b16 %v37
  %v232 = vunpack.c.l.b16 %v38
  %v233 = vunpack.c.l.b16 %v39
  %v234 = vunpack.c.l.b16 %v40
  %v235 = vunpack.c.l.b16 %v41
  %v236 = vunpack.c.l.b16 %v42
  %v237 = vunpack.c.l.b16 %v43
  %v238 = vunpack.c.l.b16 %v44
  %v239 = vunpack.c.l.b16 %v45
  %v240 = vunpack.c.l.b16 %v46
  %v241 = vunpack.c.l.b16 %v47
  %v242 = vunpack.c.l.b16 %v48
  %v243 = vunpack.c.l.b16 %v49
  %v244 = vunpack.c.l.b16 %v50
  %v245 = vunpack.c.l.b16 %v51
  %v246 = vunpack.c.l.b16 %v52
  %v247 = vunpack.c.l.b16 %v53
  %v248 = vunpack.c.l.b16 %v54
  %v249 = vunpack.c.l.b16 %v55
  %v250 = vunpack.c.l.b16 %v56
  %v251 = vunpack.c.l.b16 %v57
  %v252 = vunpack.c.l.b16 %v58
  %v253 = vunpack.c.l.b16 %v59
  %v254 = vunpack.c.l.b16 %v60
  %v255 = vunpack.c.l.b16 %v61
  %v256 = vunpack.c.l.b16 %v62
  %v257 = vunpack.c.l.b16 %v63
  %v258 = vunpack.c.l.b16 %v64
  %v259 = vunpack.c.l.b16 %v65
  %v260 = vunpack.c.l.b16 %v66
  %v261 = vunpack.c.l.b16 %v67
  %v262 = vunpack.c.l.b16 %v68
  %v263 = vunpack.c.l.b16 %v69
  %v264 = vunpack.c.l.b16 %v70
  %v265 = vunpack.c.l.b16 %v71
  %v266 = vunpack.c.l.b16 %v72
  %v267 = vunpack.c.l.b16 %v73
  %v268 = vunpack.c.l.b16 %v74
  %v269 = vunpack.c.l.b16 %v75
  %v270 = vunpack.c.l.b16 %v76
  %v271 = vunpack.c.l.b16 %v77
  %v272 = vunpack.c.l.b16 %v78
  %v273 = vunpack.c.l.b16 %v79
  %v274 = vunpack.c.l.b16 %v80
  %v275 = vunpack.c.l.b16 %v81
  %v276 = vunpack.c.l.b16 %v82
  %v277 = vunpack.c.l.b16 %v83
  %v278 = vunpack.c.l.b16 %v84
  %v279 = vunpack.c.l.b16 %v85
  %v280 = vunpack.c.l.b16 %v86
  %v281 = vunpack.c.l.b16 %v87
  %v282 = vunpack.c.l.b16 %v88
  %v283 = vunpack.c.l.b16 %v89
  %v284 = vunpack.c.l.b16 %v90
  %v285 = vunpack.c.l.b16 %v91
  %v286 = vunpack.c.l.b16 %v92
  %v287 = vunpack.c.l.b16 %v93
  %v288 = vunpack.c.l.b16 %v94
  %v289 = vunpack.c.l.b16 %v95
  %v290 = vunpack.c.l.b16 %v96
  %v291 = vunpack.c.l.b16 %v97
  %v292 = vpack.c.b16 %v221, %v220
  %v293 = vpack.c.b16 %v223, %v222
  %v294 = vpack.c.b16 %v225, %v224
  %v295 = vpack.c.b16 %v227, %v226
  %v296 = vpack.c.b16 %v229, %v228
  %v297 = vpack.c.b16 %v231, %v230
  %v298 = vpack.c.b16 %v233, %v232
  %v299 = vpack.c.b16 %v235, %v234
  %v300 = vpack.c.b16 %v237, %v236
  %v301 = vpack.c.b16 %v239, %v238
  %v302 = vpack.c.b16 %v241, %v240
  %v303 = vpack.c.b16 %v243, %v242
  %v304 = vpack.c.b16 %v245, %v244
  %v305 = vpack.c.b16 %v247, %v246
  %v306 = vpack.c.b16 %v249, %v248
  %v307 = vpack.c.b16 %v251, %v250
  %v308 = vpack.c.b16 %v253, %v252
  %v309 = vpack.c.b16 %v255, %v254
  %v310 = vpack.c.b16 %v257, %v256
  %v311 = vpack.c.b16 %v259, %v258
  %v312 = vpack.c.b16 %v261, %v260
  %v313 = vpack.c.b16 %v263, %v262
  %v314 = vpack.c.b16 %v265, %v264
  %v315 = vpack.c.b16 %v267, %v266
  %v316 = vpack.c.b16 %v269, %v268
  %v317 = vpack.c.b16 %v271, %v270
  %v318 = vpack.c.b16 %v273, %v272
  %v319 = vpack.c.b16 %v275, %v274
  %v320 = vpack.c.b16 %v277, %v276
  %v321 = vpack.c.b16 %v279, %v278
  %v322 = vpack.c.b16 %v281, %v280
  %v323 = vpack.c.b16 %v283, %v282
  %v324 = vpack.c.b16 %v285, %v284
  %v325 = vpack.c.b16 %v287, %v286
  %v326 = vpack.c.b16 %v289, %v288
  %v327 = vpack.c.b16 %v291, %v290
  %vm364 = vcmask 523264
  %v366 = vsel %vm364, %v134, 0
  %v369 = vsel %vm364, %v139, 0
  %371 = vmatprep.subr.bf16.mxu0 0
  %372 = vmatpush1.bf16.msra.mxu0 %v299
  %373 = vmatprep.subr.bf16.mxu0 0
  %374 = vmatpush1.bf16.msra.mxu0 %v298
  %375 = vmatprep.subr.bf16.mxu0 0
  %376 = vmatpush1.bf16.msra.mxu0 %v297
  %377 = vmatprep.subr.bf16.mxu0 0
  %378 = vmatpush1.bf16.msra.mxu0 %v296
  %379 = vmatprep.subr.bf16.mxu0 0
  %380 = vmatpush1.bf16.msra.mxu0 %v295
  %381 = vmatprep.subr.bf16.mxu0 0
  %382 = vmatpush1.bf16.msra.mxu0 %v294
  %383 = vmatprep.subr.bf16.mxu0 0
  %384 = vmatpush1.bf16.msra.mxu0 %v293
  %385 = vmatprep.subr.bf16.mxu0 0
  %386 = vmatpush1.bf16.msra.mxu0 %v292
  %387 = vmatprep.subr.bf16.mxu0 0
  %388 = vmatpush2.bf16.msra.mxu0 %v307
  %389 = vmatprep.subr.bf16.mxu0 0
  %390 = vmatpush2.bf16.msra.mxu0 %v306
  %391 = vmatprep.subr.bf16.mxu0 0
  %392 = vmatpush2.bf16.msra.mxu0 %v305
  %393 = vmatprep.subr.bf16.mxu0 0
  %394 = vmatpush2.bf16.msra.mxu0 %v304
  %395 = vmatprep.subr.bf16.mxu0 0
  %396 = vmatpush2.bf16.msra.mxu0 %v303
  %397 = vmatprep.subr.bf16.mxu0 0
  %398 = vmatpush2.bf16.msra.mxu0 %v302
  %399 = vmatprep.subr.bf16.mxu0 0
  %400 = vmatpush2.bf16.msra.mxu0 %v301
  %401 = vmatprep.subr.bf16.mxu0 0
  %402 = vmatpush2.bf16.msra.mxu0 %v300
  %403 = vmatprep.mubr.bf16.mxu0 %v131
  %404 = vmatmul.mubr.bf16.gmra.mxu0 %v130
  %v405 = vpop.f32.mrf.mxu0
  %v406 = vadd.f32 0.0, %v405
  %v407 = vpop.f32.mrf.mxu0
  %v408 = vpop.f32.mrf.mxu0
  %v409 = vadd.f32 0.0, %v408
  %v410 = vpop.f32.mrf.mxu0
  %411 = vmatprep.mubr.bf16.mxu0 %v136
  %412 = vmatmul.mubr.bf16.gmra.mxu0 %v135
  %v413 = vpop.f32.mrf.mxu0
  %v414 = vadd.f32 0.0, %v413
  %v415 = vpop.f32.mrf.mxu0
  %v416 = vpop.f32.mrf.mxu0
  %v417 = vadd.f32 0.0, %v416
  %v418 = vpop.f32.mrf.mxu0
  %419 = vdwg.mxu0
  %420 = vmatprep.subr.bf16.mxu0 0
  %421 = vmatpush1.bf16.msra.mxu0 %v315
  %422 = vmatprep.subr.bf16.mxu0 0
  %423 = vmatpush1.bf16.msra.mxu0 %v314
  %424 = vmatprep.subr.bf16.mxu0 0
  %425 = vmatpush1.bf16.msra.mxu0 %v313
  %426 = vmatprep.subr.bf16.mxu0 0
  %427 = vmatpush1.bf16.msra.mxu0 %v312
  %428 = vmatprep.subr.bf16.mxu0 0
  %429 = vmatpush1.bf16.msra.mxu0 %v311
  %430 = vmatprep.subr.bf16.mxu0 0
  %431 = vmatpush1.bf16.msra.mxu0 %v310
  %432 = vmatprep.subr.bf16.mxu0 0
  %433 = vmatpush1.bf16.msra.mxu0 %v309
  %434 = vmatprep.subr.bf16.mxu0 0
  %435 = vmatpush1.bf16.msra.mxu0 %v308
  %436 = vmatprep.subr.bf16.mxu0 0
  %437 = vmatpush2.bf16.msra.mxu0 %v323
  %438 = vmatprep.subr.bf16.mxu0 0
  %439 = vmatpush2.bf16.msra.mxu0 %v322
  %440 = vmatprep.subr.bf16.mxu0 0
  %441 = vmatpush2.bf16.msra.mxu0 %v321
  %442 = vmatprep.subr.bf16.mxu0 0
  %443 = vmatpush2.bf16.msra.mxu0 %v320
  %444 = vmatprep.subr.bf16.mxu0 0
  %445 = vmatpush2.bf16.msra.mxu0 %v319
  %446 = vmatprep.subr.bf16.mxu0 0
  %447 = vmatpush2.bf16.msra.mxu0 %v318
  %448 = vmatprep.subr.bf16.mxu0 0
  %449 = vmatpush2.bf16.msra.mxu0 %v317
  %450 = vmatprep.subr.bf16.mxu0 0
  %451 = vmatpush2.bf16.msra.mxu0 %v316
  %452 = vmatprep.mubr.bf16.mxu0 %v133
  %453 = vmatmul.mubr.bf16.gmra.mxu0 %v132
  %v454 = vpop.f32.mrf.mxu0
  %v455 = vadd.f32 %v406, %v454
  %v456 = vpop.f32.mrf.mxu0
  %v457 = vpop.f32.mrf.mxu0
  %v458 = vadd.f32 %v409, %v457
  %v459 = vpop.f32.mrf.mxu0
  %460 = vmatprep.mubr.bf16.mxu0 %v138
  %461 = vmatmul.mubr.bf16.gmra.mxu0 %v137
  %v462 = vpop.f32.mrf.mxu0
  %v463 = vadd.f32 %v414, %v462
  %v464 = vpop.f32.mrf.mxu0
  %v465 = vpop.f32.mrf.mxu0
  %v466 = vadd.f32 %v417, %v465
  %v467 = vpop.f32.mrf.mxu0
  %468 = vdwg.mxu0
  %469 = vmatprep.subr.bf16.mxu0 0
  %470 = vmatpush1.bf16.msra.mxu0 0
  %471 = vmatprep.subr.bf16.mxu0 0
  %472 = vmatpush1.bf16.msra.mxu0 0
  %473 = vmatprep.subr.bf16.mxu0 0
  %474 = vmatpush1.bf16.msra.mxu0 0
  %475 = vmatprep.subr.bf16.mxu0 0
  %476 = vmatpush1.bf16.msra.mxu0 0
  %477 = vmatprep.subr.bf16.mxu0 0
  %478 = vmatpush1.bf16.msra.mxu0 %v327
  %479 = vmatprep.subr.bf16.mxu0 0
  %480 = vmatpush1.bf16.msra.mxu0 %v326
  %481 = vmatprep.subr.bf16.mxu0 0
  %482 = vmatpush1.bf16.msra.mxu0 %v325
  %483 = vmatprep.subr.bf16.mxu0 0
  %484 = vmatpush1.bf16.msra.mxu0 %v324
  %485 = vmatprep.subr.bf16.mxu0 0
  %486 = vmatpush2.bf16.msra.mxu0 0
  %487 = vmatprep.subr.bf16.mxu0 0
  %488 = vmatpush2.bf16.msra.mxu0 0
  %489 = vmatprep.subr.bf16.mxu0 0
  %490 = vmatpush2.bf16.msra.mxu0 0
  %491 = vmatprep.subr.bf16.mxu0 0
  %492 = vmatpush2.bf16.msra.mxu0 0
  %493 = vmatprep.subr.bf16.mxu0 0
  %494 = vmatpush2.bf16.msra.mxu0 0
  %495 = vmatprep.subr.bf16.mxu0 0
  %496 = vmatpush2.bf16.msra.mxu0 0
  %497 = vmatprep.subr.bf16.mxu0 0
  %498 = vmatpush2.bf16.msra.mxu0 0
  %499 = vmatprep.subr.bf16.mxu0 0
  %500 = vmatpush2.bf16.msra.mxu0 0
  %501 = vmatprep.mubr.bf16.mxu0 0
  %502 = vmatmul.mubr.bf16.gmra.mxu0 %v366
  %v503 = vpop.f32.mrf.mxu0
  %v504 = vadd.f32 %v455, %v503
  %v505 = vpop.f32.mrf.mxu0
  %v506 = vpop.f32.mrf.mxu0
  %v507 = vadd.f32 %v458, %v506
  %v508 = vpop.f32.mrf.mxu0
  %509 = vmatprep.mubr.bf16.mxu0 0
  %510 = vmatmul.mubr.bf16.gmra.mxu0 %v369
  %v511 = vpop.f32.mrf.mxu0
  %v512 = vadd.f32 %v463, %v511
  %v513 = vpop.f32.mrf.mxu0
  %v514 = vpop.f32.mrf.mxu0
  %v515 = vadd.f32 %v466, %v514
  %v516 = vpop.f32.mrf.mxu0
  %517 = vdwg.mxu0
  %518 = vst [vmem:[%s2] sm:$0xff] %v504
  %519 = vst [vmem:[%s2 + $0x8] sm:$0xff] %v507
  %520 = vst [vmem:[%s2 + $0x10] sm:$0xff] %v512
  %521 = vst [vmem:[%s2 + $0x18] sm:$0xff] %v515
  %v522 = vadd.f32 %v504, %v507
  %v523 = vadd.f32 %v522, %v512
  %v524 = vadd.f32 %v523, %v515
  %v525 = vrot.slane %v524, 4
  %v526 = vadd.f32 %v524, %v525
  %v527 = vrot.slane %v526, 2
  %v528 = vadd.f32 %v526, %v527
  %v529 = vrot.slane %v528, 1
  %v530 = vadd.f32 %v528, %v529
  %v531 = vmul.f32 %v504, %v504
  %v532 = vmul.f32 %v507, %v507
  %v533 = vmul.f32 %v512, %v512
  %v534 = vmul.f32 %v515, %v515
  %v535 = vadd.f32 %v531, %v532
  %v536 = vadd.f32 %v535, %v533
  %v537 = vadd.f32 %v536, %v534
  %v538 = vrot.slane %v537, 4
  %v539 = vadd.f32 %v537, %v538
  %v540 = vrot.slane %v539, 2
  %v541 = vadd.f32 %v539, %v540
  %v542 = vrot.slane %v541, 1
  %v543 = vadd.f32 %v541, %v542
  %p544 = scmp.eq.s32.totalorder 0, 0
  // Predicated region
  $region10: #{resnet_forward.26} parent=0 // pred_check
    %p545 = pneg %p544
  $region11: #{resnet_forward.26} parent=0 // pred_check_branch
    %547 = sbr.rel (%p545) target = $region13
  $region12: #{resnet_forward.26} parent=0 // pred_region
    %548 = vst [vmem:[%s3] sm:$0x3] 0.0
  $region13: #{resnet_forward.26} parent=0 // pred_fallthru
    _
  %v549 = vld [vmem:[%s3] sm:$0x3]
  %vm550 = vcmask 1040384
  %v551 = vsel %vm550, %v530, %v543
  %v552 = vadd.f32 %v549, %v551
  %553 = vst [vmem:[%s3] sm:$0x3] %v552
  // Predicated region
  $region14: #{resnet_forward.26} parent=0 // pred_check
    _
  $region15: #{resnet_forward.26} parent=0 // pred_check_branch
    %555 = sbr.rel (0) target = $region17
  $region16: #{resnet_forward.26} parent=0 // pred_region
    _
  $region17: #{resnet_forward.26} parent=0 // pred_fallthru
    _
  // Predicated region
  $region18: #{resnet_forward.26} parent=0 // pred_check
    _
  $region19: #{resnet_forward.26} parent=0 // pred_check_branch
    %557 = sbr.rel (0) target = $region21
  $region20: #{resnet_forward.26} parent=0 // pred_region
    _
  $region21: #{resnet_forward.26} parent=0 // pred_fallthru
    _
  // Predicated region
  $region22: #{resnet_forward.26} parent=0 // pred_check
    _
  $region23: #{resnet_forward.26} parent=0 // pred_check_branch
    %559 = sbr.rel (0) target = $region25
  $region24: #{resnet_forward.26} parent=0 // pred_region
    _
  $region25: #{resnet_forward.26} parent=0 // pred_fallthru
    _
  // Predicated region
  $region26: #{resnet_forward.26} parent=0 // pred_check
    _
  $region27: #{resnet_forward.26} parent=0 // pred_check_branch
    %561 = sbr.rel (0) target = $region29
  $region28: #{resnet_forward.26} parent=0 // pred_region
    _
  $region29: #{resnet_forward.26} parent=0 // pred_fallthru
    _

// kernel: resnet_forward.30
$region0: #{resnet_forward.30}
  #allocation0 [shape = 'u32[]', space=smem, size = 0x4, offset = 0x4, fixed_abs, tag = 'smem constant byte address 0x4 - core index']
  #allocation1 [shape = 'u32[144,128]{1,0:T(1,128)}', space=vmem, size = 0x12000, scoped, tag = 'internal scratch']
  %s0 = inlined_call_operand.vmem [shape: f32[32,128], index: 0, kind: input, shape index: {}]
  %s1 = inlined_call_operand.vmem [shape: f32[2,128], index: 1, kind: input, shape index: {}]
  %s2 = inlined_call_operand.vmem [shape: f32[1,128], index: 2, kind: input, shape index: {}]
  %s3 = inlined_call_operand.vmem [shape: f32[1,128], index: 3, kind: input, shape index: {}]
  %s4 = inlined_call_operand.vmem [shape: f32[32,128], index: 4, kind: input, shape index: {}]
  %s5 = inlined_call_operand.vmem [shape: f32[32,128], index: 5, kind: output, shape index: {}]
  %s6 = sld [smem:[#allocation0]]
  $region30: #{resnet_forward.30} parent=0
    _
  %s8 = ssub.s32 1, %s6
  %s9 = scalar_select 0, %s8, %s6
  // Predicated region
  $region2: #{resnet_forward.30} parent=0 // pred_check
    _
  $region3: #{resnet_forward.30} parent=0 // pred_check_branch
    %11 = sbr.rel (0) target = $region5
  $region4: #{resnet_forward.30} parent=0 // pred_region
    _
  $region5: #{resnet_forward.30} parent=0 // pred_fallthru
    _
  // Predicated region
  $region6: #{resnet_forward.30} parent=0 // pred_check
    _
  $region7: #{resnet_forward.30} parent=0 // pred_check_branch
    %13 = sbr.rel (0) target = $region9
  $region8: #{resnet_forward.30} parent=0 // pred_region
    _
  $region9: #{resnet_forward.30} parent=0 // pred_fallthru
    _
  // Predicated region
  $region10: #{resnet_forward.30} parent=0 // pred_check
    _
  $region11: #{resnet_forward.30} parent=0 // pred_check_branch
    %15 = sbr.rel (0) target = $region13
  $region12: #{resnet_forward.30} parent=0 // pred_region
    _
  $region13: #{resnet_forward.30} parent=0 // pred_fallthru
    _
  // Predicated region
  $region14: #{resnet_forward.30} parent=0 // pred_check
    _
  $region15: #{resnet_forward.30} parent=0 // pred_check_branch
    %17 = sbr.rel (0) target = $region17
  $region16: #{resnet_forward.30} parent=0 // pred_region
    _
  $region17: #{resnet_forward.30} parent=0 // pred_fallthru
    _
  // Predicated region
  $region18: #{resnet_forward.30} parent=0 // pred_check
    _
  $region19: #{resnet_forward.30} parent=0 // pred_check_branch
    %19 = sbr.rel (0) target = $region21
  $region20: #{resnet_forward.30} parent=0 // pred_region
    _
  $region21: #{resnet_forward.30} parent=0 // pred_fallthru
    _
  %v20 = vld [vmem:[%s1] sm:$0x3]
  %v21 = vmul.f32 %v20, 0.03125
  %v22 = vmul.f32 %v21, %v21
  %v24 = vrot.slane %v22, 7
  %v26 = vsub.f32 %v21, %v24
  %v27 = vadd.f32 %v26, 1e-05
  %v28 = vrsqrt.pop %v27
  %v29 = vld [vmem:[%s2] sm:$0x1]
  %v32 = vunpack.c.l.s4 1966171168
  %v33 = vunpack.c.0.s8 %v32
  %v34 = vlaneseq
  %v35 = vshrl.u32 %v34, 7
  %v36 = vsub.s32 %v33, %v35
  %v37 = vrot.slane %v28, %v36
  %v38 = vcombine.high %v37, %v37
  %v40 = vunpack.c.l.s4 1966171168
  %v41 = vunpack.c.0.s8 %v40
  %v42 = vlaneseq
  %v43 = vshrl.u32 %v42, 7
  %v44 = vsub.s32 %v41, %v43
  %v45 = vrot.slane %v38, %v44
  %v47 = vmul.f32 %v29, %v45
  %v48 = vld [vmem:[%s3] sm:$0x1]
  %v49 = vmul.f32 %v21, %v47
  %v50 = vsub.f32 %v48, %v49
  %v51 = vld [vmem:[%s0] sm:$0xff]
  %v52 = vld [vmem:[%s0 + $0x8] sm:$0xff]
  %v53 = vld [vmem:[%s0 + $0x10] sm:$0xff]
  %v54 = vld [vmem:[%s0 + $0x18] sm:$0xff]
  %v56 = vlaneseq
  %v57 = vshrl.u32 %v56, 7
  %v58 = vsub.s32 0, %v57
  %v59 = vrot.slane %v47, %v58
  %v61 = vmul.f32 %v51, %v59
  %v62 = vmul.f32 %v52, %v59
  %v63 = vmul.f32 %v53, %v59
  %v64 = vmul.f32 %v54, %v59
  %v66 = vlaneseq
  %v67 = vshrl.u32 %v66, 7
  %v68 = vsub.s32 0, %v67
  %v69 = vrot.slane %v50, %v68
  %v71 = vadd.f32 %v61, %v69
  %v72 = vadd.f32 %v62, %v69
  %v73 = vadd.f32 %v63, %v69
  %v74 = vadd.f32 %v64, %v69
  %v75 = vld [vmem:[%s4] sm:$0xff]
  %v76 = vld [vmem:[%s4 + $0x8] sm:$0xff]
  %v77 = vld [vmem:[%s4 + $0x10] sm:$0xff]
  %v78 = vld [vmem:[%s4 + $0x18] sm:$0xff]
  %v79 = vadd.f32 %v71, %v75
  %v80 = vadd.f32 %v72, %v76
  %v81 = vadd.f32 %v73, %v77
  %v82 = vadd.f32 %v74, %v78
  %v83 = vmax.f32 %v79, 0.0
  %v84 = vmax.f32 %v80, 0.0
  %v85 = vmax.f32 %v81, 0.0
  %v86 = vmax.f32 %v82, 0.0
  %87 = vst [vmem:[%s5] sm:$0xff] %v83
  %88 = vst [vmem:[%s5 + $0x8] sm:$0xff] %v84
  %89 = vst [vmem:[%s5 + $0x10] sm:$0xff] %v85
  %90 = vst [vmem:[%s5 + $0x18] sm:$0xff] %v86
  // Predicated region
  $region22: #{resnet_forward.30} parent=0 // pred_check
    _
  $region23: #{resnet_forward.30} parent=0 // pred_check_branch
    %92 = sbr.rel (0) target = $region25
  $region24: #{resnet_forward.30} parent=0 // pred_region
    _
  $region25: #{resnet_forward.30} parent=0 // pred_fallthru
    _
  // Predicated region
  $region26: #{resnet_forward.30} parent=0 // pred_check
    _
  $region27: #{resnet_forward.30} parent=0 // pred_check_branch
    %94 = sbr.rel (0) target = $region29
  $region28: #{resnet_forward.30} parent=0 // pred_region
    _
  $region29: #{resnet_forward.30} parent=0 // pred_fallthru
    _

// kernel: resnet_forward.29
$region0: #{resnet_forward.29}
  #allocation0 [shape = 'u32[]', space=smem, size = 0x4, offset = 0x4, fixed_abs, tag = 'smem constant byte address 0x4 - core index']
  #allocation1 [shape = 'u32[144,128]{1,0:T(1,128)}', space=vmem, size = 0x12000, scoped, tag = 'internal scratch']
  %s0 = inlined_call_operand.vmem [shape: bf16[32,1152], index: 0, kind: input, shape index: {}]
  %s1 = inlined_call_operand.vmem [shape: bf16[1152,128], index: 1, kind: input, shape index: {}]
  %s2 = inlined_call_operand.vmem [shape: f32[32,128], index: 2, kind: output, shape index: {0}]
  %s3 = inlined_call_operand.vmem [shape: f32[2,128], index: 3, kind: output, shape index: {1}]
  %4 = xla_tuple %s2, %s3
  %s5 = sld [smem:[#allocation0]]
  $region30: #{resnet_forward.29} parent=0
    _
  %s7 = ssub.s32 1, %s5
  %s8 = scalar_select 0, %s7, %s5
  // Predicated region
  $region2: #{resnet_forward.29} parent=0 // pred_check
    _
  $region3: #{resnet_forward.29} parent=0 // pred_check_branch
    %10 = sbr.rel (0) target = $region5
  $region4: #{resnet_forward.29} parent=0 // pred_region
    _
  $region5: #{resnet_forward.29} parent=0 // pred_fallthru
    _
  // Predicated region
  $region6: #{resnet_forward.29} parent=0 // pred_check
    _
  $region7: #{resnet_forward.29} parent=0 // pred_check_branch
    %12 = sbr.rel (0) target = $region9
  $region8: #{resnet_forward.29} parent=0 // pred_region
    _
  $region9: #{resnet_forward.29} parent=0 // pred_fallthru
    _
  %v14 = vld [vmem:[%s0] sm:$0xff]
  %v15 = vld [vmem:[%s0 + $0x8] sm:$0xff]
  %v16 = vld [vmem:[%s0 + $0x10] sm:$0xff]
  %v17 = vld [vmem:[%s0 + $0x18] sm:$0xff]
  %v18 = vld [vmem:[%s0 + $0x20] sm:$0xf]
  %v19 = vld [vmem:[%s0 + $0x24] sm:$0xff]
  %v20 = vld [vmem:[%s0 + $0x2c] sm:$0xff]
  %v21 = vld [vmem:[%s0 + $0x34] sm:$0xff]
  %v22 = vld [vmem:[%s0 + $0x3c] sm:$0xff]
  %v23 = vld [vmem:[%s0 + $0x44] sm:$0xf]
  %v24 = vld [vmem:[%s0 + $0x48] sm:$0xff]
  %v25 = vld [vmem:[%s0 + $0x50] sm:$0xff]
  %v26 = vld [vmem:[%s0 + $0x58] sm:$0xff]
  %v27 = vld [vmem:[%s0 + $0x60] sm:$0xff]
  %v28 = vld [vmem:[%s0 + $0x68] sm:$0xf]
  %v29 = vld [vmem:[%s0 + $0x6c] sm:$0xff]
  %v30 = vld [vmem:[%s0 + $0x74] sm:$0xff]
  %v31 = vld [vmem:[%s0 + $0x7c] sm:$0xff]
  %v32 = vld [vmem:[%s0 + $0x84] sm:$0xff]
  %v33 = vld [vmem:[%s0 + $0x8c] sm:$0xf]
  %v34 = vld [vmem:[%s1] sm:$0xf]
  %v35 = vld [vmem:[%s1 + $0x4] sm:$0xf]
  %v36 = vld [vmem:[%s1 + $0x8] sm:$0xf]
  %v37 = vld [vmem:[%s1 + $0xc] sm:$0xf]
  %v38 = vld [vmem:[%s1 + $0x10] sm:$0xf]
  %v39 = vld [vmem:[%s1 + $0x14] sm:$0xf]
  %v40 = vld [vmem:[%s1 + $0x18] sm:$0xf]
  %v41 = vld [vmem:[%s1 + $0x1c] sm:$0xf]
  %v42 = vld [vmem:[%s1 + $0x20] sm:$0xf]
  %v43 = vld [vmem:[%s1 + $0x24] sm:$0xf]
  %v44 = vld [vmem:[%s1 + $0x28] sm:$0xf]
  %v45 = vld [vmem:[%s1 + $0x2c] sm:$0xf]
  %v46 = vld [vmem:[%s1 + $0x30] sm:$0xf]
  %v47 = vld [vmem:[%s1 + $0x34] sm:$0xf]
  %v48 = vld [vmem:[%s1 + $0x38] sm:$0xf]
  %v49 = vld [vmem:[%s1 + $0x3c] sm:$0xf]
  %v50 = vld [vmem:[%s1 + $0x40] sm:$0xf]
  %v51 = vld [vmem:[%s1 + $0x44] sm:$0xf]
  %v52 = vld [vmem:[%s1 + $0x48] sm:$0xf]
  %v53 = vld [vmem:[%s1 + $0x4c] sm:$0xf]
  %v54 = vld [vmem:[%s1 + $0x50] sm:$0xf]
  %v55 = vld [vmem:[%s1 + $0x54] sm:$0xf]
  %v56 = vld [vmem:[%s1 + $0x58] sm:$0xf]
  %v57 = vld [vmem:[%s1 + $0x5c] sm:$0xf]
  %v58 = vld [vmem:[%s1 + $0x60] sm:$0xf]
  %v59 = vld [vmem:[%s1 + $0x64] sm:$0xf]
  %v60 = vld [vmem:[%s1 + $0x68] sm:$0xf]
  %v61 = vld [vmem:[%s1 + $0x6c] sm:$0xf]
  %v62 = vld [vmem:[%s1 + $0x70] sm:$0xf]
  %v63 = vld [vmem:[%s1 + $0x74] sm:$0xf]
  %v64 = vld [vmem:[%s1 + $0x78] sm:$0xf]
  %v65 = vld [vmem:[%s1 + $0x7c] sm:$0xf]
  %v66 = vld [vmem:[%s1 + $0x80] sm:$0xf]
  %v67 = vld [vmem:[%s1 + $0x84] sm:$0xf]
  %v68 = vld [vmem:[%s1 + $0x88] sm:$0xf]
  %v69 = vld [vmem:[%s1 + $0x8c] sm:$0xf]
  %v70 = vld [vmem:[%s1 + $0x90] sm:$0xf]
  %v71 = vld [vmem:[%s1 + $0x94] sm:$0xf]
  %v72 = vld [vmem:[%s1 + $0x98] sm:$0xf]
  %v73 = vld [vmem:[%s1 + $0x9c] sm:$0xf]
  %v74 = vld [vmem:[%s1 + $0xa0] sm:$0xf]
  %v75 = vld [vmem:[%s1 + $0xa4] sm:$0xf]
  %v76 = vld [vmem:[%s1 + $0xa8] sm:$0xf]
  %v77 = vld [vmem:[%s1 + $0xac] sm:$0xf]
  %v78 = vld [vmem:[%s1 + $0xb0] sm:$0xf]
  %v79 = vld [vmem:[%s1 + $0xb4] sm:$0xf]
  %v80 = vld [vmem:[%s1 + $0xb8] sm:$0xf]
  %v81 = vld [vmem:[%s1 + $0xbc] sm:$0xf]
  %v82 = vld [vmem:[%s1 + $0xc0] sm:$0xf]
  %v83 = vld [vmem:[%s1 + $0xc4] sm:$0xf]
  %v84 = vld [vmem:[%s1 + $0xc8] sm:$0xf]
  %v85 = vld [vmem:[%s1 + $0xcc] sm:$0xf]
  %v86 = vld [vmem:[%s1 + $0xd0] sm:$0xf]
  %v87 = vld [vmem:[%s1 + $0xd4] sm:$0xf]
  %v88 = vld [vmem:[%s1 + $0xd8] sm:$0xf]
  %v89 = vld [vmem:[%s1 + $0xdc] sm:$0xf]
  %v90 = vld [vmem:[%s1 + $0xe0] sm:$0xf]
  %v91 = vld [vmem:[%s1 + $0xe4] sm:$0xf]
  %v92 = vld [vmem:[%s1 + $0xe8] sm:$0xf]
  %v93 = vld [vmem:[%s1 + $0xec] sm:$0xf]
  %v94 = vld [vmem:[%s1 + $0xf0] sm:$0xf]
  %v95 = vld [vmem:[%s1 + $0xf4] sm:$0xf]
  %v96 = vld [vmem:[%s1 + $0xf8] sm:$0xf]
  %v97 = vld [vmem:[%s1 + $0xfc] sm:$0xf]
  %v98 = vld [vmem:[%s1 + $0x100] sm:$0xf]
  %v99 = vld [vmem:[%s1 + $0x104] sm:$0xf]
  %v100 = vld [vmem:[%s1 + $0x108] sm:$0xf]
  %v101 = vld [vmem:[%s1 + $0x10c] sm:$0xf]
  %v102 = vld [vmem:[%s1 + $0x110] sm:$0xf]
  %v103 = vld [vmem:[%s1 + $0x114] sm:$0xf]
  %v104 = vld [vmem:[%s1 + $0x118] sm:$0xf]
  %v105 = vld [vmem:[%s1 + $0x11c] sm:$0xf]
  %v106 = vld [vmem:[%s1 + $0x120] sm:$0xf]
  %v107 = vld [vmem:[%s1 + $0x124] sm:$0xf]
  %v108 = vld [vmem:[%s1 + $0x128] sm:$0xf]
  %v109 = vld [vmem:[%s1 + $0x12c] sm:$0xf]
  %v110 = vld [vmem:[%s1 + $0x130] sm:$0xf]
  %v111 = vld [vmem:[%s1 + $0x134] sm:$0xf]
  %v112 = vld [vmem:[%s1 + $0x138] sm:$0xf]
  %v113 = vld [vmem:[%s1 + $0x13c] sm:$0xf]
  %v114 = vld [vmem:[%s1 + $0x140] sm:$0xf]
  %v115 = vld [vmem:[%s1 + $0x144] sm:$0xf]
  %v116 = vld [vmem:[%s1 + $0x148] sm:$0xf]
  %v117 = vld [vmem:[%s1 + $0x14c] sm:$0xf]
  %v118 = vld [vmem:[%s1 + $0x150] sm:$0xf]
  %v119 = vld [vmem:[%s1 + $0x154] sm:$0xf]
  %v120 = vld [vmem:[%s1 + $0x158] sm:$0xf]
  %v121 = vld [vmem:[%s1 + $0x15c] sm:$0xf]
  %v122 = vld [vmem:[%s1 + $0x160] sm:$0xf]
  %v123 = vld [vmem:[%s1 + $0x164] sm:$0xf]
  %v124 = vld [vmem:[%s1 + $0x168] sm:$0xf]
  %v125 = vld [vmem:[%s1 + $0x16c] sm:$0xf]
  %v126 = vld [vmem:[%s1 + $0x170] sm:$0xf]
  %v127 = vld [vmem:[%s1 + $0x174] sm:$0xf]
  %v128 = vld [vmem:[%s1 + $0x178] sm:$0xf]
  %v129 = vld [vmem:[%s1 + $0x17c] sm:$0xf]
  %v130 = vld [vmem:[%s1 + $0x180] sm:$0xf]
  %v131 = vld [vmem:[%s1 + $0x184] sm:$0xf]
  %v132 = vld [vmem:[%s1 + $0x188] sm:$0xf]
  %v133 = vld [vmem:[%s1 + $0x18c] sm:$0xf]
  %v134 = vld [vmem:[%s1 + $0x190] sm:$0xf]
  %v135 = vld [vmem:[%s1 + $0x194] sm:$0xf]
  %v136 = vld [vmem:[%s1 + $0x198] sm:$0xf]
  %v137 = vld [vmem:[%s1 + $0x19c] sm:$0xf]
  %v138 = vld [vmem:[%s1 + $0x1a0] sm:$0xf]
  %v139 = vld [vmem:[%s1 + $0x1a4] sm:$0xf]
  %v140 = vld [vmem:[%s1 + $0x1a8] sm:$0xf]
  %v141 = vld [vmem:[%s1 + $0x1ac] sm:$0xf]
  %v142 = vld [vmem:[%s1 + $0x1b0] sm:$0xf]
  %v143 = vld [vmem:[%s1 + $0x1b4] sm:$0xf]
  %v144 = vld [vmem:[%s1 + $0x1b8] sm:$0xf]
  %v145 = vld [vmem:[%s1 + $0x1bc] sm:$0xf]
  %v146 = vld [vmem:[%s1 + $0x1c0] sm:$0xf]
  %v147 = vld [vmem:[%s1 + $0x1c4] sm:$0xf]
  %v148 = vld [vmem:[%s1 + $0x1c8] sm:$0xf]
  %v149 = vld [vmem:[%s1 + $0x1cc] sm:$0xf]
  %v150 = vld [vmem:[%s1 + $0x1d0] sm:$0xf]
  %v151 = vld [vmem:[%s1 + $0x1d4] sm:$0xf]
  %v152 = vld [vmem:[%s1 + $0x1d8] sm:$0xf]
  %v153 = vld [vmem:[%s1 + $0x1dc] sm:$0xf]
  %v154 = vld [vmem:[%s1 + $0x1e0] sm:$0xf]
  %v155 = vld [vmem:[%s1 + $0x1e4] sm:$0xf]
  %v156 = vld [vmem:[%s1 + $0x1e8] sm:$0xf]
  %v157 = vld [vmem:[%s1 + $0x1ec] sm:$0xf]
  %v158 = vld [vmem:[%s1 + $0x1f0] sm:$0xf]
  %v159 = vld [vmem:[%s1 + $0x1f4] sm:$0xf]
  %v160 = vld [vmem:[%s1 + $0x1f8] sm:$0xf]
  %v161 = vld [vmem:[%s1 + $0x1fc] sm:$0xf]
  %v162 = vld [vmem:[%s1 + $0x200] sm:$0xf]
  %v163 = vld [vmem:[%s1 + $0x204] sm:$0xf]
  %v164 = vld [vmem:[%s1 + $0x208] sm:$0xf]
  %v165 = vld [vmem:[%s1 + $0x20c] sm:$0xf]
  %v166 = vld [vmem:[%s1 + $0x210] sm:$0xf]
  %v167 = vld [vmem:[%s1 + $0x214] sm:$0xf]
  %v168 = vld [vmem:[%s1 + $0x218] sm:$0xf]
  %v169 = vld [vmem:[%s1 + $0x21c] sm:$0xf]
  %v170 = vld [vmem:[%s1 + $0x220] sm:$0xf]
  %v171 = vld [vmem:[%s1 + $0x224] sm:$0xf]
  %v172 = vld [vmem:[%s1 + $0x228] sm:$0xf]
  %v173 = vld [vmem:[%s1 + $0x22c] sm:$0xf]
  %v174 = vld [vmem:[%s1 + $0x230] sm:$0xf]
  %v175 = vld [vmem:[%s1 + $0x234] sm:$0xf]
  %v176 = vld [vmem:[%s1 + $0x238] sm:$0xf]
  %v177 = vld [vmem:[%s1 + $0x23c] sm:$0xf]
  %v198 = vunpack.c.l.b16 %v14
  %v199 = vunpack.c.h.b16 %v14
  %v200 = vunpack.c.l.b16 %v15
  %v201 = vunpack.c.h.b16 %v15
  %v202 = vunpack.c.l.b16 %v16
  %v203 = vunpack.c.h.b16 %v16
  %v204 = vunpack.c.l.b16 %v17
  %v205 = vunpack.c.h.b16 %v17
  %v206 = vunpack.c.l.b16 %v18
  %v207 = vunpack.c.l.b16 %v19
  %v208 = vunpack.c.h.b16 %v19
  %v209 = vunpack.c.l.b16 %v20
  %v210 = vunpack.c.h.b16 %v20
  %v211 = vunpack.c.l.b16 %v21
  %v212 = vunpack.c.h.b16 %v21
  %v213 = vunpack.c.l.b16 %v22
  %v214 = vunpack.c.h.b16 %v22
  %v215 = vunpack.c.l.b16 %v23
  %v216 = vunpack.c.l.b16 %v24
  %v217 = vunpack.c.h.b16 %v24
  %v218 = vunpack.c.l.b16 %v25
  %v219 = vunpack.c.h.b16 %v25
  %v220 = vunpack.c.l.b16 %v26
  %v221 = vunpack.c.h.b16 %v26
  %v222 = vunpack.c.l.b16 %v27
  %v223 = vunpack.c.h.b16 %v27
  %v224 = vunpack.c.l.b16 %v28
  %v225 = vunpack.c.l.b16 %v29
  %v226 = vunpack.c.h.b16 %v29
  %v227 = vunpack.c.l.b16 %v30
  %v228 = vunpack.c.h.b16 %v30
  %v229 = vunpack.c.l.b16 %v31
  %v230 = vunpack.c.h.b16 %v31
  %v231 = vunpack.c.l.b16 %v32
  %v232 = vunpack.c.h.b16 %v32
  %v233 = vunpack.c.l.b16 %v33
  %v234 = vpack.c.b16 %v207, %v198
  %v235 = vpack.c.b16 %v208, %v199
  %v236 = vpack.c.b16 %v209, %v200
  %v237 = vpack.c.b16 %v210, %v201
  %v238 = vpack.c.b16 %v211, %v202
  %v239 = vpack.c.b16 %v212, %v203
  %v240 = vpack.c.b16 %v213, %v204
  %v241 = vpack.c.b16 %v214, %v205
  %v242 = vpack.c.b16 %v215, %v206
  %v243 = vpack.c.b16 %v225, %v216
  %v244 = vpack.c.b16 %v226, %v217
  %v245 = vpack.c.b16 %v227, %v218
  %v246 = vpack.c.b16 %v228, %v219
  %v247 = vpack.c.b16 %v229, %v220
  %v248 = vpack.c.b16 %v230, %v221
  %v249 = vpack.c.b16 %v231, %v222
  %v250 = vpack.c.b16 %v232, %v223
  %v251 = vpack.c.b16 %v233, %v224
  %v414 = vunpack.c.l.b16 %v34
  %v415 = vunpack.c.l.b16 %v35
  %v416 = vunpack.c.l.b16 %v36
  %v417 = vunpack.c.l.b16 %v37
  %v418 = vunpack.c.l.b16 %v38
  %v419 = vunpack.c.l.b16 %v39
  %v420 = vunpack.c.l.b16 %v40
  %v421 = vunpack.c.l.b16 %v41
  %v422 = vunpack.c.l.b16 %v42
  %v423 = vunpack.c.l.b16 %v43
  %v424 = vunpack.c.l.b16 %v44
  %v425 = vunpack.c.l.b16 %v45
  %v426 = vunpack.c.l.b16 %v46
  %v427 = vunpack.c.l.b16 %v47
  %v428 = vunpack.c.l.b16 %v48
  %v429 = vunpack.c.l.b16 %v49
  %v430 = vunpack.c.l.b16 %v50
  %v431 = vunpack.c.l.b16 %v51
  %v432 = vunpack.c.l.b16 %v52
  %v433 = vunpack.c.l.b16 %v53
  %v434 = vunpack.c.l.b16 %v54
  %v435 = vunpack.c.l.b16 %v55
  %v436 = vunpack.c.l.b16 %v56
  %v437 = vunpack.c.l.b16 %v57
  %v438 = vunpack.c.l.b16 %v58
  %v439 = vunpack.c.l.b16 %v59
  %v440 = vunpack.c.l.b16 %v60
  %v441 = vunpack.c.l.b16 %v61
  %v442 = vunpack.c.l.b16 %v62
  %v443 = vunpack.c.l.b16 %v63
  %v444 = vunpack.c.l.b16 %v64
  %v445 = vunpack.c.l.b16 %v65
  %v446 = vunpack.c.l.b16 %v66
  %v447 = vunpack.c.l.b16 %v67
  %v448 = vunpack.c.l.b16 %v68
  %v449 = vunpack.c.l.b16 %v69
  %v450 = vunpack.c.l.b16 %v70
  %v451 = vunpack.c.l.b16 %v71
  %v452 = vunpack.c.l.b16 %v72
  %v453 = vunpack.c.l.b16 %v73
  %v454 = vunpack.c.l.b16 %v74
  %v455 = vunpack.c.l.b16 %v75
  %v456 = vunpack.c.l.b16 %v76
  %v457 = vunpack.c.l.b16 %v77
  %v458 = vunpack.c.l.b16 %v78
  %v459 = vunpack.c.l.b16 %v79
  %v460 = vunpack.c.l.b16 %v80
  %v461 = vunpack.c.l.b16 %v81
  %v462 = vunpack.c.l.b16 %v82
  %v463 = vunpack.c.l.b16 %v83
  %v464 = vunpack.c.l.b16 %v84
  %v465 = vunpack.c.l.b16 %v85
  %v466 = vunpack.c.l.b16 %v86
  %v467 = vunpack.c.l.b16 %v87
  %v468 = vunpack.c.l.b16 %v88
  %v469 = vunpack.c.l.b16 %v89
  %v470 = vunpack.c.l.b16 %v90
  %v471 = vunpack.c.l.b16 %v91
  %v472 = vunpack.c.l.b16 %v92
  %v473 = vunpack.c.l.b16 %v93
  %v474 = vunpack.c.l.b16 %v94
  %v475 = vunpack.c.l.b16 %v95
  %v476 = vunpack.c.l.b16 %v96
  %v477 = vunpack.c.l.b16 %v97
  %v478 = vunpack.c.l.b16 %v98
  %v479 = vunpack.c.l.b16 %v99
  %v480 = vunpack.c.l.b16 %v100
  %v481 = vunpack.c.l.b16 %v101
  %v482 = vunpack.c.l.b16 %v102
  %v483 = vunpack.c.l.b16 %v103
  %v484 = vunpack.c.l.b16 %v104
  %v485 = vunpack.c.l.b16 %v105
  %v486 = vunpack.c.l.b16 %v106
  %v487 = vunpack.c.l.b16 %v107
  %v488 = vunpack.c.l.b16 %v108
  %v489 = vunpack.c.l.b16 %v109
  %v490 = vunpack.c.l.b16 %v110
  %v491 = vunpack.c.l.b16 %v111
  %v492 = vunpack.c.l.b16 %v112
  %v493 = vunpack.c.l.b16 %v113
  %v494 = vunpack.c.l.b16 %v114
  %v495 = vunpack.c.l.b16 %v115
  %v496 = vunpack.c.l.b16 %v116
  %v497 = vunpack.c.l.b16 %v117
  %v498 = vunpack.c.l.b16 %v118
  %v499 = vunpack.c.l.b16 %v119
  %v500 = vunpack.c.l.b16 %v120
  %v501 = vunpack.c.l.b16 %v121
  %v502 = vunpack.c.l.b16 %v122
  %v503 = vunpack.c.l.b16 %v123
  %v504 = vunpack.c.l.b16 %v124
  %v505 = vunpack.c.l.b16 %v125
  %v506 = vunpack.c.l.b16 %v126
  %v507 = vunpack.c.l.b16 %v127
  %v508 = vunpack.c.l.b16 %v128
  %v509 = vunpack.c.l.b16 %v129
  %v510 = vunpack.c.l.b16 %v130
  %v511 = vunpack.c.l.b16 %v131
  %v512 = vunpack.c.l.b16 %v132
  %v513 = vunpack.c.l.b16 %v133
  %v514 = vunpack.c.l.b16 %v134
  %v515 = vunpack.c.l.b16 %v135
  %v516 = vunpack.c.l.b16 %v136
  %v517 = vunpack.c.l.b16 %v137
  %v518 = vunpack.c.l.b16 %v138
  %v519 = vunpack.c.l.b16 %v139
  %v520 = vunpack.c.l.b16 %v140
  %v521 = vunpack.c.l.b16 %v141
  %v522 = vunpack.c.l.b16 %v142
  %v523 = vunpack.c.l.b16 %v143
  %v524 = vunpack.c.l.b16 %v144
  %v525 = vunpack.c.l.b16 %v145
  %v526 = vunpack.c.l.b16 %v146
  %v527 = vunpack.c.l.b16 %v147
  %v528 = vunpack.c.l.b16 %v148
  %v529 = vunpack.c.l.b16 %v149
  %v530 = vunpack.c.l.b16 %v150
  %v531 = vunpack.c.l.b16 %v151
  %v532 = vunpack.c.l.b16 %v152
  %v533 = vunpack.c.l.b16 %v153
  %v534 = vunpack.c.l.b16 %v154
  %v535 = vunpack.c.l.b16 %v155
  %v536 = vunpack.c.l.b16 %v156
  %v537 = vunpack.c.l.b16 %v157
  %v538 = vunpack.c.l.b16 %v158
  %v539 = vunpack.c.l.b16 %v159
  %v540 = vunpack.c.l.b16 %v160
  %v541 = vunpack.c.l.b16 %v161
  %v542 = vunpack.c.l.b16 %v162
  %v543 = vunpack.c.l.b16 %v163
  %v544 = vunpack.c.l.b16 %v164
  %v545 = vunpack.c.l.b16 %v165
  %v546 = vunpack.c.l.b16 %v166
  %v547 = vunpack.c.l.b16 %v167
  %v548 = vunpack.c.l.b16 %v168
  %v549 = vunpack.c.l.b16 %v169
  %v550 = vunpack.c.l.b16 %v170
  %v551 = vunpack.c.l.b16 %v171
  %v552 = vunpack.c.l.b16 %v172
  %v553 = vunpack.c.l.b16 %v173
  %v554 = vunpack.c.l.b16 %v174
  %v555 = vunpack.c.l.b16 %v175
  %v556 = vunpack.c.l.b16 %v176
  %v557 = vunpack.c.l.b16 %v177
  %v558 = vpack.c.b16 %v415, %v414
  %v559 = vpack.c.b16 %v417, %v416
  %v560 = vpack.c.b16 %v419, %v418
  %v561 = vpack.c.b16 %v421, %v420
  %v562 = vpack.c.b16 %v423, %v422
  %v563 = vpack.c.b16 %v425, %v424
  %v564 = vpack.c.b16 %v427, %v426
  %v565 = vpack.c.b16 %v429, %v428
  %v566 = vpack.c.b16 %v431, %v430
  %v567 = vpack.c.b16 %v433, %v432
  %v568 = vpack.c.b16 %v435, %v434
  %v569 = vpack.c.b16 %v437, %v436
  %v570 = vpack.c.b16 %v439, %v438
  %v571 = vpack.c.b16 %v441, %v440
  %v572 = vpack.c.b16 %v443, %v442
  %v573 = vpack.c.b16 %v445, %v444
  %v574 = vpack.c.b16 %v447, %v446
  %v575 = vpack.c.b16 %v449, %v448
  %v576 = vpack.c.b16 %v451, %v450
  %v577 = vpack.c.b16 %v453, %v452
  %v578 = vpack.c.b16 %v455, %v454
  %v579 = vpack.c.b16 %v457, %v456
  %v580 = vpack.c.b16 %v459, %v458
  %v581 = vpack.c.b16 %v461, %v460
  %v582 = vpack.c.b16 %v463, %v462
  %v583 = vpack.c.b16 %v465, %v464
  %v584 = vpack.c.b16 %v467, %v466
  %v585 = vpack.c.b16 %v469, %v468
  %v586 = vpack.c.b16 %v471, %v470
  %v587 = vpack.c.b16 %v473, %v472
  %v588 = vpack.c.b16 %v475, %v474
  %v589 = vpack.c.b16 %v477, %v476
  %v590 = vpack.c.b16 %v479, %v478
  %v591 = vpack.c.b16 %v481, %v480
  %v592 = vpack.c.b16 %v483, %v482
  %v593 = vpack.c.b16 %v485, %v484
  %v594 = vpack.c.b16 %v487, %v486
  %v595 = vpack.c.b16 %v489, %v488
  %v596 = vpack.c.b16 %v491, %v490
  %v597 = vpack.c.b16 %v493, %v492
  %v598 = vpack.c.b16 %v495, %v494
  %v599 = vpack.c.b16 %v497, %v496
  %v600 = vpack.c.b16 %v499, %v498
  %v601 = vpack.c.b16 %v501, %v500
  %v602 = vpack.c.b16 %v503, %v502
  %v603 = vpack.c.b16 %v505, %v504
  %v604 = vpack.c.b16 %v507, %v506
  %v605 = vpack.c.b16 %v509, %v508
  %v606 = vpack.c.b16 %v511, %v510
  %v607 = vpack.c.b16 %v513, %v512
  %v608 = vpack.c.b16 %v515, %v514
  %v609 = vpack.c.b16 %v517, %v516
  %v610 = vpack.c.b16 %v519, %v518
  %v611 = vpack.c.b16 %v521, %v520
  %v612 = vpack.c.b16 %v523, %v522
  %v613 = vpack.c.b16 %v525, %v524
  %v614 = vpack.c.b16 %v527, %v526
  %v615 = vpack.c.b16 %v529, %v528
  %v616 = vpack.c.b16 %v531, %v530
  %v617 = vpack.c.b16 %v533, %v532
  %v618 = vpack.c.b16 %v535, %v534
  %v619 = vpack.c.b16 %v537, %v536
  %v620 = vpack.c.b16 %v539, %v538
  %v621 = vpack.c.b16 %v541, %v540
  %v622 = vpack.c.b16 %v543, %v542
  %v623 = vpack.c.b16 %v545, %v544
  %v624 = vpack.c.b16 %v547, %v546
  %v625 = vpack.c.b16 %v549, %v548
  %v626 = vpack.c.b16 %v551, %v550
  %v627 = vpack.c.b16 %v553, %v552
  %v628 = vpack.c.b16 %v555, %v554
  %v629 = vpack.c.b16 %v557, %v556
  %702 = vmatprep.subr.bf16.mxu0 0
  %703 = vmatpush1.bf16.msra.mxu0 %v565
  %704 = vmatprep.subr.bf16.mxu0 0
  %705 = vmatpush1.bf16.msra.mxu0 %v564
  %706 = vmatprep.subr.bf16.mxu0 0
  %707 = vmatpush1.bf16.msra.mxu0 %v563
  %708 = vmatprep.subr.bf16.mxu0 0
  %709 = vmatpush1.bf16.msra.mxu0 %v562
  %710 = vmatprep.subr.bf16.mxu0 0
  %711 = vmatpush1.bf16.msra.mxu0 %v561
  %712 = vmatprep.subr.bf16.mxu0 0
  %713 = vmatpush1.bf16.msra.mxu0 %v560
  %714 = vmatprep.subr.bf16.mxu0 0
  %715 = vmatpush1.bf16.msra.mxu0 %v559
  %716 = vmatprep.subr.bf16.mxu0 0
  %717 = vmatpush1.bf16.msra.mxu0 %v558
  %718 = vmatprep.subr.bf16.mxu0 0
  %719 = vmatpush2.bf16.msra.mxu0 %v573
  %720 = vmatprep.subr.bf16.mxu0 0
  %721 = vmatpush2.bf16.msra.mxu0 %v572
  %722 = vmatprep.subr.bf16.mxu0 0
  %723 = vmatpush2.bf16.msra.mxu0 %v571
  %724 = vmatprep.subr.bf16.mxu0 0
  %725 = vmatpush2.bf16.msra.mxu0 %v570
  %726 = vmatprep.subr.bf16.mxu0 0
  %727 = vmatpush2.bf16.msra.mxu0 %v569
  %728 = vmatprep.subr.bf16.mxu0 0
  %729 = vmatpush2.bf16.msra.mxu0 %v568
  %730 = vmatprep.subr.bf16.mxu0 0
  %731 = vmatpush2.bf16.msra.mxu0 %v567
  %732 = vmatprep.subr.bf16.mxu0 0
  %733 = vmatpush2.bf16.msra.mxu0 %v566
  %734 = vmatprep.mubr.bf16.mxu0 %v235
  %735 = vmatmul.mubr.bf16.gmra.mxu0 %v234
  %v736 = vpop.f32.mrf.mxu0
  %v737 = vadd.f32 0.0, %v736
  %v738 = vpop.f32.mrf.mxu0
  %v739 = vpop.f32.mrf.mxu0
  %v740 = vadd.f32 0.0, %v739
  %v741 = vpop.f32.mrf.mxu0
  %742 = vmatprep.mubr.bf16.mxu0 %v244
  %743 = vmatmul.mubr.bf16.gmra.mxu0 %v243
  %v744 = vpop.f32.mrf.mxu0
  %v745 = vadd.f32 0.0, %v744
  %v746 = vpop.f32.mrf.mxu0
  %v747 = vpop.f32.mrf.mxu0
  %v748 = vadd.f32 0.0, %v747
  %v749 = vpop.f32.mrf.mxu0
  %750 = vdwg.mxu0
  %751 = vmatprep.subr.bf16.mxu0 0
  %752 = vmatpush1.bf16.msra.mxu0 %v581
  %753 = vmatprep.subr.bf16.mxu0 0
  %754 = vmatpush1.bf16.msra.mxu0 %v580
  %755 = vmatprep.subr.bf16.mxu0 0
  %756 = vmatpush1.bf16.msra.mxu0 %v579
  %757 = vmatprep.subr.bf16.mxu0 0
  %758 = vmatpush1.bf16.msra.mxu0 %v578
  %759 = vmatprep.subr.bf16.mxu0 0
  %760 = vmatpush1.bf16.msra.mxu0 %v577
  %761 = vmatprep.subr.bf16.mxu0 0
  %762 = vmatpush1.bf16.msra.mxu0 %v576
  %763 = vmatprep.subr.bf16.mxu0 0
  %764 = vmatpush1.bf16.msra.mxu0 %v575
  %765 = vmatprep.subr.bf16.mxu0 0
  %766 = vmatpush1.bf16.msra.mxu0 %v574
  %767 = vmatprep.subr.bf16.mxu0 0
  %768 = vmatpush2.bf16.msra.mxu0 %v589
  %769 = vmatprep.subr.bf16.mxu0 0
  %770 = vmatpush2.bf16.msra.mxu0 %v588
  %771 = vmatprep.subr.bf16.mxu0 0
  %772 = vmatpush2.bf16.msra.mxu0 %v587
  %773 = vmatprep.subr.bf16.mxu0 0
  %774 = vmatpush2.bf16.msra.mxu0 %v586
  %775 = vmatprep.subr.bf16.mxu0 0
  %776 = vmatpush2.bf16.msra.mxu0 %v585
  %777 = vmatprep.subr.bf16.mxu0 0
  %778 = vmatpush2.bf16.msra.mxu0 %v584
  %779 = vmatprep.subr.bf16.mxu0 0
  %780 = vmatpush2.bf16.msra.mxu0 %v583
  %781 = vmatprep.subr.bf16.mxu0 0
  %782 = vmatpush2.bf16.msra.mxu0 %v582
  %783 = vmatprep.mubr.bf16.mxu0 %v237
  %784 = vmatmul.mubr.bf16.gmra.mxu0 %v236
  %v785 = vpop.f32.mrf.mxu0
  %v786 = vadd.f32 %v737, %v785
  %v787 = vpop.f32.mrf.mxu0
  %v788 = vpop.f32.mrf.mxu0
  %v789 = vadd.f32 %v740, %v788
  %v790 = vpop.f32.mrf.mxu0
  %791 = vmatprep.mubr.bf16.mxu0 %v246
  %792 = vmatmul.mubr.bf16.gmra.mxu0 %v245
  %v793 = vpop.f32.mrf.mxu0
  %v794 = vadd.f32 %v745, %v793
  %v795 = vpop.f32.mrf.mxu0
  %v796 = vpop.f32.mrf.mxu0
  %v797 = vadd.f32 %v748, %v796
  %v798 = vpop.f32.mrf.mxu0
  %799 = vdwg.mxu0
  %800 = vmatprep.subr.bf16.mxu0 0
  %801 = vmatpush1.bf16.msra.mxu0 %v597
  %802 = vmatprep.subr.bf16.mxu0 0
  %803 = vmatpush1.bf16.msra.mxu0 %v596
  %804 = vmatprep.subr.bf16.mxu0 0
  %805 = vmatpush1.bf16.msra.mxu0 %v595
  %806 = vmatprep.subr.bf16.mxu0 0
  %807 = vmatpush1.bf16.msra.mxu0 %v594
  %808 = vmatprep.subr.bf16.mxu0 0
  %809 = vmatpush1.bf16.msra.mxu0 %v593
  %810 = vmatprep.subr.bf16.mxu0 0
  %811 = vmatpush1.bf16.msra.mxu0 %v592
  %812 = vmatprep.subr.bf16.mxu0 0
  %813 = vmatpush1.bf16.msra.mxu0 %v591
  %814 = vmatprep.subr.bf16.mxu0 0
  %815 = vmatpush1.bf16.msra.mxu0 %v590
  %816 = vmatprep.subr.bf16.mxu0 0
  %817 = vmatpush2.bf16.msra.mxu0 %v605
  %818 = vmatprep.subr.bf16.mxu0 0
  %819 = vmatpush2.bf16.msra.mxu0 %v604
  %820 = vmatprep.subr.bf16.mxu0 0
  %821 = vmatpush2.bf16.msra.mxu0 %v603
  %822 = vmatprep.subr.bf16.mxu0 0
  %823 = vmatpush2.bf16.msra.mxu0 %v602
  %824 = vmatprep.subr.bf16.mxu0 0
  %825 = vmatpush2.bf16.msra.mxu0 %v601
  %826 = vmatprep.subr.bf16.mxu0 0
  %827 = vmatpush2.bf16.msra.mxu0 %v600
  %828 = vmatprep.subr.bf16.mxu0 0
  %829 = vmatpush2.bf16.msra.mxu0 %v599
  %830 = vmatprep.subr.bf16.mxu0 0
  %831 = vmatpush2.bf16.msra.mxu0 %v598
  %832 = vmatprep.mubr.bf16.mxu0 %v239
  %833 = vmatmul.mubr.bf16.gmra.mxu0 %v238
  %v834 = vpop.f32.mrf.mxu0
  %v835 = vadd.f32 %v786, %v834
  %v836 = vpop.f32.mrf.mxu0
  %v837 = vpop.f32.mrf.mxu0
  %v838 = vadd.f32 %v789, %v837
  %v839 = vpop.f32.mrf.mxu0
  %840 = vmatprep.mubr.bf16.mxu0 %v248
  %841 = vmatmul.mubr.bf16.gmra.mxu0 %v247
  %v842 = vpop.f32.mrf.mxu0
  %v843 = vadd.f32 %v794, %v842
  %v844 = vpop.f32.mrf.mxu0
  %v845 = vpop.f32.mrf.mxu0
  %v846 = vadd.f32 %v797, %v845
  %v847 = vpop.f32.mrf.mxu0
  %848 = vdwg.mxu0
  %849 = vmatprep.subr.bf16.mxu0 0
  %850 = vmatpush1.bf16.msra.mxu0 %v613
  %851 = vmatprep.subr.bf16.mxu0 0
  %852 = vmatpush1.bf16.msra.mxu0 %v612
  %853 = vmatprep.subr.bf16.mxu0 0
  %854 = vmatpush1.bf16.msra.mxu0 %v611
  %855 = vmatprep.subr.bf16.mxu0 0
  %856 = vmatpush1.bf16.msra.mxu0 %v610
  %857 = vmatprep.subr.bf16.mxu0 0
  %858 = vmatpush1.bf16.msra.mxu0 %v609
  %859 = vmatprep.subr.bf16.mxu0 0
  %860 = vmatpush1.bf16.msra.mxu0 %v608
  %861 = vmatprep.subr.bf16.mxu0 0
  %862 = vmatpush1.bf16.msra.mxu0 %v607
  %863 = vmatprep.subr.bf16.mxu0 0
  %864 = vmatpush1.bf16.msra.mxu0 %v606
  %865 = vmatprep.subr.bf16.mxu0 0
  %866 = vmatpush2.bf16.msra.mxu0 %v621
  %867 = vmatprep.subr.bf16.mxu0 0
  %868 = vmatpush2.bf16.msra.mxu0 %v620
  %869 = vmatprep.subr.bf16.mxu0 0
  %870 = vmatpush2.bf16.msra.mxu0 %v619
  %871 = vmatprep.subr.bf16.mxu0 0
  %872 = vmatpush2.bf16.msra.mxu0 %v618
  %873 = vmatprep.subr.bf16.mxu0 0
  %874 = vmatpush2.bf16.msra.mxu0 %v617
  %875 = vmatprep.subr.bf16.mxu0 0
  %876 = vmatpush2.bf16.msra.mxu0 %v616
  %877 = vmatprep.subr.bf16.mxu0 0
  %878 = vmatpush2.bf16.msra.mxu0 %v615
  %879 = vmatprep.subr.bf16.mxu0 0
  %880 = vmatpush2.bf16.msra.mxu0 %v614
  %881 = vmatprep.mubr.bf16.mxu0 %v241
  %882 = vmatmul.mubr.bf16.gmra.mxu0 %v240
  %v883 = vpop.f32.mrf.mxu0
  %v884 = vadd.f32 %v835, %v883
  %v885 = vpop.f32.mrf.mxu0
  %v886 = vpop.f32.mrf.mxu0
  %v887 = vadd.f32 %v838, %v886
  %v888 = vpop.f32.mrf.mxu0
  %889 = vmatprep.mubr.bf16.mxu0 %v250
  %890 = vmatmul.mubr.bf16.gmra.mxu0 %v249
  %v891 = vpop.f32.mrf.mxu0
  %v892 = vadd.f32 %v843, %v891
  %v893 = vpop.f32.mrf.mxu0
  %v894 = vpop.f32.mrf.mxu0
  %v895 = vadd.f32 %v846, %v894
  %v896 = vpop.f32.mrf.mxu0
  %897 = vdwg.mxu0
  %898 = vmatprep.subr.bf16.mxu0 0
  %899 = vmatpush1.bf16.msra.mxu0 %v629
  %900 = vmatprep.subr.bf16.mxu0 0
  %901 = vmatpush1.bf16.msra.mxu0 %v628
  %902 = vmatprep.subr.bf16.mxu0 0
  %903 = vmatpush1.bf16.msra.mxu0 %v627
  %904 = vmatprep.subr.bf16.mxu0 0
  %905 = vmatpush1.bf16.msra.mxu0 %v626
  %906 = vmatprep.subr.bf16.mxu0 0
  %907 = vmatpush1.bf16.msra.mxu0 %v625
  %908 = vmatprep.subr.bf16.mxu0 0
  %909 = vmatpush1.bf16.msra.mxu0 %v624
  %910 = vmatprep.subr.bf16.mxu0 0
  %911 = vmatpush1.bf16.msra.mxu0 %v623
  %912 = vmatprep.subr.bf16.mxu0 0
  %913 = vmatpush1.bf16.msra.mxu0 %v622
  %914 = vmatprep.subr.bf16.mxu0 0
  %915 = vmatpush2.bf16.msra.mxu0 0
  %916 = vmatprep.subr.bf16.mxu0 0
  %917 = vmatpush2.bf16.msra.mxu0 0
  %918 = vmatprep.subr.bf16.mxu0 0
  %919 = vmatpush2.bf16.msra.mxu0 0
  %920 = vmatprep.subr.bf16.mxu0 0
  %921 = vmatpush2.bf16.msra.mxu0 0
  %922 = vmatprep.subr.bf16.mxu0 0
  %923 = vmatpush2.bf16.msra.mxu0 0
  %924 = vmatprep.subr.bf16.mxu0 0
  %925 = vmatpush2.bf16.msra.mxu0 0
  %926 = vmatprep.subr.bf16.mxu0 0
  %927 = vmatpush2.bf16.msra.mxu0 0
  %928 = vmatprep.subr.bf16.mxu0 0
  %929 = vmatpush2.bf16.msra.mxu0 0
  %930 = vmatprep.mubr.bf16.mxu0 0
  %931 = vmatmul.mubr.bf16.gmra.mxu0 %v242
  %v932 = vpop.f32.mrf.mxu0
  %v933 = vadd.f32 %v884, %v932
  %v934 = vpop.f32.mrf.mxu0
  %v935 = vpop.f32.mrf.mxu0
  %v936 = vadd.f32 %v887, %v935
  %v937 = vpop.f32.mrf.mxu0
  %938 = vmatprep.mubr.bf16.mxu0 0
  %939 = vmatmul.mubr.bf16.gmra.mxu0 %v251
  %v940 = vpop.f32.mrf.mxu0
  %v941 = vadd.f32 %v892, %v940
  %v942 = vpop.f32.mrf.mxu0
  %v943 = vpop.f32.mrf.mxu0
  %v944 = vadd.f32 %v895, %v943
  %v945 = vpop.f32.mrf.mxu0
  %946 = vdwg.mxu0
  %947 = vst [vmem:[%s2] sm:$0xff] %v933
  %948 = vst [vmem:[%s2 + $0x8] sm:$0xff] %v936
  %949 = vst [vmem:[%s2 + $0x10] sm:$0xff] %v941
  %950 = vst [vmem:[%s2 + $0x18] sm:$0xff] %v944
  %v951 = vadd.f32 %v933, %v936
  %v952 = vadd.f32 %v951, %v941
  %v953 = vadd.f32 %v952, %v944
  %v954 = vrot.slane %v953, 4
  %v955 = vadd.f32 %v953, %v954
  %v956 = vrot.slane %v955, 2
  %v957 = vadd.f32 %v955, %v956
  %v958 = vrot.slane %v957, 1
  %v959 = vadd.f32 %v957, %v958
  %v960 = vmul.f32 %v933, %v933
  %v961 = vmul.f32 %v936, %v936
  %v962 = vmul.f32 %v941, %v941
  %v963 = vmul.f32 %v944, %v944
  %v964 = vadd.f32 %v960, %v961
  %v965 = vadd.f32 %v964, %v962
  %v966 = vadd.f32 %v965, %v963
  %v967 = vrot.slane %v966, 4
  %v968 = vadd.f32 %v966, %v967
  %v969 = vrot.slane %v968, 2
  %v970 = vadd.f32 %v968, %v969
  %v971 = vrot.slane %v970, 1
  %v972 = vadd.f32 %v970, %v971
  %p973 = scmp.eq.s32.totalorder 0, 0
  // Predicated region
  $region10: #{resnet_forward.29} parent=0 // pred_check
    %p974 = pneg %p973
  $region11: #{resnet_forward.29} parent=0 // pred_check_branch
    %976 = sbr.rel (%p974) target = $region13
  $region12: #{resnet_forward.29} parent=0 // pred_region
    %977 = vst [vmem:[%s3] sm:$0x3] 0.0
  $region13: #{resnet_forward.29} parent=0 // pred_fallthru
    _
  %v978 = vld [vmem:[%s3] sm:$0x3]
  %vm979 = vcmask 1040384
  %v980 = vsel %vm979, %v959, %v972
  %v981 = vadd.f32 %v978, %v980
  %982 = vst [vmem:[%s3] sm:$0x3] %v981
  // Predicated region
  $region14: #{resnet_forward.29} parent=0 // pred_check
    _
  $region15: #{resnet_forward.29} parent=0 // pred_check_branch
    %984 = sbr.rel (0) target = $region17
  $region16: #{resnet_forward.29} parent=0 // pred_region
    _
  $region17: #{resnet_forward.29} parent=0 // pred_fallthru
    _
  // Predicated region
  $region18: #{resnet_forward.29} parent=0 // pred_check
    _
  $region19: #{resnet_forward.29} parent=0 // pred_check_branch
    %986 = sbr.rel (0) target = $region21
  $region20: #{resnet_forward.29} parent=0 // pred_region
    _
  $region21: #{resnet_forward.29} parent=0 // pred_fallthru
    _
  // Predicated region
  $region22: #{resnet_forward.29} parent=0 // pred_check
    _
  $region23: #{resnet_forward.29} parent=0 // pred_check_branch
    %988 = sbr.rel (0) target = $region25
  $region24: #{resnet_forward.29} parent=0 // pred_region
    _
  $region25: #{resnet_forward.29} parent=0 // pred_fallthru
    _
  // Predicated region
  $region26: #{resnet_forward.29} parent=0 // pred_check
    _
  $region27: #{resnet_forward.29} parent=0 // pred_check_branch
    %990 = sbr.rel (0) target = $region29
  $region28: #{resnet_forward.29} parent=0 // pred_region
    _
  $region29: #{resnet_forward.29} parent=0 // pred_fallthru
    _

// kernel: resnet_forward.35
$region0: #{resnet_forward.35}
  #allocation0 [shape = 'u32[]', space=smem, size = 0x4, offset = 0x4, fixed_abs, tag = 'smem constant byte address 0x4 - core index']
  #allocation1 [shape = 'u32[144,128]{1,0:T(1,128)}', space=vmem, size = 0x12000, scoped, tag = 'internal scratch']
  %s0 = inlined_call_operand.vmem [shape: f32[2,16,128], index: 0, kind: input, shape index: {}]
  %s1 = inlined_call_operand.vmem [shape: f32[128,10], index: 1, kind: input, shape index: {}]
  %s2 = inlined_call_operand.vmem [shape: f32[1,10], index: 2, kind: input, shape index: {}]
  %s3 = inlined_call_operand.hbm [shape: f32[2,10], index: 3, kind: output, shape index: {}]
  %s4 = sld [smem:[#allocation0]]
  $region22: #{resnet_forward.35} parent=0
    _
  %s6 = ssub.s32 1, %s4
  %s7 = scalar_select 0, %s6, %s4
  $region1: #{resnet_forward.35} parent=0
    #allocation2 [shape = 'u8[1024]{0}', space=vmem, size = 0x400, scoped, tag = 'output window, operand 0, single buffered']
    #allocation3 [shape = 's32[1]{0}', space=sflag, size = 0x4, scoped, tag = 'scoped memory for resnet_forward.35']
    %8 = vsyncpa [#allocation3], 0
    // Predicated region
    $region2: #{resnet_forward.35} parent=1 // pred_check
      _
    $region3: #{resnet_forward.35} parent=1 // pred_check_branch
      %10 = sbr.rel (0) target = $region5
    $region4: #{resnet_forward.35} parent=1 // pred_region
      _
    $region5: #{resnet_forward.35} parent=1 // pred_fallthru
      _
    // Predicated region
    $region6: #{resnet_forward.35} parent=1 // pred_check
      _
    $region7: #{resnet_forward.35} parent=1 // pred_check_branch
      %12 = sbr.rel (0) target = $region9
    $region8: #{resnet_forward.35} parent=1 // pred_region
      _
    $region9: #{resnet_forward.35} parent=1 // pred_fallthru
      _
    // Predicated region
    $region10: #{resnet_forward.35} parent=1 // pred_check
      _
    $region11: #{resnet_forward.35} parent=1 // pred_check_branch
      %14 = sbr.rel (0) target = $region13
    $region12: #{resnet_forward.35} parent=1 // pred_region
      _
    $region13: #{resnet_forward.35} parent=1 // pred_fallthru
      _
    %v15 = vld [vmem:[%s0] sm:$0xff]
    %v16 = vld [vmem:[%s0 + $0x8] sm:$0xff]
    %v17 = vld [vmem:[%s0 + $0x10] sm:$0xff]
    %v18 = vld [vmem:[%s0 + $0x18] sm:$0xff]
    %v19 = vadd.f32 %v15, %v16
    %v20 = vrot.slane %v19, 4
    %v21 = vadd.f32 %v19, %v20
    %v22 = vrot.slane %v21, 2
    %v23 = vadd.f32 %v21, %v22
    %v24 = vrot.slane %v23, 1
    %v25 = vadd.f32 %v23, %v24
    %v26 = vadd.f32 %v17, %v18
    %v27 = vrot.slane %v26, 4
    %v28 = vadd.f32 %v26, %v27
    %v29 = vrot.slane %v28, 2
    %v30 = vadd.f32 %v28, %v29
    %v31 = vrot.slane %v30, 1
    %v32 = vadd.f32 %v30, %v31
    %v33 = vrcp.pop 16.0
    %v34 = vmul.f32 %v25, %v33
    %v35 = vmul.f32 %v32, %v33
    %v36 = vld [vmem:[%s1] sm:$0xff]
    %v37 = vld [vmem:[%s1 + $0x8] sm:$0xff]
    %v38 = vld [vmem:[%s1 + $0x10] sm:$0xff]
    %v39 = vld [vmem:[%s1 + $0x18] sm:$0xff]
    %v40 = vld [vmem:[%s1 + $0x20] sm:$0xff]
    %v41 = vld [vmem:[%s1 + $0x28] sm:$0xff]
    %v42 = vld [vmem:[%s1 + $0x30] sm:$0xff]
    %v43 = vld [vmem:[%s1 + $0x38] sm:$0xff]
    %v44 = vld [vmem:[%s1 + $0x40] sm:$0xff]
    %v45 = vld [vmem:[%s1 + $0x48] sm:$0xff]
    %v46 = vld [vmem:[%s1 + $0x50] sm:$0xff]
    %v47 = vld [vmem:[%s1 + $0x58] sm:$0xff]
    %v48 = vld [vmem:[%s1 + $0x60] sm:$0xff]
    %v49 = vld [vmem:[%s1 + $0x68] sm:$0xff]
    %v50 = vld [vmem:[%s1 + $0x70] sm:$0xff]
    %v51 = vld [vmem:[%s1 + $0x78] sm:$0xff]
    %v52 = vld [vmem:[%s2] sm:$0x1]
    %v54 = vlaneseq
    %v55 = vshrl.u32 %v54, 7
    %v56 = vsub.s32 0, %v55
    %v57 = vrot.slane %v52, %v56
    %vm61 = vcmask 1041409
    %v62 = vsel %vm61, %v35, %v34
    %64 = vmatprep.subr.mxu0 0.0
    %65 = vmatpush1.msra.mxu0 %v51
    %66 = vmatprep.subr.mxu0 0.0
    %67 = vmatpush1.msra.mxu0 %v50
    %68 = vmatprep.subr.mxu0 0.0
    %69 = vmatpush1.msra.mxu0 %v49
    %70 = vmatprep.subr.mxu0 0.0
    %71 = vmatpush1.msra.mxu0 %v48
    %72 = vmatprep.subr.mxu0 0.0
    %73 = vmatpush1.msra.mxu0 %v47
    %74 = vmatprep.subr.mxu0 0.0
    %75 = vmatpush1.msra.mxu0 %v46
    %76 = vmatprep.subr.mxu0 0.0
    %77 = vmatpush1.msra.mxu0 %v45
    %78 = vmatprep.subr.mxu0 0.0
    %79 = vmatpush1.msra.mxu0 %v44
    %80 = vmatprep.subr.mxu0 0.0
    %81 = vmatpush1.msra.mxu0 %v43
    %82 = vmatprep.subr.mxu0 0.0
    %83 = vmatpush1.msra.mxu0 %v42
    %84 = vmatprep.subr.mxu0 0.0
    %85 = vmatpush1.msra.mxu0 %v41
    %86 = vmatprep.subr.mxu0 0.0
    %87 = vmatpush1.msra.mxu0 %v40
    %88 = vmatprep.subr.mxu0 0.0
    %89 = vmatpush1.msra.mxu0 %v39
    %90 = vmatprep.subr.mxu0 0.0
    %91 = vmatpush1.msra.mxu0 %v38
    %92 = vmatprep.subr.mxu0 0.0
    %93 = vmatpush1.msra.mxu0 %v37
    %94 = vmatprep.subr.mxu0 0.0
    %95 = vmatpush1.msra.mxu0 %v36
    %96 = vmatprep.subr.mxu0 0.0
    %97 = vmatpush2.msra.mxu0 0.0
    %98 = vmatprep.subr.mxu0 0.0
    %99 = vmatpush2.msra.mxu0 0.0
    %100 = vmatprep.subr.mxu0 0.0
    %101 = vmatpush2.msra.mxu0 0.0
    %102 = vmatprep.subr.mxu0 0.0
    %103 = vmatpush2.msra.mxu0 0.0
    %104 = vmatprep.subr.mxu0 0.0
    %105 = vmatpush2.msra.mxu0 0.0
    %106 = vmatprep.subr.mxu0 0.0
    %107 = vmatpush2.msra.mxu0 0.0
    %108 = vmatprep.subr.mxu0 0.0
    %109 = vmatpush2.msra.mxu0 0.0
    %110 = vmatprep.subr.mxu0 0.0
    %111 = vmatpush2.msra.mxu0 0.0
    %112 = vmatprep.subr.mxu0 0.0
    %113 = vmatpush2.msra.mxu0 0.0
    %114 = vmatprep.subr.mxu0 0.0
    %115 = vmatpush2.msra.mxu0 0.0
    %116 = vmatprep.subr.mxu0 0.0
    %117 = vmatpush2.msra.mxu0 0.0
    %118 = vmatprep.subr.mxu0 0.0
    %119 = vmatpush2.msra.mxu0 0.0
    %120 = vmatprep.subr.mxu0 0.0
    %121 = vmatpush2.msra.mxu0 0.0
    %122 = vmatprep.subr.mxu0 0.0
    %123 = vmatpush2.msra.mxu0 0.0
    %124 = vmatprep.subr.mxu0 0.0
    %125 = vmatpush2.msra.mxu0 0.0
    %126 = vmatprep.subr.mxu0 0.0
    %127 = vmatpush2.msra.mxu0 0.0
    %128 = vmatprep.mubr.f32.mxu0 0.0
    %129 = vmatmul.mubr.f32.gmra.mxu0 %v62
    %v130 = vpop.f32.mrf.mxu0
    %v131 = vadd.f32 %v57, %v130
    %v132 = vpop.f32.mrf.mxu0
    %133 = vdwg.mxu0
    %vm134 = vcmask 74752
    %135 = vst.msk [vmem:[#allocation2] sm:$0x3] %vm134, %v131
    // Predicated region
    $region14: #{resnet_forward.35} parent=1 // pred_check
      _
    $region15: #{resnet_forward.35} parent=1 // pred_check_branch
      %137 = sbr.rel (0) target = $region17
    $region16: #{resnet_forward.35} parent=1 // pred_region
      %s139 = ssub.s32 32, 32
      %140 = vsyncadd [#allocation3], %s139
      %s142 = sshll.u32 [#allocation2], 4
      %s143 = int_to_ptr.vmem [resolvable:$true] %s142
      %145 = dma.vmem_to_hbm [thread:$0]  %s143, 32, %s3, [#allocation3]
    $region17: #{resnet_forward.35} parent=1 // pred_fallthru
      _
    // Predicated region
    $region18: #{resnet_forward.35} parent=1 // pred_check
      _
    $region19: #{resnet_forward.35} parent=1 // pred_check_branch
      %147 = sbr.rel (0) target = $region21
    $region20: #{resnet_forward.35} parent=1 // pred_region
      %148 = dma.done [#allocation3], 32
    $region21: #{resnet_forward.35} parent=1 // pred_fallthru
      _
    %149 = vsyncpa [#allocation3], 1

</llo_original>
